<compile_context>
chip_gen: v6e
topology: v6e:2x2x1
jax: 0.10.0
libtpu: 0.0.40
codegen_flags: <defaults>
</compile_context>

<pallas_src>
import jax
import jax.numpy as jnp
from jax.experimental import pallas as pl
from jax.experimental.pallas import tpu as pltpu


# ---------------------------------------------------------------------------
# Helpers
# ---------------------------------------------------------------------------
def _zero_halo_border(pad_ref, hh, ww, cc):
    """Zero ONLY the 1-pixel border of a (hh+2, ww+2, cc) halo buffer.

    The interior [1:hh+1, 1:ww+1, :] is fully overwritten every grid step and the
    border is never written anywhere else, so this is sufficient (and ~O(hh*cc)
    instead of O(hh*ww*cc) stores per image).
    """
    f32 = jnp.float32
    pad_ref[pl.ds(0, 1), :, :] = jnp.zeros((1, ww + 2, cc), f32)
    pad_ref[pl.ds(hh + 1, 1), :, :] = jnp.zeros((1, ww + 2, cc), f32)
    pad_ref[:, pl.ds(0, 1), :] = jnp.zeros((hh + 2, 1, cc), f32)
    pad_ref[:, pl.ds(ww + 1, 1), :] = jnp.zeros((hh + 2, 1, cc), f32)


def _dwconv3x3(pad_ref, w9, bias, oh, ow, stride=1, residual=None):
    """3x3 depthwise conv from a halo-padded VMEM ref (BN scale pre-folded into w9).

    Three independent partial-sum chains (tree reduction) instead of a 9-deep serial
    chain; the bias is folded into chain 0's init and the optional residual into
    chain 1's init, so there is no zero-fill and no trailing full-tile adds.
    """
    def tap(t):
        ki, kj = divmod(t, 3)
        if stride == 1:
            s = pad_ref[pl.ds(ki, oh), pl.ds(kj, ow), :]
        else:
            s = pad_ref[pl.ds(ki, oh, stride), pl.ds(kj, ow, stride), :]
        return s * w9[t]

    p0 = tap(0) + bias
    p1 = tap(1) if residual is None else tap(1) + residual
    p2 = tap(2)
    p0 = p0 + tap(3)
    p1 = p1 + tap(4)
    p2 = p2 + tap(5)
    p0 = p0 + tap(6)
    p1 = p1 + tap(7)
    p2 = p2 + tap(8)
    return (p0 + p1) + p2


# ---------------------------------------------------------------------------
# Fused PatchMerging kernel: one grid step == one image, all stages in VMEM.
# ---------------------------------------------------------------------------
def _patch_merging_kernel(
    x_ref,                                   # (H, W, Cin)  NHWC slab of one image
    dw1_w_ref, dw1_b_ref,                    # (9, Cin), (1, Cin)      BN scale folded
    pw1_w_ref, pw1_b_ref,                    # (Cin, hid) bf16, (1, hid)
    dw2_w_ref, dw2_b_ref,                    # (9, hid), (1, hid)
    se_w1t_ref, se_b1_ref,                   # (sq, hid), (sq, 1)
    se_w2_ref, se_b2_ref,                    # (sq, hid), (1, hid)
    pw2_w_ref, pw2_b_ref,                    # (hid, Cout) bf16, (1, Cout)
    dw3_w_ref, dw3_b_ref,                    # (9, Cout), (1, Cout)
    o_ref,                                   # (Ho, Wo, Cout)
    xpad_ref, ypad_ref, zpad_ref,            # VMEM halo-padded scratch buffers
):
    H, W, Cin = x_ref.shape
    Ho, Wo, Cout = o_ref.shape
    hidden = pw1_b_ref.shape[1]
    f32 = jnp.float32

    # Border-only halo clear (interiors are fully rewritten below every step).
    _zero_halo_border(xpad_ref, H, W, Cin)
    _zero_halo_border(ypad_ref, H, W, hidden)
    _zero_halo_border(zpad_ref, Ho, Wo, Cout)

    # ---------------- stage 1: x = x + BN(dwconv3x3(x)) ----------------------
    x = x_ref[...].astype(f32)
    xpad_ref[pl.ds(1, H), pl.ds(1, W), :] = x
    x1 = _dwconv3x3(xpad_ref, dw1_w_ref[...], dw1_b_ref[...], H, W, residual=x)

    # ---------------- stage 2: ReLU(BN(conv1x1: Cin -> hidden)) --------------
    h = jnp.dot(x1.reshape(H * W, Cin).astype(jnp.bfloat16), pw1_w_ref[...],
                preferred_element_type=f32)                     # MXU, bf16 in / f32 acc
    h = jnp.maximum(h + pw1_b_ref[...], 0.0)
    ypad_ref[pl.ds(1, H), pl.ds(1, W), :] = h.reshape(H, W, hidden)

    # ---------------- stage 3: ReLU(BN(dwconv3x3, stride 2)) -----------------
    # TODO(synk): replace the 9 stride-2 gathers with a one-time parity-plane deinterleave.
    y2 = jnp.maximum(
        _dwconv3x3(ypad_ref, dw2_w_ref[...], dw2_b_ref[...], Ho, Wo, stride=2), 0.0)
    y2f = y2.reshape(Ho * Wo, hidden)

    # ---------------- stage 4: SqueezeExcitation (VPU only, no M=1 matmul) ---
    s = jnp.sum(y2f, axis=0, keepdims=True) * (1.0 / (Ho * Wo))              # (1, hidden)
    z = jnp.sum(se_w1t_ref[...] * s, axis=1, keepdims=True) + se_b1_ref[...]  # (sq, 1)
    z = jnp.maximum(z, 0.0)
    g = jnp.sum(se_w2_ref[...] * z, axis=0, keepdims=True) + se_b2_ref[...]   # (1, hidden)
    g = 1.0 / (1.0 + jnp.exp(-g))                                             # sigmoid
    y2f = y2f * g

    # ---------------- stage 5: BN(conv1x1: hidden -> Cout) -------------------
    y3 = jnp.dot(y2f.astype(jnp.bfloat16), pw2_w_ref[...],
                 preferred_element_type=f32) + pw2_b_ref[...]                 # (Ho*Wo, Cout)
    y3r = y3.reshape(Ho, Wo, Cout)
    zpad_ref[pl.ds(1, Ho), pl.ds(1, Wo), :] = y3r

    # ---------------- stage 6: y = y + BN(dwconv3x3(y)) ----------------------
    out = _dwconv3x3(zpad_ref, dw3_w_ref[...], dw3_b_ref[...], Ho, Wo, residual=y3r)
    o_ref[...] = out.astype(o_ref.dtype)


# ---------------------------------------------------------------------------
# Wrapper: NCHW in / NCHW out, single pallas_call over the batch.
# ---------------------------------------------------------------------------
def patch_merging_forward(x_nchw, p):
    B, Cin, H, W = x_nchw.shape
    assert H % 2 == 0 and W % 2 == 0
    Ho, Wo = H // 2, W // 2
    hidden = p["pw1_b"].shape[1]
    Cout = p["pw2_b"].shape[1]

    x = jnp.transpose(x_nchw, (0, 2, 3, 1))                # NCHW -> NHWC (small glue)

    weight_args = [
        p["dw1_w"], p["dw1_b"],
        p["pw1_w"], p["pw1_b"],
        p["dw2_w"], p["dw2_b"],
        p["se_w1t"], p["se_b1"], p["se_w2"], p["se_b2"],
        p["pw2_w"], p["pw2_b"],
        p["dw3_w"], p["dw3_b"],
    ]
    in_specs = [pl.BlockSpec((None, H, W, Cin), lambda b: (b, 0, 0, 0))]
    # TODO(synk): weights are grid-constant; consider pl.Buffered(1) if VMEM gets tight on v7x.
    in_specs += [pl.BlockSpec(w.shape, lambda b: (0, 0)) for w in weight_args]

    # Explicit scoped-VMEM budget: scratch + double-buffered I/O blocks + weights + headroom.
    itemsize = jnp.dtype(x_nchw.dtype).itemsize
    scratch_bytes = 4 * ((H + 2) * (W + 2) * (Cin + hidden) + (Ho + 2) * (Wo + 2) * Cout)
    io_bytes = 2 * itemsize * (H * W * Cin + Ho * Wo * Cout)
    w_bytes = 2 * sum(int(w.size) * jnp.dtype(w.dtype).itemsize for w in weight_args)
    tmp_bytes = 6 * 4 * H * W * max(Cin, hidden)           # compiler temporaries headroom
    vmem_limit = max(32 << 20, 2 * (scratch_bytes + io_bytes + w_bytes + tmp_bytes))
    vmem_limit = int(min(vmem_limit, 64 << 20))            # stay within v7x physical VMEM

    out = pl.pallas_call(
        _patch_merging_kernel,
        out_shape=jax.ShapeDtypeStruct((B, Ho, Wo, Cout), x_nchw.dtype),
        grid=(B,),
        in_specs=in_specs,
        out_specs=pl.BlockSpec((None, Ho, Wo, Cout), lambda b: (b, 0, 0, 0)),
        scratch_shapes=[
            pltpu.VMEM((H + 2, W + 2, Cin), jnp.float32),      # padded input  (dw1)
            pltpu.VMEM((H + 2, W + 2, hidden), jnp.float32),   # padded hidden (dw2, s2)
            pltpu.VMEM((Ho + 2, Wo + 2, Cout), jnp.float32),   # padded output (dw3)
        ],
        compiler_params=pltpu.CompilerParams(
            dimension_semantics=("parallel",),
            vmem_limit_bytes=vmem_limit,
        ),
    )(x, *weight_args)

    return jnp.transpose(out, (0, 3, 1, 2))                # NHWC -> NCHW


# ---------------------------------------------------------------------------
# Pure-JAX (XLA) reference for a loose-tolerance correctness check.
# ---------------------------------------------------------------------------
def _ref_forward(x_nchw, p):
    f32 = jnp.float32
    x = jnp.transpose(x_nchw, (0, 2, 3, 1)).astype(f32)    # NHWC
    hidden = p["pw1_b"].shape[1]
    dn = ("NHWC", "HWIO", "NHWC")

    def dw(xin, w9, b, stride):
        c = xin.shape[-1]
        w = w9.reshape(3, 3, 1, c)
        y = jax.lax.conv_general_dilated(xin, w, (stride, stride), ((1, 1), (1, 1)),
                                         dimension_numbers=dn, feature_group_count=c)
        return y + b.reshape(1, 1, 1, c)

    def pw(xin, w, b):
        bb, hh, ww, cc = xin.shape
        y = jnp.dot(xin.reshape(-1, cc).astype(jnp.bfloat16), w,
                    preferred_element_type=f32)
        return y.reshape(bb, hh, ww, -1) + b.reshape(1, 1, 1, -1)

    x1 = x + dw(x, p["dw1_w"], p["dw1_b"], 1)
    h = jax.nn.relu(pw(x1, p["pw1_w"], p["pw1_b"]))
    y2 = jax.nn.relu(dw(h, p["dw2_w"], p["dw2_b"], 2))
    s = jnp.mean(y2, axis=(1, 2))                                          # (B, hidden)
    z = jax.nn.relu(s @ p["se_w1t"].T + p["se_b1"].reshape(1, -1))         # (B, sq)
    g = jax.nn.sigmoid(z @ p["se_w2"] + p["se_b2"])                        # (B, hidden)
    y2 = y2 * g[:, None, None, :]
    y3 = pw(y2, p["pw2_w"], p["pw2_b"])
    out = y3 + dw(y3, p["dw3_w"], p["dw3_b"], 1)
    return jnp.transpose(out, (0, 3, 1, 2))


# ---------------------------------------------------------------------------
# Deterministic synthetic parameters (shapes from PatchMerging.__init__).
# BatchNorm is folded: scale = gamma/sqrt(var+eps) multiplied into the conv weight,
# bias = beta - mean*scale added in-kernel.
# ---------------------------------------------------------------------------
def make_params(key, in_dim, out_dim, ratio):
    hidden = int(out_dim * ratio)
    sq = hidden // 4
    ks = list(jax.random.split(key, 16))

    def conv_w(k, shape, fan_in):
        return jax.random.normal(k, shape, jnp.float32) / jnp.sqrt(float(fan_in))

    def bn(k, c, eps=1e-5):
        k1, k2, k3, k4 = jax.random.split(k, 4)
        gamma = jax.random.uniform(k1, (c,), jnp.float32, 0.5, 1.5)
        beta = 0.1 * jax.random.normal(k2, (c,), jnp.float32)
        mean = 0.1 * jax.random.normal(k3, (c,), jnp.float32)
        var = jax.random.uniform(k4, (c,), jnp.float32, 0.5, 1.5)
        scale = gamma / jnp.sqrt(var + eps)
        bias = beta - mean * scale
        return scale, bias

    p = {}
    # dwconv1 (3x3 depthwise, in_dim) + BN
    w = conv_w(ks[0], (3, 3, in_dim), 9)
    s, b = bn(ks[1], in_dim)
    p["dw1_w"] = (w * s).reshape(9, in_dim)
    p["dw1_b"] = b.reshape(1, in_dim)
    # conv 1x1 in_dim -> hidden + BN (ReLU in kernel)
    w = conv_w(ks[2], (in_dim, hidden), in_dim)
    s, b = bn(ks[3], hidden)
    p["pw1_w"] = (w * s[None, :]).astype(jnp.bfloat16)
    p["pw1_b"] = b.reshape(1, hidden)
    # dwconv 3x3 stride 2 (hidden) + BN (ReLU in kernel)
    w = conv_w(ks[4], (3, 3, hidden), 9)
    s, b = bn(ks[5], hidden)
    p["dw2_w"] = (w * s).reshape(9, hidden)
    p["dw2_b"] = b.reshape(1, hidden)
    # SqueezeExcitation: fc1 (hidden->sq) stored transposed for VPU contraction, fc2 (sq->hidden)
    p["se_w1t"] = conv_w(ks[6], (hidden, sq), hidden).T          # (sq, hidden)
    p["se_b1"] = 0.1 * jax.random.normal(ks[7], (sq, 1), jnp.float32)
    p["se_w2"] = conv_w(ks[8], (sq, hidden), sq)                 # (sq, hidden)
    p["se_b2"] = 0.1 * jax.random.normal(ks[9], (1, hidden), jnp.float32)
    # conv 1x1 hidden -> out_dim + BN
    w = conv_w(ks[10], (hidden, out_dim), hidden)
    s, b = bn(ks[11], out_dim)
    p["pw2_w"] = (w * s[None, :]).astype(jnp.bfloat16)
    p["pw2_b"] = b.reshape(1, out_dim)
    # dwconv2 (3x3 depthwise, out_dim) + BN
    w = conv_w(ks[12], (3, 3, out_dim), 9)
    s, b = bn(ks[13], out_dim)
    p["dw3_w"] = (w * s).reshape(9, out_dim)
    p["dw3_b"] = b.reshape(1, out_dim)
    return p


if __name__ == "__main__":
    B, in_dim, H, W = 2, 16, 16, 16
    out_dim, ratio = 32, 2.0

    key = jax.random.PRNGKey(0)
    kx, kp = jax.random.split(key)
    x = jax.random.normal(kx, (B, in_dim, H, W), jnp.float32)   # NCHW input
    params = make_params(kp, in_dim, out_dim, ratio)

    fwd = jax.jit(patch_merging_forward)
    out = jax.block_until_ready(fwd(x, params))

    assert out.shape == (B, out_dim, H // 2, W // 2), out.shape
    assert bool(jnp.all(jnp.isfinite(out)))

    # Loose-tolerance check vs. an XLA reference (both paths quantize the 1x1-conv
    # activations/weights to bf16, so remaining diffs are accumulation-order only).
    ref = _ref_forward(x, params)
    err = float(jnp.max(jnp.abs(out - ref)))
    assert err < 5e-2, f"max abs err vs reference: {err}"
    print("KERNEL_OK")
</pallas_src>

<mosaic_0001>
module attributes {stable_mosaic.version = 11 : i64} {
  func.func @_patch_merging_kernel(%arg0: i32, %arg1: memref<1x16x16x16xf32, #tpu.memory_space<vmem>>, %arg2: memref<9x16xf32, #tpu.memory_space<vmem>>, %arg3: memref<1x16xf32, #tpu.memory_space<vmem>>, %arg4: memref<16x64xbf16, #tpu.memory_space<vmem>>, %arg5: memref<1x64xf32, #tpu.memory_space<vmem>>, %arg6: memref<9x64xf32, #tpu.memory_space<vmem>>, %arg7: memref<1x64xf32, #tpu.memory_space<vmem>>, %arg8: memref<16x64xf32, #tpu.memory_space<vmem>>, %arg9: memref<16x1xf32, #tpu.memory_space<vmem>>, %arg10: memref<16x64xf32, #tpu.memory_space<vmem>>, %arg11: memref<1x64xf32, #tpu.memory_space<vmem>>, %arg12: memref<64x32xbf16, #tpu.memory_space<vmem>>, %arg13: memref<1x32xf32, #tpu.memory_space<vmem>>, %arg14: memref<9x32xf32, #tpu.memory_space<vmem>>, %arg15: memref<1x32xf32, #tpu.memory_space<vmem>>, %arg16: memref<1x8x8x32xf32, #tpu.memory_space<vmem>>, %arg17: memref<18x18x16xf32, #tpu.memory_space<vmem>>, %arg18: memref<18x18x64xf32, #tpu.memory_space<vmem>>, %arg19: memref<10x10x32xf32, #tpu.memory_space<vmem>>) attributes {dimension_semantics = [#tpu.dimension_semantics<parallel>], iteration_bounds = array<i64: 2>, scalar_prefetch = 0 : i64, scratch_operands = 3 : i64, tpu.core_type = #tpu.core_type<tc>, window_params = [{transform_indices = @transform_0, window_bounds = array<i64: 1, 16, 16, 16>}, {pipeline_mode = #tpu.pipeline_mode<synchronous>, transform_indices = @transform_1, window_bounds = array<i64: 9, 16>}, {pipeline_mode = #tpu.pipeline_mode<synchronous>, transform_indices = @transform_2, window_bounds = array<i64: 1, 16>}, {pipeline_mode = #tpu.pipeline_mode<synchronous>, transform_indices = @transform_3, window_bounds = array<i64: 16, 64>}, {pipeline_mode = #tpu.pipeline_mode<synchronous>, transform_indices = @transform_4, window_bounds = array<i64: 1, 64>}, {pipeline_mode = #tpu.pipeline_mode<synchronous>, transform_indices = @transform_5, window_bounds = array<i64: 9, 64>}, {pipeline_mode = #tpu.pipeline_mode<synchronous>, transform_indices = @transform_6, window_bounds = array<i64: 1, 64>}, {pipeline_mode = #tpu.pipeline_mode<synchronous>, transform_indices = @transform_7, window_bounds = array<i64: 16, 64>}, {pipeline_mode = #tpu.pipeline_mode<synchronous>, transform_indices = @transform_8, window_bounds = array<i64: 16, 1>}, {pipeline_mode = #tpu.pipeline_mode<synchronous>, transform_indices = @transform_9, window_bounds = array<i64: 16, 64>}, {pipeline_mode = #tpu.pipeline_mode<synchronous>, transform_indices = @transform_10, window_bounds = array<i64: 1, 64>}, {pipeline_mode = #tpu.pipeline_mode<synchronous>, transform_indices = @transform_11, window_bounds = array<i64: 64, 32>}, {pipeline_mode = #tpu.pipeline_mode<synchronous>, transform_indices = @transform_12, window_bounds = array<i64: 1, 32>}, {pipeline_mode = #tpu.pipeline_mode<synchronous>, transform_indices = @transform_13, window_bounds = array<i64: 9, 32>}, {pipeline_mode = #tpu.pipeline_mode<synchronous>, transform_indices = @transform_14, window_bounds = array<i64: 1, 32>}, {transform_indices = @transform_15, window_bounds = array<i64: 1, 8, 8, 32>}]} {
    %cst = arith.constant 0.000000e+00 : f32
    %0 = vector.broadcast %cst : f32 to vector<1x18x16xf32>
    %c0 = arith.constant 0 : index
    %c0_0 = arith.constant 0 : index
    %c0_1 = arith.constant 0 : index
    %1 = vector.load %arg17[%c0, %c0_0, %c0_1] : memref<18x18x16xf32, #tpu.memory_space<vmem>>, vector<1x18x16xf32>
    tpu.vector_store %arg17[%c0, %c0_0, %c0_1], %0 {strides = array<i32>} : memref<18x18x16xf32, #tpu.memory_space<vmem>>, vector<1x18x16xf32>,
    %cst_2 = arith.constant 0.000000e+00 : f32
    %2 = vector.broadcast %cst_2 : f32 to vector<1x18x16xf32>
    %c17 = arith.constant 17 : index
    %c0_3 = arith.constant 0 : index
    %c0_4 = arith.constant 0 : index
    %3 = vector.load %arg17[%c17, %c0_3, %c0_4] : memref<18x18x16xf32, #tpu.memory_space<vmem>>, vector<1x18x16xf32>
    tpu.vector_store %arg17[%c17, %c0_3, %c0_4], %2 {strides = array<i32>} : memref<18x18x16xf32, #tpu.memory_space<vmem>>, vector<1x18x16xf32>,
    %cst_5 = arith.constant 0.000000e+00 : f32
    %4 = vector.broadcast %cst_5 : f32 to vector<18x1x16xf32>
    %c0_6 = arith.constant 0 : index
    %c0_7 = arith.constant 0 : index
    %c0_8 = arith.constant 0 : index
    %5 = vector.load %arg17[%c0_6, %c0_7, %c0_8] : memref<18x18x16xf32, #tpu.memory_space<vmem>>, vector<18x1x16xf32>
    tpu.vector_store %arg17[%c0_6, %c0_7, %c0_8], %4 {strides = array<i32>} : memref<18x18x16xf32, #tpu.memory_space<vmem>>, vector<18x1x16xf32>,
    %cst_9 = arith.constant 0.000000e+00 : f32
    %6 = vector.broadcast %cst_9 : f32 to vector<18x1x16xf32>
    %c0_10 = arith.constant 0 : index
    %c17_11 = arith.constant 17 : index
    %c0_12 = arith.constant 0 : index
    %7 = vector.load %arg17[%c0_10, %c17_11, %c0_12] : memref<18x18x16xf32, #tpu.memory_space<vmem>>, vector<18x1x16xf32>
    tpu.vector_store %arg17[%c0_10, %c17_11, %c0_12], %6 {strides = array<i32>} : memref<18x18x16xf32, #tpu.memory_space<vmem>>, vector<18x1x16xf32>,
    %cst_13 = arith.constant 0.000000e+00 : f32
    %8 = vector.broadcast %cst_13 : f32 to vector<1x18x64xf32>
    %c0_14 = arith.constant 0 : index
    %c0_15 = arith.constant 0 : index
    %c0_16 = arith.constant 0 : index
    %9 = vector.load %arg18[%c0_14, %c0_15, %c0_16] : memref<18x18x64xf32, #tpu.memory_space<vmem>>, vector<1x18x64xf32>
    tpu.vector_store %arg18[%c0_14, %c0_15, %c0_16], %8 {strides = array<i32>} : memref<18x18x64xf32, #tpu.memory_space<vmem>>, vector<1x18x64xf32>,
    %cst_17 = arith.constant 0.000000e+00 : f32
    %10 = vector.broadcast %cst_17 : f32 to vector<1x18x64xf32>
    %c17_18 = arith.constant 17 : index
    %c0_19 = arith.constant 0 : index
    %c0_20 = arith.constant 0 : index
    %11 = vector.load %arg18[%c17_18, %c0_19, %c0_20] : memref<18x18x64xf32, #tpu.memory_space<vmem>>, vector<1x18x64xf32>
    tpu.vector_store %arg18[%c17_18, %c0_19, %c0_20], %10 {strides = array<i32>} : memref<18x18x64xf32, #tpu.memory_space<vmem>>, vector<1x18x64xf32>,
    %cst_21 = arith.constant 0.000000e+00 : f32
    %12 = vector.broadcast %cst_21 : f32 to vector<18x1x64xf32>
    %c0_22 = arith.constant 0 : index
    %c0_23 = arith.constant 0 : index
    %c0_24 = arith.constant 0 : index
    %13 = vector.load %arg18[%c0_22, %c0_23, %c0_24] : memref<18x18x64xf32, #tpu.memory_space<vmem>>, vector<18x1x64xf32>
    tpu.vector_store %arg18[%c0_22, %c0_23, %c0_24], %12 {strides = array<i32>} : memref<18x18x64xf32, #tpu.memory_space<vmem>>, vector<18x1x64xf32>,
    %cst_25 = arith.constant 0.000000e+00 : f32
    %14 = vector.broadcast %cst_25 : f32 to vector<18x1x64xf32>
    %c0_26 = arith.constant 0 : index
    %c17_27 = arith.constant 17 : index
    %c0_28 = arith.constant 0 : index
    %15 = vector.load %arg18[%c0_26, %c17_27, %c0_28] : memref<18x18x64xf32, #tpu.memory_space<vmem>>, vector<18x1x64xf32>
    tpu.vector_store %arg18[%c0_26, %c17_27, %c0_28], %14 {strides = array<i32>} : memref<18x18x64xf32, #tpu.memory_space<vmem>>, vector<18x1x64xf32>,
    %cst_29 = arith.constant 0.000000e+00 : f32
    %16 = vector.broadcast %cst_29 : f32 to vector<1x10x32xf32>
    %c0_30 = arith.constant 0 : index
    %c0_31 = arith.constant 0 : index
    %c0_32 = arith.constant 0 : index
    %17 = vector.load %arg19[%c0_30, %c0_31, %c0_32] : memref<10x10x32xf32, #tpu.memory_space<vmem>>, vector<1x10x32xf32>
    tpu.vector_store %arg19[%c0_30, %c0_31, %c0_32], %16 {strides = array<i32>} : memref<10x10x32xf32, #tpu.memory_space<vmem>>, vector<1x10x32xf32>,
    %cst_33 = arith.constant 0.000000e+00 : f32
    %18 = vector.broadcast %cst_33 : f32 to vector<1x10x32xf32>
    %c9 = arith.constant 9 : index
    %c0_34 = arith.constant 0 : index
    %c0_35 = arith.constant 0 : index
    %19 = vector.load %arg19[%c9, %c0_34, %c0_35] : memref<10x10x32xf32, #tpu.memory_space<vmem>>, vector<1x10x32xf32>
    tpu.vector_store %arg19[%c9, %c0_34, %c0_35], %18 {strides = array<i32>} : memref<10x10x32xf32, #tpu.memory_space<vmem>>, vector<1x10x32xf32>,
    %cst_36 = arith.constant 0.000000e+00 : f32
    %20 = vector.broadcast %cst_36 : f32 to vector<10x1x32xf32>
    %c0_37 = arith.constant 0 : index
    %c0_38 = arith.constant 0 : index
    %c0_39 = arith.constant 0 : index
    %21 = vector.load %arg19[%c0_37, %c0_38, %c0_39] : memref<10x10x32xf32, #tpu.memory_space<vmem>>, vector<10x1x32xf32>
    tpu.vector_store %arg19[%c0_37, %c0_38, %c0_39], %20 {strides = array<i32>} : memref<10x10x32xf32, #tpu.memory_space<vmem>>, vector<10x1x32xf32>,
    %cst_40 = arith.constant 0.000000e+00 : f32
    %22 = vector.broadcast %cst_40 : f32 to vector<10x1x32xf32>
    %c0_41 = arith.constant 0 : index
    %c9_42 = arith.constant 9 : index
    %c0_43 = arith.constant 0 : index
    %23 = vector.load %arg19[%c0_41, %c9_42, %c0_43] : memref<10x10x32xf32, #tpu.memory_space<vmem>>, vector<10x1x32xf32>
    tpu.vector_store %arg19[%c0_41, %c9_42, %c0_43], %22 {strides = array<i32>} : memref<10x10x32xf32, #tpu.memory_space<vmem>>, vector<10x1x32xf32>,
    %c0_44 = arith.constant 0 : index
    %c0_45 = arith.constant 0 : index
    %c0_46 = arith.constant 0 : index
    %c0_47 = arith.constant 0 : index
    %24 = vector.load %arg1[%c0_44, %c0_45, %c0_46, %c0_47] : memref<1x16x16x16xf32, #tpu.memory_space<vmem>>, vector<1x16x16x16xf32>
    %25 = vector.shape_cast %24 : vector<1x16x16x16xf32> to vector<16x16x16xf32>
    %c1 = arith.constant 1 : index
    %c1_48 = arith.constant 1 : index
    %c0_49 = arith.constant 0 : index
    %26 = vector.load %arg17[%c1, %c1_48, %c0_49] : memref<18x18x16xf32, #tpu.memory_space<vmem>>, vector<16x16x16xf32>
    tpu.vector_store %arg17[%c1, %c1_48, %c0_49], %25 {strides = array<i32>} : memref<18x18x16xf32, #tpu.memory_space<vmem>>, vector<16x16x16xf32>,
    %c0_50 = arith.constant 0 : index
    %c0_51 = arith.constant 0 : index
    %27 = vector.load %arg2[%c0_50, %c0_51] : memref<9x16xf32, #tpu.memory_space<vmem>>, vector<9x16xf32>
    %c0_52 = arith.constant 0 : index
    %c0_53 = arith.constant 0 : index
    %28 = vector.load %arg3[%c0_52, %c0_53] : memref<1x16xf32, #tpu.memory_space<vmem>>, vector<1x16xf32>
    %c0_54 = arith.constant 0 : index
    %c0_55 = arith.constant 0 : index
    %c0_56 = arith.constant 0 : index
    %29 = vector.load %arg17[%c0_54, %c0_55, %c0_56] : memref<18x18x16xf32, #tpu.memory_space<vmem>>, vector<16x16x16xf32>
    %30 = vector.extract_strided_slice %27 {offsets = [0, 0], sizes = [1, 16], strides = [1, 1]} : vector<9x16xf32> to vector<1x16xf32>
    %31 = vector.shape_cast %30 : vector<1x16xf32> to vector<16xf32>
    %32 = vector.shape_cast %31 : vector<16xf32> to vector<1x1x16xf32>
    %33 = vector.broadcast %32 : vector<1x1x16xf32> to vector<16x16x16xf32>
    %34 = arith.mulf %29, %33 : vector<16x16x16xf32>
    %35 = vector.shape_cast %28 : vector<1x16xf32> to vector<1x1x16xf32>
    %36 = vector.broadcast %35 : vector<1x1x16xf32> to vector<16x16x16xf32>
    %37 = arith.addf %34, %36 : vector<16x16x16xf32>
    %c0_57 = arith.constant 0 : index
    %c1_58 = arith.constant 1 : index
    %c0_59 = arith.constant 0 : index
    %38 = vector.load %arg17[%c0_57, %c1_58, %c0_59] : memref<18x18x16xf32, #tpu.memory_space<vmem>>, vector<16x16x16xf32>
    %39 = vector.extract_strided_slice %27 {offsets = [1, 0], sizes = [1, 16], strides = [1, 1]} : vector<9x16xf32> to vector<1x16xf32>
    %40 = vector.shape_cast %39 : vector<1x16xf32> to vector<16xf32>
    %41 = vector.shape_cast %40 : vector<16xf32> to vector<1x1x16xf32>
    %42 = vector.broadcast %41 : vector<1x1x16xf32> to vector<16x16x16xf32>
    %43 = arith.mulf %38, %42 : vector<16x16x16xf32>
    %44 = arith.addf %43, %25 : vector<16x16x16xf32>
    %c0_60 = arith.constant 0 : index
    %c2 = arith.constant 2 : index
    %c0_61 = arith.constant 0 : index
    %45 = vector.load %arg17[%c0_60, %c2, %c0_61] : memref<18x18x16xf32, #tpu.memory_space<vmem>>, vector<16x16x16xf32>
    %46 = vector.extract_strided_slice %27 {offsets = [2, 0], sizes = [1, 16], strides = [1, 1]} : vector<9x16xf32> to vector<1x16xf32>
    %47 = vector.shape_cast %46 : vector<1x16xf32> to vector<16xf32>
    %48 = vector.shape_cast %47 : vector<16xf32> to vector<1x1x16xf32>
    %49 = vector.broadcast %48 : vector<1x1x16xf32> to vector<16x16x16xf32>
    %50 = arith.mulf %45, %49 : vector<16x16x16xf32>
    %c1_62 = arith.constant 1 : index
    %c0_63 = arith.constant 0 : index
    %c0_64 = arith.constant 0 : index
    %51 = vector.load %arg17[%c1_62, %c0_63, %c0_64] : memref<18x18x16xf32, #tpu.memory_space<vmem>>, vector<16x16x16xf32>
    %52 = vector.extract_strided_slice %27 {offsets = [3, 0], sizes = [1, 16], strides = [1, 1]} : vector<9x16xf32> to vector<1x16xf32>
    %53 = vector.shape_cast %52 : vector<1x16xf32> to vector<16xf32>
    %54 = vector.shape_cast %53 : vector<16xf32> to vector<1x1x16xf32>
    %55 = vector.broadcast %54 : vector<1x1x16xf32> to vector<16x16x16xf32>
    %56 = arith.mulf %51, %55 : vector<16x16x16xf32>
    %57 = arith.addf %37, %56 : vector<16x16x16xf32>
    %c1_65 = arith.constant 1 : index
    %c1_66 = arith.constant 1 : index
    %c0_67 = arith.constant 0 : index
    %58 = vector.load %arg17[%c1_65, %c1_66, %c0_67] : memref<18x18x16xf32, #tpu.memory_space<vmem>>, vector<16x16x16xf32>
    %59 = vector.extract_strided_slice %27 {offsets = [4, 0], sizes = [1, 16], strides = [1, 1]} : vector<9x16xf32> to vector<1x16xf32>
    %60 = vector.shape_cast %59 : vector<1x16xf32> to vector<16xf32>
    %61 = vector.shape_cast %60 : vector<16xf32> to vector<1x1x16xf32>
    %62 = vector.broadcast %61 : vector<1x1x16xf32> to vector<16x16x16xf32>
    %63 = arith.mulf %58, %62 : vector<16x16x16xf32>
    %64 = arith.addf %44, %63 : vector<16x16x16xf32>
    %c1_68 = arith.constant 1 : index
    %c2_69 = arith.constant 2 : index
    %c0_70 = arith.constant 0 : index
    %65 = vector.load %arg17[%c1_68, %c2_69, %c0_70] : memref<18x18x16xf32, #tpu.memory_space<vmem>>, vector<16x16x16xf32>
    %66 = vector.extract_strided_slice %27 {offsets = [5, 0], sizes = [1, 16], strides = [1, 1]} : vector<9x16xf32> to vector<1x16xf32>
    %67 = vector.shape_cast %66 : vector<1x16xf32> to vector<16xf32>
    %68 = vector.shape_cast %67 : vector<16xf32> to vector<1x1x16xf32>
    %69 = vector.broadcast %68 : vector<1x1x16xf32> to vector<16x16x16xf32>
    %70 = arith.mulf %65, %69 : vector<16x16x16xf32>
    %71 = arith.addf %50, %70 : vector<16x16x16xf32>
    %c2_71 = arith.constant 2 : index
    %c0_72 = arith.constant 0 : index
    %c0_73 = arith.constant 0 : index
    %72 = vector.load %arg17[%c2_71, %c0_72, %c0_73] : memref<18x18x16xf32, #tpu.memory_space<vmem>>, vector<16x16x16xf32>
    %73 = vector.extract_strided_slice %27 {offsets = [6, 0], sizes = [1, 16], strides = [1, 1]} : vector<9x16xf32> to vector<1x16xf32>
    %74 = vector.shape_cast %73 : vector<1x16xf32> to vector<16xf32>
    %75 = vector.shape_cast %74 : vector<16xf32> to vector<1x1x16xf32>
    %76 = vector.broadcast %75 : vector<1x1x16xf32> to vector<16x16x16xf32>
    %77 = arith.mulf %72, %76 : vector<16x16x16xf32>
    %78 = arith.addf %57, %77 : vector<16x16x16xf32>
    %c2_74 = arith.constant 2 : index
    %c1_75 = arith.constant 1 : index
    %c0_76 = arith.constant 0 : index
    %79 = vector.load %arg17[%c2_74, %c1_75, %c0_76] : memref<18x18x16xf32, #tpu.memory_space<vmem>>, vector<16x16x16xf32>
    %80 = vector.extract_strided_slice %27 {offsets = [7, 0], sizes = [1, 16], strides = [1, 1]} : vector<9x16xf32> to vector<1x16xf32>
    %81 = vector.shape_cast %80 : vector<1x16xf32> to vector<16xf32>
    %82 = vector.shape_cast %81 : vector<16xf32> to vector<1x1x16xf32>
    %83 = vector.broadcast %82 : vector<1x1x16xf32> to vector<16x16x16xf32>
    %84 = arith.mulf %79, %83 : vector<16x16x16xf32>
    %85 = arith.addf %64, %84 : vector<16x16x16xf32>
    %c2_77 = arith.constant 2 : index
    %c2_78 = arith.constant 2 : index
    %c0_79 = arith.constant 0 : index
    %86 = vector.load %arg17[%c2_77, %c2_78, %c0_79] : memref<18x18x16xf32, #tpu.memory_space<vmem>>, vector<16x16x16xf32>
    %87 = vector.extract_strided_slice %27 {offsets = [8, 0], sizes = [1, 16], strides = [1, 1]} : vector<9x16xf32> to vector<1x16xf32>
    %88 = vector.shape_cast %87 : vector<1x16xf32> to vector<16xf32>
    %89 = vector.shape_cast %88 : vector<16xf32> to vector<1x1x16xf32>
    %90 = vector.broadcast %89 : vector<1x1x16xf32> to vector<16x16x16xf32>
    %91 = arith.mulf %86, %90 : vector<16x16x16xf32>
    %92 = arith.addf %71, %91 : vector<16x16x16xf32>
    %93 = arith.addf %78, %85 : vector<16x16x16xf32>
    %94 = arith.addf %93, %92 : vector<16x16x16xf32>
    %95 = vector.shape_cast %94 : vector<16x16x16xf32> to vector<256x16xf32>
    %96 = arith.truncf %95 : vector<256x16xf32> to vector<256x16xbf16>
    %c0_80 = arith.constant 0 : index
    %c0_81 = arith.constant 0 : index
    %97 = vector.load %arg4[%c0_80, %c0_81] : memref<16x64xbf16, #tpu.memory_space<vmem>>, vector<16x64xbf16>
    %cst_82 = arith.constant dense<0.000000e+00> : vector<256x64xf32>
    %98 = tpu.matmul %96, %97, %cst_82 {dimension_numbers = #tpu.dot_dimension_numbers<[1], [0], [0], [1], [0, 0, 1, 1], [], []>} : vector<256x16xbf16>, vector<16x64xbf16>, vector<256x64xf32> -> vector<256x64xf32>
    %c0_83 = arith.constant 0 : index
    %c0_84 = arith.constant 0 : index
    %99 = vector.load %arg5[%c0_83, %c0_84] : memref<1x64xf32, #tpu.memory_space<vmem>>, vector<1x64xf32>
    %100 = vector.broadcast %99 : vector<1x64xf32> to vector<256x64xf32>
    %101 = arith.addf %98, %100 : vector<256x64xf32>
    %cst_85 = arith.constant 0.000000e+00 : f32
    %102 = vector.broadcast %cst_85 : f32 to vector<256x64xf32>
    %103 = arith.maximumf %101, %102 : vector<256x64xf32>
    %104 = vector.shape_cast %103 : vector<256x64xf32> to vector<16x16x64xf32>
    %c1_86 = arith.constant 1 : index
    %c1_87 = arith.constant 1 : index
    %c0_88 = arith.constant 0 : index
    %105 = vector.load %arg18[%c1_86, %c1_87, %c0_88] : memref<18x18x64xf32, #tpu.memory_space<vmem>>, vector<16x16x64xf32>
    tpu.vector_store %arg18[%c1_86, %c1_87, %c0_88], %104 {strides = array<i32>} : memref<18x18x64xf32, #tpu.memory_space<vmem>>, vector<16x16x64xf32>,
    %c0_89 = arith.constant 0 : index
    %c0_90 = arith.constant 0 : index
    %106 = vector.load %arg6[%c0_89, %c0_90] : memref<9x64xf32, #tpu.memory_space<vmem>>, vector<9x64xf32>
    %c0_91 = arith.constant 0 : index
    %c0_92 = arith.constant 0 : index
    %107 = vector.load %arg7[%c0_91, %c0_92] : memref<1x64xf32, #tpu.memory_space<vmem>>, vector<1x64xf32>
    %c0_93 = arith.constant 0 : index
    %c0_94 = arith.constant 0 : index
    %c0_95 = arith.constant 0 : index
    %108 = tpu.strided_load %arg18[%c0_93, %c0_94, %c0_95] {strides = array<i32: 2, 2, 1>} : memref<18x18x64xf32, #tpu.memory_space<vmem>>, vector<8x8x64xf32>
    %109 = vector.extract_strided_slice %106 {offsets = [0, 0], sizes = [1, 64], strides = [1, 1]} : vector<9x64xf32> to vector<1x64xf32>
    %110 = vector.shape_cast %109 : vector<1x64xf32> to vector<64xf32>
    %111 = vector.shape_cast %110 : vector<64xf32> to vector<1x1x64xf32>
    %112 = vector.broadcast %111 : vector<1x1x64xf32> to vector<8x8x64xf32>
    %113 = arith.mulf %108, %112 : vector<8x8x64xf32>
    %114 = vector.shape_cast %107 : vector<1x64xf32> to vector<1x1x64xf32>
    %115 = vector.broadcast %114 : vector<1x1x64xf32> to vector<8x8x64xf32>
    %116 = arith.addf %113, %115 : vector<8x8x64xf32>
    %c0_96 = arith.constant 0 : index
    %c1_97 = arith.constant 1 : index
    %c0_98 = arith.constant 0 : index
    %117 = tpu.strided_load %arg18[%c0_96, %c1_97, %c0_98] {strides = array<i32: 2, 2, 1>} : memref<18x18x64xf32, #tpu.memory_space<vmem>>, vector<8x8x64xf32>
    %118 = vector.extract_strided_slice %106 {offsets = [1, 0], sizes = [1, 64], strides = [1, 1]} : vector<9x64xf32> to vector<1x64xf32>
    %119 = vector.shape_cast %118 : vector<1x64xf32> to vector<64xf32>
    %120 = vector.shape_cast %119 : vector<64xf32> to vector<1x1x64xf32>
    %121 = vector.broadcast %120 : vector<1x1x64xf32> to vector<8x8x64xf32>
    %122 = arith.mulf %117, %121 : vector<8x8x64xf32>
    %c0_99 = arith.constant 0 : index
    %c2_100 = arith.constant 2 : index
    %c0_101 = arith.constant 0 : index
    %123 = tpu.strided_load %arg18[%c0_99, %c2_100, %c0_101] {strides = array<i32: 2, 2, 1>} : memref<18x18x64xf32, #tpu.memory_space<vmem>>, vector<8x8x64xf32>
    %124 = vector.extract_strided_slice %106 {offsets = [2, 0], sizes = [1, 64], strides = [1, 1]} : vector<9x64xf32> to vector<1x64xf32>
    %125 = vector.shape_cast %124 : vector<1x64xf32> to vector<64xf32>
    %126 = vector.shape_cast %125 : vector<64xf32> to vector<1x1x64xf32>
    %127 = vector.broadcast %126 : vector<1x1x64xf32> to vector<8x8x64xf32>
    %128 = arith.mulf %123, %127 : vector<8x8x64xf32>
    %c1_102 = arith.constant 1 : index
    %c0_103 = arith.constant 0 : index
    %c0_104 = arith.constant 0 : index
    %129 = tpu.strided_load %arg18[%c1_102, %c0_103, %c0_104] {strides = array<i32: 2, 2, 1>} : memref<18x18x64xf32, #tpu.memory_space<vmem>>, vector<8x8x64xf32>
    %130 = vector.extract_strided_slice %106 {offsets = [3, 0], sizes = [1, 64], strides = [1, 1]} : vector<9x64xf32> to vector<1x64xf32>
    %131 = vector.shape_cast %130 : vector<1x64xf32> to vector<64xf32>
    %132 = vector.shape_cast %131 : vector<64xf32> to vector<1x1x64xf32>
    %133 = vector.broadcast %132 : vector<1x1x64xf32> to vector<8x8x64xf32>
    %134 = arith.mulf %129, %133 : vector<8x8x64xf32>
    %135 = arith.addf %116, %134 : vector<8x8x64xf32>
    %c1_105 = arith.constant 1 : index
    %c1_106 = arith.constant 1 : index
    %c0_107 = arith.constant 0 : index
    %136 = tpu.strided_load %arg18[%c1_105, %c1_106, %c0_107] {strides = array<i32: 2, 2, 1>} : memref<18x18x64xf32, #tpu.memory_space<vmem>>, vector<8x8x64xf32>
    %137 = vector.extract_strided_slice %106 {offsets = [4, 0], sizes = [1, 64], strides = [1, 1]} : vector<9x64xf32> to vector<1x64xf32>
    %138 = vector.shape_cast %137 : vector<1x64xf32> to vector<64xf32>
    %139 = vector.shape_cast %138 : vector<64xf32> to vector<1x1x64xf32>
    %140 = vector.broadcast %139 : vector<1x1x64xf32> to vector<8x8x64xf32>
    %141 = arith.mulf %136, %140 : vector<8x8x64xf32>
    %142 = arith.addf %122, %141 : vector<8x8x64xf32>
    %c1_108 = arith.constant 1 : index
    %c2_109 = arith.constant 2 : index
    %c0_110 = arith.constant 0 : index
    %143 = tpu.strided_load %arg18[%c1_108, %c2_109, %c0_110] {strides = array<i32: 2, 2, 1>} : memref<18x18x64xf32, #tpu.memory_space<vmem>>, vector<8x8x64xf32>
    %144 = vector.extract_strided_slice %106 {offsets = [5, 0], sizes = [1, 64], strides = [1, 1]} : vector<9x64xf32> to vector<1x64xf32>
    %145 = vector.shape_cast %144 : vector<1x64xf32> to vector<64xf32>
    %146 = vector.shape_cast %145 : vector<64xf32> to vector<1x1x64xf32>
    %147 = vector.broadcast %146 : vector<1x1x64xf32> to vector<8x8x64xf32>
    %148 = arith.mulf %143, %147 : vector<8x8x64xf32>
    %149 = arith.addf %128, %148 : vector<8x8x64xf32>
    %c2_111 = arith.constant 2 : index
    %c0_112 = arith.constant 0 : index
    %c0_113 = arith.constant 0 : index
    %150 = tpu.strided_load %arg18[%c2_111, %c0_112, %c0_113] {strides = array<i32: 2, 2, 1>} : memref<18x18x64xf32, #tpu.memory_space<vmem>>, vector<8x8x64xf32>
    %151 = vector.extract_strided_slice %106 {offsets = [6, 0], sizes = [1, 64], strides = [1, 1]} : vector<9x64xf32> to vector<1x64xf32>
    %152 = vector.shape_cast %151 : vector<1x64xf32> to vector<64xf32>
    %153 = vector.shape_cast %152 : vector<64xf32> to vector<1x1x64xf32>
    %154 = vector.broadcast %153 : vector<1x1x64xf32> to vector<8x8x64xf32>
    %155 = arith.mulf %150, %154 : vector<8x8x64xf32>
    %156 = arith.addf %135, %155 : vector<8x8x64xf32>
    %c2_114 = arith.constant 2 : index
    %c1_115 = arith.constant 1 : index
    %c0_116 = arith.constant 0 : index
    %157 = tpu.strided_load %arg18[%c2_114, %c1_115, %c0_116] {strides = array<i32: 2, 2, 1>} : memref<18x18x64xf32, #tpu.memory_space<vmem>>, vector<8x8x64xf32>
    %158 = vector.extract_strided_slice %106 {offsets = [7, 0], sizes = [1, 64], strides = [1, 1]} : vector<9x64xf32> to vector<1x64xf32>
    %159 = vector.shape_cast %158 : vector<1x64xf32> to vector<64xf32>
    %160 = vector.shape_cast %159 : vector<64xf32> to vector<1x1x64xf32>
    %161 = vector.broadcast %160 : vector<1x1x64xf32> to vector<8x8x64xf32>
    %162 = arith.mulf %157, %161 : vector<8x8x64xf32>
    %163 = arith.addf %142, %162 : vector<8x8x64xf32>
    %c2_117 = arith.constant 2 : index
    %c2_118 = arith.constant 2 : index
    %c0_119 = arith.constant 0 : index
    %164 = tpu.strided_load %arg18[%c2_117, %c2_118, %c0_119] {strides = array<i32: 2, 2, 1>} : memref<18x18x64xf32, #tpu.memory_space<vmem>>, vector<8x8x64xf32>
    %165 = vector.extract_strided_slice %106 {offsets = [8, 0], sizes = [1, 64], strides = [1, 1]} : vector<9x64xf32> to vector<1x64xf32>
    %166 = vector.shape_cast %165 : vector<1x64xf32> to vector<64xf32>
    %167 = vector.shape_cast %166 : vector<64xf32> to vector<1x1x64xf32>
    %168 = vector.broadcast %167 : vector<1x1x64xf32> to vector<8x8x64xf32>
    %169 = arith.mulf %164, %168 : vector<8x8x64xf32>
    %170 = arith.addf %149, %169 : vector<8x8x64xf32>
    %171 = arith.addf %156, %163 : vector<8x8x64xf32>
    %172 = arith.addf %171, %170 : vector<8x8x64xf32>
    %cst_120 = arith.constant 0.000000e+00 : f32
    %173 = vector.broadcast %cst_120 : f32 to vector<8x8x64xf32>
    %174 = arith.maximumf %172, %173 : vector<8x8x64xf32>
    %175 = vector.shape_cast %174 : vector<8x8x64xf32> to vector<64x64xf32>
    %cst_121 = arith.constant dense<0.000000e+00> : vector<64xf32>
    %176 = vector.multi_reduction <add>, %175, %cst_121 [0] : vector<64x64xf32> to vector<64xf32>
    %177 = vector.shape_cast %176 : vector<64xf32> to vector<1x64xf32>
    %cst_122 = arith.constant 1.562500e-02 : f32
    %178 = vector.broadcast %cst_122 : f32 to vector<1x64xf32>
    %179 = arith.mulf %177, %178 : vector<1x64xf32>
    %c0_123 = arith.constant 0 : index
    %c0_124 = arith.constant 0 : index
    %180 = vector.load %arg8[%c0_123, %c0_124] : memref<16x64xf32, #tpu.memory_space<vmem>>, vector<16x64xf32>
    %181 = vector.broadcast %179 : vector<1x64xf32> to vector<16x64xf32>
    %182 = arith.mulf %180, %181 : vector<16x64xf32>
    %cst_125 = arith.constant dense<0.000000e+00> : vector<16xf32>
    %183 = vector.multi_reduction <add>, %182, %cst_125 [1] : vector<16x64xf32> to vector<16xf32>
    %184 = vector.shape_cast %183 : vector<16xf32> to vector<16x1xf32>
    %c0_126 = arith.constant 0 : index
    %c0_127 = arith.constant 0 : index
    %185 = vector.load %arg9[%c0_126, %c0_127] : memref<16x1xf32, #tpu.memory_space<vmem>>, vector<16x1xf32>
    %186 = arith.addf %184, %185 : vector<16x1xf32>
    %cst_128 = arith.constant 0.000000e+00 : f32
    %187 = vector.broadcast %cst_128 : f32 to vector<16x1xf32>
    %188 = arith.maximumf %186, %187 : vector<16x1xf32>
    %c0_129 = arith.constant 0 : index
    %c0_130 = arith.constant 0 : index
    %189 = vector.load %arg10[%c0_129, %c0_130] : memref<16x64xf32, #tpu.memory_space<vmem>>, vector<16x64xf32>
    %190 = vector.broadcast %188 : vector<16x1xf32> to vector<16x64xf32>
    %191 = arith.mulf %189, %190 : vector<16x64xf32>
    %cst_131 = arith.constant dense<0.000000e+00> : vector<64xf32>
    %192 = vector.multi_reduction <add>, %191, %cst_131 [0] : vector<16x64xf32> to vector<64xf32>
    %193 = vector.shape_cast %192 : vector<64xf32> to vector<1x64xf32>
    %c0_132 = arith.constant 0 : index
    %c0_133 = arith.constant 0 : index
    %194 = vector.load %arg11[%c0_132, %c0_133] : memref<1x64xf32, #tpu.memory_space<vmem>>, vector<1x64xf32>
    %195 = arith.addf %193, %194 : vector<1x64xf32>
    %cst_134 = arith.constant 0.000000e+00 : f32
    %196 = vector.broadcast %cst_134 : f32 to vector<1x64xf32>
    %197 = arith.subf %196, %195 : vector<1x64xf32>
    %198 = math.exp %197 : vector<1x64xf32>
    %cst_135 = arith.constant 1.000000e+00 : f32
    %199 = vector.broadcast %cst_135 : f32 to vector<1x64xf32>
    %200 = arith.addf %199, %198 : vector<1x64xf32>
    %cst_136 = arith.constant 1.000000e+00 : f32
    %201 = vector.broadcast %cst_136 : f32 to vector<1x64xf32>
    %202 = arith.divf %201, %200 : vector<1x64xf32>
    %203 = vector.broadcast %202 : vector<1x64xf32> to vector<64x64xf32>
    %204 = arith.mulf %175, %203 : vector<64x64xf32>
    %205 = arith.truncf %204 : vector<64x64xf32> to vector<64x64xbf16>
    %c0_137 = arith.constant 0 : index
    %c0_138 = arith.constant 0 : index
    %206 = vector.load %arg12[%c0_137, %c0_138] : memref<64x32xbf16, #tpu.memory_space<vmem>>, vector<64x32xbf16>
    %cst_139 = arith.constant dense<0.000000e+00> : vector<64x32xf32>
    %207 = tpu.matmul %205, %206, %cst_139 {dimension_numbers = #tpu.dot_dimension_numbers<[1], [0], [0], [1], [0, 0, 1, 1], [], []>} : vector<64x64xbf16>, vector<64x32xbf16>, vector<64x32xf32> -> vector<64x32xf32>
    %c0_140 = arith.constant 0 : index
    %c0_141 = arith.constant 0 : index
    %208 = vector.load %arg13[%c0_140, %c0_141] : memref<1x32xf32, #tpu.memory_space<vmem>>, vector<1x32xf32>
    %209 = vector.broadcast %208 : vector<1x32xf32> to vector<64x32xf32>
    %210 = arith.addf %207, %209 : vector<64x32xf32>
    %211 = vector.shape_cast %210 : vector<64x32xf32> to vector<8x8x32xf32>
    %c1_142 = arith.constant 1 : index
    %c1_143 = arith.constant 1 : index
    %c0_144 = arith.constant 0 : index
    %212 = vector.load %arg19[%c1_142, %c1_143, %c0_144] : memref<10x10x32xf32, #tpu.memory_space<vmem>>, vector<8x8x32xf32>
    tpu.vector_store %arg19[%c1_142, %c1_143, %c0_144], %211 {strides = array<i32>} : memref<10x10x32xf32, #tpu.memory_space<vmem>>, vector<8x8x32xf32>,
    %c0_145 = arith.constant 0 : index
    %c0_146 = arith.constant 0 : index
    %213 = vector.load %arg14[%c0_145, %c0_146] : memref<9x32xf32, #tpu.memory_space<vmem>>, vector<9x32xf32>
    %c0_147 = arith.constant 0 : index
    %c0_148 = arith.constant 0 : index
    %214 = vector.load %arg15[%c0_147, %c0_148] : memref<1x32xf32, #tpu.memory_space<vmem>>, vector<1x32xf32>
    %c0_149 = arith.constant 0 : index
    %c0_150 = arith.constant 0 : index
    %c0_151 = arith.constant 0 : index
    %215 = vector.load %arg19[%c0_149, %c0_150, %c0_151] : memref<10x10x32xf32, #tpu.memory_space<vmem>>, vector<8x8x32xf32>
    %216 = vector.extract_strided_slice %213 {offsets = [0, 0], sizes = [1, 32], strides = [1, 1]} : vector<9x32xf32> to vector<1x32xf32>
    %217 = vector.shape_cast %216 : vector<1x32xf32> to vector<32xf32>
    %218 = vector.shape_cast %217 : vector<32xf32> to vector<1x1x32xf32>
    %219 = vector.broadcast %218 : vector<1x1x32xf32> to vector<8x8x32xf32>
    %220 = arith.mulf %215, %219 : vector<8x8x32xf32>
    %221 = vector.shape_cast %214 : vector<1x32xf32> to vector<1x1x32xf32>
    %222 = vector.broadcast %221 : vector<1x1x32xf32> to vector<8x8x32xf32>
    %223 = arith.addf %220, %222 : vector<8x8x32xf32>
    %c0_152 = arith.constant 0 : index
    %c1_153 = arith.constant 1 : index
    %c0_154 = arith.constant 0 : index
    %224 = vector.load %arg19[%c0_152, %c1_153, %c0_154] : memref<10x10x32xf32, #tpu.memory_space<vmem>>, vector<8x8x32xf32>
    %225 = vector.extract_strided_slice %213 {offsets = [1, 0], sizes = [1, 32], strides = [1, 1]} : vector<9x32xf32> to vector<1x32xf32>
    %226 = vector.shape_cast %225 : vector<1x32xf32> to vector<32xf32>
    %227 = vector.shape_cast %226 : vector<32xf32> to vector<1x1x32xf32>
    %228 = vector.broadcast %227 : vector<1x1x32xf32> to vector<8x8x32xf32>
    %229 = arith.mulf %224, %228 : vector<8x8x32xf32>
    %230 = arith.addf %229, %211 : vector<8x8x32xf32>
    %c0_155 = arith.constant 0 : index
    %c2_156 = arith.constant 2 : index
    %c0_157 = arith.constant 0 : index
    %231 = vector.load %arg19[%c0_155, %c2_156, %c0_157] : memref<10x10x32xf32, #tpu.memory_space<vmem>>, vector<8x8x32xf32>
    %232 = vector.extract_strided_slice %213 {offsets = [2, 0], sizes = [1, 32], strides = [1, 1]} : vector<9x32xf32> to vector<1x32xf32>
    %233 = vector.shape_cast %232 : vector<1x32xf32> to vector<32xf32>
    %234 = vector.shape_cast %233 : vector<32xf32> to vector<1x1x32xf32>
    %235 = vector.broadcast %234 : vector<1x1x32xf32> to vector<8x8x32xf32>
    %236 = arith.mulf %231, %235 : vector<8x8x32xf32>
    %c1_158 = arith.constant 1 : index
    %c0_159 = arith.constant 0 : index
    %c0_160 = arith.constant 0 : index
    %237 = vector.load %arg19[%c1_158, %c0_159, %c0_160] : memref<10x10x32xf32, #tpu.memory_space<vmem>>, vector<8x8x32xf32>
    %238 = vector.extract_strided_slice %213 {offsets = [3, 0], sizes = [1, 32], strides = [1, 1]} : vector<9x32xf32> to vector<1x32xf32>
    %239 = vector.shape_cast %238 : vector<1x32xf32> to vector<32xf32>
    %240 = vector.shape_cast %239 : vector<32xf32> to vector<1x1x32xf32>
    %241 = vector.broadcast %240 : vector<1x1x32xf32> to vector<8x8x32xf32>
    %242 = arith.mulf %237, %241 : vector<8x8x32xf32>
    %243 = arith.addf %223, %242 : vector<8x8x32xf32>
    %c1_161 = arith.constant 1 : index
    %c1_162 = arith.constant 1 : index
    %c0_163 = arith.constant 0 : index
    %244 = vector.load %arg19[%c1_161, %c1_162, %c0_163] : memref<10x10x32xf32, #tpu.memory_space<vmem>>, vector<8x8x32xf32>
    %245 = vector.extract_strided_slice %213 {offsets = [4, 0], sizes = [1, 32], strides = [1, 1]} : vector<9x32xf32> to vector<1x32xf32>
    %246 = vector.shape_cast %245 : vector<1x32xf32> to vector<32xf32>
    %247 = vector.shape_cast %246 : vector<32xf32> to vector<1x1x32xf32>
    %248 = vector.broadcast %247 : vector<1x1x32xf32> to vector<8x8x32xf32>
    %249 = arith.mulf %244, %248 : vector<8x8x32xf32>
    %250 = arith.addf %230, %249 : vector<8x8x32xf32>
    %c1_164 = arith.constant 1 : index
    %c2_165 = arith.constant 2 : index
    %c0_166 = arith.constant 0 : index
    %251 = vector.load %arg19[%c1_164, %c2_165, %c0_166] : memref<10x10x32xf32, #tpu.memory_space<vmem>>, vector<8x8x32xf32>
    %252 = vector.extract_strided_slice %213 {offsets = [5, 0], sizes = [1, 32], strides = [1, 1]} : vector<9x32xf32> to vector<1x32xf32>
    %253 = vector.shape_cast %252 : vector<1x32xf32> to vector<32xf32>
    %254 = vector.shape_cast %253 : vector<32xf32> to vector<1x1x32xf32>
    %255 = vector.broadcast %254 : vector<1x1x32xf32> to vector<8x8x32xf32>
    %256 = arith.mulf %251, %255 : vector<8x8x32xf32>
    %257 = arith.addf %236, %256 : vector<8x8x32xf32>
    %c2_167 = arith.constant 2 : index
    %c0_168 = arith.constant 0 : index
    %c0_169 = arith.constant 0 : index
    %258 = vector.load %arg19[%c2_167, %c0_168, %c0_169] : memref<10x10x32xf32, #tpu.memory_space<vmem>>, vector<8x8x32xf32>
    %259 = vector.extract_strided_slice %213 {offsets = [6, 0], sizes = [1, 32], strides = [1, 1]} : vector<9x32xf32> to vector<1x32xf32>
    %260 = vector.shape_cast %259 : vector<1x32xf32> to vector<32xf32>
    %261 = vector.shape_cast %260 : vector<32xf32> to vector<1x1x32xf32>
    %262 = vector.broadcast %261 : vector<1x1x32xf32> to vector<8x8x32xf32>
    %263 = arith.mulf %258, %262 : vector<8x8x32xf32>
    %264 = arith.addf %243, %263 : vector<8x8x32xf32>
    %c2_170 = arith.constant 2 : index
    %c1_171 = arith.constant 1 : index
    %c0_172 = arith.constant 0 : index
    %265 = vector.load %arg19[%c2_170, %c1_171, %c0_172] : memref<10x10x32xf32, #tpu.memory_space<vmem>>, vector<8x8x32xf32>
    %266 = vector.extract_strided_slice %213 {offsets = [7, 0], sizes = [1, 32], strides = [1, 1]} : vector<9x32xf32> to vector<1x32xf32>
    %267 = vector.shape_cast %266 : vector<1x32xf32> to vector<32xf32>
    %268 = vector.shape_cast %267 : vector<32xf32> to vector<1x1x32xf32>
    %269 = vector.broadcast %268 : vector<1x1x32xf32> to vector<8x8x32xf32>
    %270 = arith.mulf %265, %269 : vector<8x8x32xf32>
    %271 = arith.addf %250, %270 : vector<8x8x32xf32>
    %c2_173 = arith.constant 2 : index
    %c2_174 = arith.constant 2 : index
    %c0_175 = arith.constant 0 : index
    %272 = vector.load %arg19[%c2_173, %c2_174, %c0_175] : memref<10x10x32xf32, #tpu.memory_space<vmem>>, vector<8x8x32xf32>
    %273 = vector.extract_strided_slice %213 {offsets = [8, 0], sizes = [1, 32], strides = [1, 1]} : vector<9x32xf32> to vector<1x32xf32>
    %274 = vector.shape_cast %273 : vector<1x32xf32> to vector<32xf32>
    %275 = vector.shape_cast %274 : vector<32xf32> to vector<1x1x32xf32>
    %276 = vector.broadcast %275 : vector<1x1x32xf32> to vector<8x8x32xf32>
    %277 = arith.mulf %272, %276 : vector<8x8x32xf32>
    %278 = arith.addf %257, %277 : vector<8x8x32xf32>
    %279 = arith.addf %264, %271 : vector<8x8x32xf32>
    %280 = arith.addf %279, %278 : vector<8x8x32xf32>
    %c0_176 = arith.constant 0 : index
    %c0_177 = arith.constant 0 : index
    %c0_178 = arith.constant 0 : index
    %c0_179 = arith.constant 0 : index
    %281 = vector.load %arg16[%c0_176, %c0_177, %c0_178, %c0_179] : memref<1x8x8x32xf32, #tpu.memory_space<vmem>>, vector<1x8x8x32xf32>
    %282 = vector.shape_cast %281 : vector<1x8x8x32xf32> to vector<8x8x32xf32>
    %283 = vector.shape_cast %280 : vector<8x8x32xf32> to vector<1x8x8x32xf32>
    tpu.vector_store %arg16[%c0_176, %c0_177, %c0_178, %c0_179], %283 {strides = array<i32>} : memref<1x8x8x32xf32, #tpu.memory_space<vmem>>, vector<1x8x8x32xf32>,
    return
  }
  func.func @transform_0(%arg0: i32) -> (i32, i32, i32, i32) {
    %c0_i32 = arith.constant 0 : i32
    %c0_i32_0 = arith.constant 0 : i32
    %c0_i32_1 = arith.constant 0 : i32
    %c0_i32_2 = arith.constant 0 : i32
    return %arg0, %c0_i32, %c0_i32_0, %c0_i32_1 : i32, i32, i32, i32
  }
  func.func @transform_1(%arg0: i32) -> (i32, i32) {
    %c0_i32 = arith.constant 0 : i32
    %c0_i32_0 = arith.constant 0 : i32
    %c0_i32_1 = arith.constant 0 : i32
    return %c0_i32, %c0_i32_0 : i32, i32
  }
  func.func @transform_2(%arg0: i32) -> (i32, i32) {
    %c0_i32 = arith.constant 0 : i32
    %c0_i32_0 = arith.constant 0 : i32
    %c0_i32_1 = arith.constant 0 : i32
    return %c0_i32, %c0_i32_0 : i32, i32
  }
  func.func @transform_3(%arg0: i32) -> (i32, i32) {
    %c0_i32 = arith.constant 0 : i32
    %c0_i32_0 = arith.constant 0 : i32
    %c0_i32_1 = arith.constant 0 : i32
    return %c0_i32, %c0_i32_0 : i32, i32
  }
  func.func @transform_4(%arg0: i32) -> (i32, i32) {
    %c0_i32 = arith.constant 0 : i32
    %c0_i32_0 = arith.constant 0 : i32
    %c0_i32_1 = arith.constant 0 : i32
    return %c0_i32, %c0_i32_0 : i32, i32
  }
  func.func @transform_5(%arg0: i32) -> (i32, i32) {
    %c0_i32 = arith.constant 0 : i32
    %c0_i32_0 = arith.constant 0 : i32
    %c0_i32_1 = arith.constant 0 : i32
    return %c0_i32, %c0_i32_0 : i32, i32
  }
  func.func @transform_6(%arg0: i32) -> (i32, i32) {
    %c0_i32 = arith.constant 0 : i32
    %c0_i32_0 = arith.constant 0 : i32
    %c0_i32_1 = arith.constant 0 : i32
    return %c0_i32, %c0_i32_0 : i32, i32
  }
  func.func @transform_7(%arg0: i32) -> (i32, i32) {
    %c0_i32 = arith.constant 0 : i32
    %c0_i32_0 = arith.constant 0 : i32
    %c0_i32_1 = arith.constant 0 : i32
    return %c0_i32, %c0_i32_0 : i32, i32
  }
  func.func @transform_8(%arg0: i32) -> (i32, i32) {
    %c0_i32 = arith.constant 0 : i32
    %c0_i32_0 = arith.constant 0 : i32
    %c0_i32_1 = arith.constant 0 : i32
    return %c0_i32, %c0_i32_0 : i32, i32
  }
  func.func @transform_9(%arg0: i32) -> (i32, i32) {
    %c0_i32 = arith.constant 0 : i32
    %c0_i32_0 = arith.constant 0 : i32
    %c0_i32_1 = arith.constant 0 : i32
    return %c0_i32, %c0_i32_0 : i32, i32
  }
  func.func @transform_10(%arg0: i32) -> (i32, i32) {
    %c0_i32 = arith.constant 0 : i32
    %c0_i32_0 = arith.constant 0 : i32
    %c0_i32_1 = arith.constant 0 : i32
    return %c0_i32, %c0_i32_0 : i32, i32
  }
  func.func @transform_11(%arg0: i32) -> (i32, i32) {
    %c0_i32 = arith.constant 0 : i32
    %c0_i32_0 = arith.constant 0 : i32
    %c0_i32_1 = arith.constant 0 : i32
    return %c0_i32, %c0_i32_0 : i32, i32
  }
  func.func @transform_12(%arg0: i32) -> (i32, i32) {
    %c0_i32 = arith.constant 0 : i32
    %c0_i32_0 = arith.constant 0 : i32
    %c0_i32_1 = arith.constant 0 : i32
    return %c0_i32, %c0_i32_0 : i32, i32
  }
  func.func @transform_13(%arg0: i32) -> (i32, i32) {
    %c0_i32 = arith.constant 0 : i32
    %c0_i32_0 = arith.constant 0 : i32
    %c0_i32_1 = arith.constant 0 : i32
    return %c0_i32, %c0_i32_0 : i32, i32
  }
  func.func @transform_14(%arg0: i32) -> (i32, i32) {
    %c0_i32 = arith.constant 0 : i32
    %c0_i32_0 = arith.constant 0 : i32
    %c0_i32_1 = arith.constant 0 : i32
    return %c0_i32, %c0_i32_0 : i32, i32
  }
  func.func @transform_15(%arg0: i32) -> (i32, i32, i32, i32) {
    %c0_i32 = arith.constant 0 : i32
    %c0_i32_0 = arith.constant 0 : i32
    %c0_i32_1 = arith.constant 0 : i32
    %c0_i32_2 = arith.constant 0 : i32
    return %arg0, %c0_i32, %c0_i32_0, %c0_i32_1 : i32, i32, i32, i32
  }
}

</mosaic_0001>

<llo_original>
// kernel: patch_merging_forward.1
$region0: #{patch_merging_forward.1}
  #allocation0 [shape = 'u32[]', space=smem, size = 0x4, offset = 0x4, fixed_abs, tag = 'smem constant byte address 0x4 - core index']
  #allocation1 [shape = 'u32[144,128]{1,0:T(1,128)}', space=vmem, size = 0x12000, scoped, tag = 'internal scratch']
  #allocation2 [shape = 'f32[18,18,16]{2,1,0:T(8,128)}', space=vmem, size = 0x36000, scoped, tag = 'scratch operand']
  #allocation3 [shape = 'f32[18,18,64]{2,1,0:T(8,128)}', space=vmem, size = 0x36000, scoped, tag = 'scratch operand']
  #allocation4 [shape = 'f32[10,10,32]{2,1,0:T(8,128)}', space=vmem, size = 0x14000, scoped, tag = 'scratch operand']
  %s0 = inlined_call_operand.vmem [shape: f32[2,16,16,16], index: 0, kind: input, shape index: {}]
  %s1 = inlined_call_operand.vmem [shape: f32[9,16], index: 1, kind: input, shape index: {}]
  %s2 = inlined_call_operand.vmem [shape: f32[1,16], index: 2, kind: input, shape index: {}]
  %s3 = inlined_call_operand.vmem [shape: bf16[16,64], index: 3, kind: input, shape index: {}]
  %s4 = inlined_call_operand.vmem [shape: f32[1,64], index: 4, kind: input, shape index: {}]
  %s5 = inlined_call_operand.vmem [shape: f32[9,64], index: 5, kind: input, shape index: {}]
  %s6 = inlined_call_operand.vmem [shape: f32[1,64], index: 6, kind: input, shape index: {}]
  %s7 = inlined_call_operand.vmem [shape: f32[16,64], index: 7, kind: input, shape index: {}]
  %s8 = inlined_call_operand.vmem [shape: f32[16,1], index: 8, kind: input, shape index: {}]
  %s9 = inlined_call_operand.vmem [shape: f32[16,64], index: 9, kind: input, shape index: {}]
  %s10 = inlined_call_operand.vmem [shape: f32[1,64], index: 10, kind: input, shape index: {}]
  %s11 = inlined_call_operand.vmem [shape: bf16[64,32], index: 11, kind: input, shape index: {}]
  %s12 = inlined_call_operand.vmem [shape: f32[1,32], index: 12, kind: input, shape index: {}]
  %s13 = inlined_call_operand.vmem [shape: f32[9,32], index: 13, kind: input, shape index: {}]
  %s14 = inlined_call_operand.vmem [shape: f32[1,32], index: 14, kind: input, shape index: {}]
  %s15 = inlined_call_operand.hbm [shape: f32[2,8,8,32], index: 15, kind: output, shape index: {}]
  %s16 = sld [smem:[#allocation0]]
  $region93: #{patch_merging_forward.1} parent=0
    _
  %s18 = ssub.s32 1, %s16
  %s19 = scalar_select 0, %s18, %s16
  $region1: #{patch_merging_forward.1} parent=0
    #allocation5 [shape = 'u8[65536]{0}', space=vmem, size = 0x10000, scoped, tag = 'output window, operand 0']
    #allocation6 [shape = 's32[2]{0}', space=sflag, size = 0x8, scoped, tag = 'scoped memory for patch_merging_forward.1']
    %20 = vsyncpa [#allocation6], 0
    %s21 = scalar_lea.sflag [#allocation6], 1
    %22 = vsyncpa %s21, 0
    loop: start=0, step=1, limit=4
    $region2: #{patch_merging_forward.1} parent=1 // loop_pre_header
      _
    $region3: #{patch_merging_forward.1} parent=1 // loop_header
      %s24 = sphi 0, %s28
      %p25 = scmp.ge.s32.totalorder %s24, 4
      %s34 = sphi 0, %s36
      %s37 = sphi 0, %s34
      %s38 = sphi 0, %s37
      %s54 = sphi 0, %s38
      %s58 = sphi 0, %s58
      %s60 = sphi 0, %s58
      %s61 = sphi 0, %s60
      %s75 = sphi 0, %s61
      %s79 = sphi 0, %s79
      %s81 = sphi 0, %s79
      %s82 = sphi 0, %s81
      %s96 = sphi 0, %s82
      %s100 = sphi 0, %s100
      %s102 = sphi 0, %s100
      %s103 = sphi 0, %s102
      %s117 = sphi 0, %s103
      %s121 = sphi 0, %s121
      %s123 = sphi 0, %s121
      %s124 = sphi 0, %s123
      %s138 = sphi 0, %s124
      %s142 = sphi 0, %s142
      %s144 = sphi 0, %s142
      %s145 = sphi 0, %s144
      %s159 = sphi 0, %s145
      %s163 = sphi 0, %s163
      %s165 = sphi 0, %s163
      %s166 = sphi 0, %s165
      %s180 = sphi 0, %s166
      %s184 = sphi 0, %s184
      %s186 = sphi 0, %s184
      %s187 = sphi 0, %s186
      %s201 = sphi 0, %s187
      %s205 = sphi 0, %s205
      %s207 = sphi 0, %s205
      %s208 = sphi 0, %s207
      %s222 = sphi 0, %s208
      %s226 = sphi 0, %s226
      %s228 = sphi 0, %s226
      %s229 = sphi 0, %s228
      %s243 = sphi 0, %s229
      %s247 = sphi 0, %s247
      %s249 = sphi 0, %s247
      %s250 = sphi 0, %s249
      %s264 = sphi 0, %s250
      %s268 = sphi 0, %s268
      %s270 = sphi 0, %s268
      %s271 = sphi 0, %s270
      %s285 = sphi 0, %s271
      %s289 = sphi 0, %s289
      %s291 = sphi 0, %s289
      %s292 = sphi 0, %s291
      %s306 = sphi 0, %s292
      %s310 = sphi 0, %s310
      %s312 = sphi 0, %s310
      %s313 = sphi 0, %s312
      %s327 = sphi 0, %s313
      %s331 = sphi 0, %s331
      %s333 = sphi 0, %s331
      %s334 = sphi 0, %s333
      %s348 = sphi 0, %s334
      %s354 = sphi 0, %s356
      %s357 = sphi 0, %s354
      %s358 = sphi 0, %s357
      %s374 = sphi 0, %s358
    $region4: #{patch_merging_forward.1} parent=1 // loop_header_branch
      %27 = sbr.rel (%p25) target = $region8
    $region5: #{patch_merging_forward.1} parent=1 // loop_body
      %s29 = ssub.s32 %s24, 1
      %s30 = ssub.s32 %s24, 2
      %s31 = sadd.s32 %s24, 1
      %s32 = ssub.s32 %s24, %s31
      %p33 = scmp.eq.s32.totalorder %s32, 0
      %s35 = sadd.s32 %s34, 1
      %s36 = scalar_select %p33, %s34, %s35
      %p39 = pneg %p33
      %p40 = scmp.eq.s32.totalorder %s24, 1
      %p41 = por %p39, %p40
      %p42 = scmp.ne.s32.totalorder %s34, %s37
      %p43 = scmp.eq.s32.totalorder %s24, 0
      %p44 = por %p42, %p43
      %p45 = scmp.ne.s32.totalorder %s34, %s37
      %p46 = scmp.eq.s32.totalorder %s29, 1
      %p47 = por %p45, %p46
      %p48 = scmp.ne.s32.totalorder %s37, %s38
      %p49 = scmp.eq.s32.totalorder %s29, 0
      %p50 = por %p48, %p49
      %p51 = scmp.ne.s32.totalorder %s37, %s38
      %p52 = scmp.eq.s32.totalorder %s30, 1
      %p53 = por %p51, %p52
      %p55 = scmp.ne.s32.totalorder %s38, %s54
      %p56 = scmp.eq.s32.totalorder %s30, 0
      %p57 = por %p55, %p56
      %s59 = sadd.s32 %s58, 1
      %p62 = scmp.eq.s32.totalorder %s24, 1
      %p63 = scmp.ne.s32.totalorder %s58, %s60
      %p64 = scmp.eq.s32.totalorder %s24, 0
      %p65 = por %p63, %p64
      %p66 = scmp.ne.s32.totalorder %s58, %s60
      %p67 = scmp.eq.s32.totalorder %s29, 1
      %p68 = por %p66, %p67
      %p69 = scmp.ne.s32.totalorder %s60, %s61
      %p70 = scmp.eq.s32.totalorder %s29, 0
      %p71 = por %p69, %p70
      %p72 = scmp.ne.s32.totalorder %s60, %s61
      %p73 = scmp.eq.s32.totalorder %s30, 1
      %p74 = por %p72, %p73
      %p76 = scmp.ne.s32.totalorder %s61, %s75
      %p77 = scmp.eq.s32.totalorder %s30, 0
      %p78 = por %p76, %p77
      %s80 = sadd.s32 %s79, 1
      %p83 = scmp.eq.s32.totalorder %s24, 1
      %p84 = scmp.ne.s32.totalorder %s79, %s81
      %p85 = scmp.eq.s32.totalorder %s24, 0
      %p86 = por %p84, %p85
      %p87 = scmp.ne.s32.totalorder %s79, %s81
      %p88 = scmp.eq.s32.totalorder %s29, 1
      %p89 = por %p87, %p88
      %p90 = scmp.ne.s32.totalorder %s81, %s82
      %p91 = scmp.eq.s32.totalorder %s29, 0
      %p92 = por %p90, %p91
      %p93 = scmp.ne.s32.totalorder %s81, %s82
      %p94 = scmp.eq.s32.totalorder %s30, 1
      %p95 = por %p93, %p94
      %p97 = scmp.ne.s32.totalorder %s82, %s96
      %p98 = scmp.eq.s32.totalorder %s30, 0
      %p99 = por %p97, %p98
      %s101 = sadd.s32 %s100, 1
      %p104 = scmp.eq.s32.totalorder %s24, 1
      %p105 = scmp.ne.s32.totalorder %s100, %s102
      %p106 = scmp.eq.s32.totalorder %s24, 0
      %p107 = por %p105, %p106
      %p108 = scmp.ne.s32.totalorder %s100, %s102
      %p109 = scmp.eq.s32.totalorder %s29, 1
      %p110 = por %p108, %p109
      %p111 = scmp.ne.s32.totalorder %s102, %s103
      %p112 = scmp.eq.s32.totalorder %s29, 0
      %p113 = por %p111, %p112
      %p114 = scmp.ne.s32.totalorder %s102, %s103
      %p115 = scmp.eq.s32.totalorder %s30, 1
      %p116 = por %p114, %p115
      %p118 = scmp.ne.s32.totalorder %s103, %s117
      %p119 = scmp.eq.s32.totalorder %s30, 0
      %p120 = por %p118, %p119
      %s122 = sadd.s32 %s121, 1
      %p125 = scmp.eq.s32.totalorder %s24, 1
      %p126 = scmp.ne.s32.totalorder %s121, %s123
      %p127 = scmp.eq.s32.totalorder %s24, 0
      %p128 = por %p126, %p127
      %p129 = scmp.ne.s32.totalorder %s121, %s123
      %p130 = scmp.eq.s32.totalorder %s29, 1
      %p131 = por %p129, %p130
      %p132 = scmp.ne.s32.totalorder %s123, %s124
      %p133 = scmp.eq.s32.totalorder %s29, 0
      %p134 = por %p132, %p133
      %p135 = scmp.ne.s32.totalorder %s123, %s124
      %p136 = scmp.eq.s32.totalorder %s30, 1
      %p137 = por %p135, %p136
      %p139 = scmp.ne.s32.totalorder %s124, %s138
      %p140 = scmp.eq.s32.totalorder %s30, 0
      %p141 = por %p139, %p140
      %s143 = sadd.s32 %s142, 1
      %p146 = scmp.eq.s32.totalorder %s24, 1
      %p147 = scmp.ne.s32.totalorder %s142, %s144
      %p148 = scmp.eq.s32.totalorder %s24, 0
      %p149 = por %p147, %p148
      %p150 = scmp.ne.s32.totalorder %s142, %s144
      %p151 = scmp.eq.s32.totalorder %s29, 1
      %p152 = por %p150, %p151
      %p153 = scmp.ne.s32.totalorder %s144, %s145
      %p154 = scmp.eq.s32.totalorder %s29, 0
      %p155 = por %p153, %p154
      %p156 = scmp.ne.s32.totalorder %s144, %s145
      %p157 = scmp.eq.s32.totalorder %s30, 1
      %p158 = por %p156, %p157
      %p160 = scmp.ne.s32.totalorder %s145, %s159
      %p161 = scmp.eq.s32.totalorder %s30, 0
      %p162 = por %p160, %p161
      %s164 = sadd.s32 %s163, 1
      %p167 = scmp.eq.s32.totalorder %s24, 1
      %p168 = scmp.ne.s32.totalorder %s163, %s165
      %p169 = scmp.eq.s32.totalorder %s24, 0
      %p170 = por %p168, %p169
      %p171 = scmp.ne.s32.totalorder %s163, %s165
      %p172 = scmp.eq.s32.totalorder %s29, 1
      %p173 = por %p171, %p172
      %p174 = scmp.ne.s32.totalorder %s165, %s166
      %p175 = scmp.eq.s32.totalorder %s29, 0
      %p176 = por %p174, %p175
      %p177 = scmp.ne.s32.totalorder %s165, %s166
      %p178 = scmp.eq.s32.totalorder %s30, 1
      %p179 = por %p177, %p178
      %p181 = scmp.ne.s32.totalorder %s166, %s180
      %p182 = scmp.eq.s32.totalorder %s30, 0
      %p183 = por %p181, %p182
      %s185 = sadd.s32 %s184, 1
      %p188 = scmp.eq.s32.totalorder %s24, 1
      %p189 = scmp.ne.s32.totalorder %s184, %s186
      %p190 = scmp.eq.s32.totalorder %s24, 0
      %p191 = por %p189, %p190
      %p192 = scmp.ne.s32.totalorder %s184, %s186
      %p193 = scmp.eq.s32.totalorder %s29, 1
      %p194 = por %p192, %p193
      %p195 = scmp.ne.s32.totalorder %s186, %s187
      %p196 = scmp.eq.s32.totalorder %s29, 0
      %p197 = por %p195, %p196
      %p198 = scmp.ne.s32.totalorder %s186, %s187
      %p199 = scmp.eq.s32.totalorder %s30, 1
      %p200 = por %p198, %p199
      %p202 = scmp.ne.s32.totalorder %s187, %s201
      %p203 = scmp.eq.s32.totalorder %s30, 0
      %p204 = por %p202, %p203
      %s206 = sadd.s32 %s205, 1
      %p209 = scmp.eq.s32.totalorder %s24, 1
      %p210 = scmp.ne.s32.totalorder %s205, %s207
      %p211 = scmp.eq.s32.totalorder %s24, 0
      %p212 = por %p210, %p211
      %p213 = scmp.ne.s32.totalorder %s205, %s207
      %p214 = scmp.eq.s32.totalorder %s29, 1
      %p215 = por %p213, %p214
      %p216 = scmp.ne.s32.totalorder %s207, %s208
      %p217 = scmp.eq.s32.totalorder %s29, 0
      %p218 = por %p216, %p217
      %p219 = scmp.ne.s32.totalorder %s207, %s208
      %p220 = scmp.eq.s32.totalorder %s30, 1
      %p221 = por %p219, %p220
      %p223 = scmp.ne.s32.totalorder %s208, %s222
      %p224 = scmp.eq.s32.totalorder %s30, 0
      %p225 = por %p223, %p224
      %s227 = sadd.s32 %s226, 1
      %p230 = scmp.eq.s32.totalorder %s24, 1
      %p231 = scmp.ne.s32.totalorder %s226, %s228
      %p232 = scmp.eq.s32.totalorder %s24, 0
      %p233 = por %p231, %p232
      %p234 = scmp.ne.s32.totalorder %s226, %s228
      %p235 = scmp.eq.s32.totalorder %s29, 1
      %p236 = por %p234, %p235
      %p237 = scmp.ne.s32.totalorder %s228, %s229
      %p238 = scmp.eq.s32.totalorder %s29, 0
      %p239 = por %p237, %p238
      %p240 = scmp.ne.s32.totalorder %s228, %s229
      %p241 = scmp.eq.s32.totalorder %s30, 1
      %p242 = por %p240, %p241
      %p244 = scmp.ne.s32.totalorder %s229, %s243
      %p245 = scmp.eq.s32.totalorder %s30, 0
      %p246 = por %p244, %p245
      %s248 = sadd.s32 %s247, 1
      %p251 = scmp.eq.s32.totalorder %s24, 1
      %p252 = scmp.ne.s32.totalorder %s247, %s249
      %p253 = scmp.eq.s32.totalorder %s24, 0
      %p254 = por %p252, %p253
      %p255 = scmp.ne.s32.totalorder %s247, %s249
      %p256 = scmp.eq.s32.totalorder %s29, 1
      %p257 = por %p255, %p256
      %p258 = scmp.ne.s32.totalorder %s249, %s250
      %p259 = scmp.eq.s32.totalorder %s29, 0
      %p260 = por %p258, %p259
      %p261 = scmp.ne.s32.totalorder %s249, %s250
      %p262 = scmp.eq.s32.totalorder %s30, 1
      %p263 = por %p261, %p262
      %p265 = scmp.ne.s32.totalorder %s250, %s264
      %p266 = scmp.eq.s32.totalorder %s30, 0
      %p267 = por %p265, %p266
      %s269 = sadd.s32 %s268, 1
      %p272 = scmp.eq.s32.totalorder %s24, 1
      %p273 = scmp.ne.s32.totalorder %s268, %s270
      %p274 = scmp.eq.s32.totalorder %s24, 0
      %p275 = por %p273, %p274
      %p276 = scmp.ne.s32.totalorder %s268, %s270
      %p277 = scmp.eq.s32.totalorder %s29, 1
      %p278 = por %p276, %p277
      %p279 = scmp.ne.s32.totalorder %s270, %s271
      %p280 = scmp.eq.s32.totalorder %s29, 0
      %p281 = por %p279, %p280
      %p282 = scmp.ne.s32.totalorder %s270, %s271
      %p283 = scmp.eq.s32.totalorder %s30, 1
      %p284 = por %p282, %p283
      %p286 = scmp.ne.s32.totalorder %s271, %s285
      %p287 = scmp.eq.s32.totalorder %s30, 0
      %p288 = por %p286, %p287
      %s290 = sadd.s32 %s289, 1
      %p293 = scmp.eq.s32.totalorder %s24, 1
      %p294 = scmp.ne.s32.totalorder %s289, %s291
      %p295 = scmp.eq.s32.totalorder %s24, 0
      %p296 = por %p294, %p295
      %p297 = scmp.ne.s32.totalorder %s289, %s291
      %p298 = scmp.eq.s32.totalorder %s29, 1
      %p299 = por %p297, %p298
      %p300 = scmp.ne.s32.totalorder %s291, %s292
      %p301 = scmp.eq.s32.totalorder %s29, 0
      %p302 = por %p300, %p301
      %p303 = scmp.ne.s32.totalorder %s291, %s292
      %p304 = scmp.eq.s32.totalorder %s30, 1
      %p305 = por %p303, %p304
      %p307 = scmp.ne.s32.totalorder %s292, %s306
      %p308 = scmp.eq.s32.totalorder %s30, 0
      %p309 = por %p307, %p308
      %s311 = sadd.s32 %s310, 1
      %p314 = scmp.eq.s32.totalorder %s24, 1
      %p315 = scmp.ne.s32.totalorder %s310, %s312
      %p316 = scmp.eq.s32.totalorder %s24, 0
      %p317 = por %p315, %p316
      %p318 = scmp.ne.s32.totalorder %s310, %s312
      %p319 = scmp.eq.s32.totalorder %s29, 1
      %p320 = por %p318, %p319
      %p321 = scmp.ne.s32.totalorder %s312, %s313
      %p322 = scmp.eq.s32.totalorder %s29, 0
      %p323 = por %p321, %p322
      %p324 = scmp.ne.s32.totalorder %s312, %s313
      %p325 = scmp.eq.s32.totalorder %s30, 1
      %p326 = por %p324, %p325
      %p328 = scmp.ne.s32.totalorder %s313, %s327
      %p329 = scmp.eq.s32.totalorder %s30, 0
      %p330 = por %p328, %p329
      %s332 = sadd.s32 %s331, 1
      %p335 = scmp.eq.s32.totalorder %s24, 1
      %p336 = scmp.ne.s32.totalorder %s331, %s333
      %p337 = scmp.eq.s32.totalorder %s24, 0
      %p338 = por %p336, %p337
      %p339 = scmp.ne.s32.totalorder %s331, %s333
      %p340 = scmp.eq.s32.totalorder %s29, 1
      %p341 = por %p339, %p340
      %p342 = scmp.ne.s32.totalorder %s333, %s334
      %p343 = scmp.eq.s32.totalorder %s29, 0
      %p344 = por %p342, %p343
      %p345 = scmp.ne.s32.totalorder %s333, %s334
      %p346 = scmp.eq.s32.totalorder %s30, 1
      %p347 = por %p345, %p346
      %p349 = scmp.ne.s32.totalorder %s334, %s348
      %p350 = scmp.eq.s32.totalorder %s30, 0
      %p351 = por %p349, %p350
      %s352 = ssub.s32 %s24, %s31
      %p353 = scmp.eq.s32.totalorder %s352, 0
      %s355 = sadd.s32 %s354, 1
      %s356 = scalar_select %p353, %s354, %s355
      %p359 = pneg %p353
      %p360 = scmp.eq.s32.totalorder %s24, 1
      %p361 = por %p359, %p360
      %p362 = scmp.ne.s32.totalorder %s354, %s357
      %p363 = scmp.eq.s32.totalorder %s24, 0
      %p364 = por %p362, %p363
      %p365 = scmp.ne.s32.totalorder %s354, %s357
      %p366 = scmp.eq.s32.totalorder %s29, 1
      %p367 = por %p365, %p366
      %p368 = scmp.ne.s32.totalorder %s357, %s358
      %p369 = scmp.eq.s32.totalorder %s29, 0
      %p370 = por %p368, %p369
      %p371 = scmp.ne.s32.totalorder %s357, %s358
      %p372 = scmp.eq.s32.totalorder %s30, 1
      %p373 = por %p371, %p372
      %p375 = scmp.ne.s32.totalorder %s358, %s374
      %p376 = scmp.eq.s32.totalorder %s30, 0
      %p377 = por %p375, %p376
      %p378 = scmp.le.s32.totalorder 1, %s24
      %p379 = scmp.lt.s32.totalorder %s24, 3
      %p380 = pnand %p378, %p379
      %p381 = pneg %p380
      // Predicated region
      $region9: #{patch_merging_forward.1} parent=5 // pred_check
        _
      $region10: #{patch_merging_forward.1} parent=5 // pred_check_branch
        %383 = sbr.rel (%p380) target = $region12
      $region11: #{patch_merging_forward.1} parent=5 // pred_region
        %s384 = ssub.s32 %s24, 1
        // Predicated region
        $region13: #{patch_merging_forward.1} parent=11 // pred_check
          %p385 = pneg %p71
        $region14: #{patch_merging_forward.1} parent=11 // pred_check_branch
          %387 = sbr.rel (%p385) target = $region16
        $region15: #{patch_merging_forward.1} parent=11 // pred_region
          _
        $region16: #{patch_merging_forward.1} parent=11 // pred_fallthru
          _
        // Predicated region
        $region17: #{patch_merging_forward.1} parent=11 // pred_check
          %p388 = pneg %p92
        $region18: #{patch_merging_forward.1} parent=11 // pred_check_branch
          %390 = sbr.rel (%p388) target = $region20
        $region19: #{patch_merging_forward.1} parent=11 // pred_region
          _
        $region20: #{patch_merging_forward.1} parent=11 // pred_fallthru
          _
        // Predicated region
        $region21: #{patch_merging_forward.1} parent=11 // pred_check
          %p391 = pneg %p113
        $region22: #{patch_merging_forward.1} parent=11 // pred_check_branch
          %393 = sbr.rel (%p391) target = $region24
        $region23: #{patch_merging_forward.1} parent=11 // pred_region
          _
        $region24: #{patch_merging_forward.1} parent=11 // pred_fallthru
          _
        // Predicated region
        $region25: #{patch_merging_forward.1} parent=11 // pred_check
          %p394 = pneg %p134
        $region26: #{patch_merging_forward.1} parent=11 // pred_check_branch
          %396 = sbr.rel (%p394) target = $region28
        $region27: #{patch_merging_forward.1} parent=11 // pred_region
          _
        $region28: #{patch_merging_forward.1} parent=11 // pred_fallthru
          _
        // Predicated region
        $region29: #{patch_merging_forward.1} parent=11 // pred_check
          %p397 = pneg %p155
        $region30: #{patch_merging_forward.1} parent=11 // pred_check_branch
          %399 = sbr.rel (%p397) target = $region32
        $region31: #{patch_merging_forward.1} parent=11 // pred_region
          _
        $region32: #{patch_merging_forward.1} parent=11 // pred_fallthru
          _
        // Predicated region
        $region33: #{patch_merging_forward.1} parent=11 // pred_check
          %p400 = pneg %p176
        $region34: #{patch_merging_forward.1} parent=11 // pred_check_branch
          %402 = sbr.rel (%p400) target = $region36
        $region35: #{patch_merging_forward.1} parent=11 // pred_region
          _
        $region36: #{patch_merging_forward.1} parent=11 // pred_fallthru
          _
        // Predicated region
        $region37: #{patch_merging_forward.1} parent=11 // pred_check
          %p403 = pneg %p197
        $region38: #{patch_merging_forward.1} parent=11 // pred_check_branch
          %405 = sbr.rel (%p403) target = $region40
        $region39: #{patch_merging_forward.1} parent=11 // pred_region
          _
        $region40: #{patch_merging_forward.1} parent=11 // pred_fallthru
          _
        // Predicated region
        $region41: #{patch_merging_forward.1} parent=11 // pred_check
          %p406 = pneg %p218
        $region42: #{patch_merging_forward.1} parent=11 // pred_check_branch
          %408 = sbr.rel (%p406) target = $region44
        $region43: #{patch_merging_forward.1} parent=11 // pred_region
          _
        $region44: #{patch_merging_forward.1} parent=11 // pred_fallthru
          _
        // Predicated region
        $region45: #{patch_merging_forward.1} parent=11 // pred_check
          %p409 = pneg %p239
        $region46: #{patch_merging_forward.1} parent=11 // pred_check_branch
          %411 = sbr.rel (%p409) target = $region48
        $region47: #{patch_merging_forward.1} parent=11 // pred_region
          _
        $region48: #{patch_merging_forward.1} parent=11 // pred_fallthru
          _
        // Predicated region
        $region49: #{patch_merging_forward.1} parent=11 // pred_check
          %p412 = pneg %p260
        $region50: #{patch_merging_forward.1} parent=11 // pred_check_branch
          %414 = sbr.rel (%p412) target = $region52
        $region51: #{patch_merging_forward.1} parent=11 // pred_region
          _
        $region52: #{patch_merging_forward.1} parent=11 // pred_fallthru
          _
        // Predicated region
        $region53: #{patch_merging_forward.1} parent=11 // pred_check
          %p415 = pneg %p281
        $region54: #{patch_merging_forward.1} parent=11 // pred_check_branch
          %417 = sbr.rel (%p415) target = $region56
        $region55: #{patch_merging_forward.1} parent=11 // pred_region
          _
        $region56: #{patch_merging_forward.1} parent=11 // pred_fallthru
          _
        // Predicated region
        $region57: #{patch_merging_forward.1} parent=11 // pred_check
          %p418 = pneg %p302
        $region58: #{patch_merging_forward.1} parent=11 // pred_check_branch
          %420 = sbr.rel (%p418) target = $region60
        $region59: #{patch_merging_forward.1} parent=11 // pred_region
          _
        $region60: #{patch_merging_forward.1} parent=11 // pred_fallthru
          _
        // Predicated region
        $region61: #{patch_merging_forward.1} parent=11 // pred_check
          %p421 = pneg %p323
        $region62: #{patch_merging_forward.1} parent=11 // pred_check_branch
          %423 = sbr.rel (%p421) target = $region64
        $region63: #{patch_merging_forward.1} parent=11 // pred_region
          _
        $region64: #{patch_merging_forward.1} parent=11 // pred_fallthru
          _
        // Predicated region
        $region65: #{patch_merging_forward.1} parent=11 // pred_check
          %p424 = pneg %p344
        $region66: #{patch_merging_forward.1} parent=11 // pred_check_branch
          %426 = sbr.rel (%p424) target = $region68
        $region67: #{patch_merging_forward.1} parent=11 // pred_region
          _
        $region68: #{patch_merging_forward.1} parent=11 // pred_fallthru
          _
      $region12: #{patch_merging_forward.1} parent=5 // pred_fallthru
        _
      %p427 = scmp.lt.s32.totalorder %s24, 2
      // Predicated region
      $region69: #{patch_merging_forward.1} parent=5 // pred_check
        %p428 = pneg %p427
      $region70: #{patch_merging_forward.1} parent=5 // pred_check_branch
        %430 = sbr.rel (%p428) target = $region72
      $region71: #{patch_merging_forward.1} parent=5 // pred_region
        // Predicated region
        $region73: #{patch_merging_forward.1} parent=71 // pred_check
          %p431 = pneg %p44
        $region74: #{patch_merging_forward.1} parent=71 // pred_check_branch
          %433 = sbr.rel (%p431) target = $region76
        $region75: #{patch_merging_forward.1} parent=71 // pred_region
          %p434 = scmp.lt.s32.totalorder %s24, 1
          %s435 = scalar_select %p434, %s24, 1
          %s436 = smul.addr %s435, 32
          %s437 = smul.addr %s436, 8
          %s438 = scalar_lea.vmem %s0, %s437
        $region76: #{patch_merging_forward.1} parent=71 // pred_fallthru
          _
      $region72: #{patch_merging_forward.1} parent=5 // pred_fallthru
        _
      %p439 = scmp.le.s32.totalorder 1, %s24
      %p440 = scmp.lt.s32.totalorder %s24, 3
      %p441 = pnand %p439, %p440
      %p442 = pneg %p441
      // Predicated region
      $region77: #{patch_merging_forward.1} parent=5 // pred_check
        _
      $region78: #{patch_merging_forward.1} parent=5 // pred_check_branch
        %444 = sbr.rel (%p441) target = $region80
      $region79: #{patch_merging_forward.1} parent=5 // pred_region
        %s445 = ssub.s32 %s24, 1
        %p446 = scmp.lt.s32.totalorder %s29, 1
        %s447 = scalar_select %p446, %s29, 1
        %s448 = smul.addr %s447, 32
        %s449 = smul.addr %s448, 8
        %s450 = scalar_lea.vmem %s0, %s449
        %p451 = pneg %p50
        %p452 = pneg %p47
        %p453 = pneg %p71
        %p454 = pneg %p68
        %p455 = pneg %p92
        %p456 = pneg %p89
        %p457 = pneg %p113
        %p458 = pneg %p110
        %p459 = pneg %p134
        %p460 = pneg %p131
        %p461 = pneg %p155
        %p462 = pneg %p152
        %p463 = pneg %p176
        %p464 = pneg %p173
        %p465 = pneg %p197
        %p466 = pneg %p194
        %p467 = pneg %p218
        %p468 = pneg %p215
        %p469 = pneg %p239
        %p470 = pneg %p236
        %p471 = pneg %p260
        %p472 = pneg %p257
        %p473 = pneg %p281
        %p474 = pneg %p278
        %p475 = pneg %p302
        %p476 = pneg %p299
        %p477 = pneg %p323
        %p478 = pneg %p320
        %p479 = pneg %p344
        %p480 = pneg %p341
        %p481 = pneg %p370
        %p482 = pneg %p367
        %s483 = sand.u32 %s357, 1
        %s484 = scalar_lea.sflag [#allocation6], %s483
        %s485 = sand.u32 %s357, 1
        %s486 = smul.addr %s485, 64
        %s487 = scalar_lea.vmem [#allocation5], %s486
        %p488 = scmp.lt.s32.totalorder %s29, 1
        %s489 = scalar_select %p488, %s29, 1
        %s490 = smul.addr %s489, 32
        %s491 = smul.addr %s490, 8
        %s492 = scalar_lea.vmem %s0, %s491
        %vm494 = vcmask 130048
        %495 = vst.msk [vmem:[#allocation2] sm:$0xff] %vm494, 0.0
        %496 = vst.msk [vmem:[#allocation2 + $0x8] sm:$0xff] %vm494, 0.0
        %vm497 = vcmask 123904
        %498 = vst.msk [vmem:[#allocation2 + $0x10] sm:$0x3] %vm497, 0.0
        %s499 = scalar_lea.vmem [#allocation2], 408
        %500 = vst.msk [vmem:[%s499] sm:$0xff] %vm494, 0.0
        %501 = vst.msk [vmem:[%s499 + $0x8] sm:$0xff] %vm494, 0.0
        %502 = vst.msk [vmem:[%s499 + $0x10] sm:$0x3] %vm497, 0.0
        %vm503 = vcmask 122880
        %504 = vst.msk [vmem:[#allocation2] sm:$0x1] %vm503, 0.0
        %505 = vst.msk [vmem:[#allocation2 + $0x18] sm:$0x1] %vm503, 0.0
        %506 = vst.msk [vmem:[#allocation2 + $0x30] sm:$0x1] %vm503, 0.0
        %507 = vst.msk [vmem:[#allocation2 + $0x48] sm:$0x1] %vm503, 0.0
        %508 = vst.msk [vmem:[#allocation2 + $0x60] sm:$0x1] %vm503, 0.0
        %509 = vst.msk [vmem:[#allocation2 + $0x78] sm:$0x1] %vm503, 0.0
        %510 = vst.msk [vmem:[#allocation2 + $0x90] sm:$0x1] %vm503, 0.0
        %511 = vst.msk [vmem:[#allocation2 + $0xa8] sm:$0x1] %vm503, 0.0
        %512 = vst.msk [vmem:[#allocation2 + $0xc0] sm:$0x1] %vm503, 0.0
        %513 = vst.msk [vmem:[#allocation2 + $0xd8] sm:$0x1] %vm503, 0.0
        %514 = vst.msk [vmem:[#allocation2 + $0xf0] sm:$0x1] %vm503, 0.0
        %515 = vst.msk [vmem:[#allocation2 + $0x108] sm:$0x1] %vm503, 0.0
        %516 = vst.msk [vmem:[#allocation2 + $0x120] sm:$0x1] %vm503, 0.0
        %517 = vst.msk [vmem:[#allocation2 + $0x138] sm:$0x1] %vm503, 0.0
        %518 = vst.msk [vmem:[#allocation2 + $0x150] sm:$0x1] %vm503, 0.0
        %519 = vst.msk [vmem:[#allocation2 + $0x168] sm:$0x1] %vm503, 0.0
        %520 = vst.msk [vmem:[#allocation2 + $0x180] sm:$0x1] %vm503, 0.0
        %521 = vst.msk [vmem:[#allocation2 + $0x198] sm:$0x1] %vm503, 0.0
        %522 = vst.msk [vmem:[#allocation2 + $0x11] sm:$0x1] %vm503, 0.0
        %523 = vst.msk [vmem:[#allocation2 + $0x29] sm:$0x1] %vm503, 0.0
        %524 = vst.msk [vmem:[#allocation2 + $0x41] sm:$0x1] %vm503, 0.0
        %525 = vst.msk [vmem:[#allocation2 + $0x59] sm:$0x1] %vm503, 0.0
        %526 = vst.msk [vmem:[#allocation2 + $0x71] sm:$0x1] %vm503, 0.0
        %527 = vst.msk [vmem:[#allocation2 + $0x89] sm:$0x1] %vm503, 0.0
        %528 = vst.msk [vmem:[#allocation2 + $0xa1] sm:$0x1] %vm503, 0.0
        %529 = vst.msk [vmem:[#allocation2 + $0xb9] sm:$0x1] %vm503, 0.0
        %530 = vst.msk [vmem:[#allocation2 + $0xd1] sm:$0x1] %vm503, 0.0
        %531 = vst.msk [vmem:[#allocation2 + $0xe9] sm:$0x1] %vm503, 0.0
        %532 = vst.msk [vmem:[#allocation2 + $0x101] sm:$0x1] %vm503, 0.0
        %533 = vst.msk [vmem:[#allocation2 + $0x119] sm:$0x1] %vm503, 0.0
        %534 = vst.msk [vmem:[#allocation2 + $0x131] sm:$0x1] %vm503, 0.0
        %535 = vst.msk [vmem:[#allocation2 + $0x149] sm:$0x1] %vm503, 0.0
        %536 = vst.msk [vmem:[#allocation2 + $0x161] sm:$0x1] %vm503, 0.0
        %537 = vst.msk [vmem:[#allocation2 + $0x179] sm:$0x1] %vm503, 0.0
        %538 = vst.msk [vmem:[#allocation2 + $0x191] sm:$0x1] %vm503, 0.0
        %539 = vst.msk [vmem:[#allocation2 + $0x1a9] sm:$0x1] %vm503, 0.0
        %vm540 = vcmask 523264
        %541 = vst.msk [vmem:[#allocation3] sm:$0xff] %vm540, 0.0
        %542 = vst.msk [vmem:[#allocation3 + $0x8] sm:$0xff] %vm540, 0.0
        %vm543 = vcmask 517120
        %544 = vst.msk [vmem:[#allocation3 + $0x10] sm:$0x3] %vm543, 0.0
        %s545 = scalar_lea.vmem [#allocation3], 408
        %546 = vst.msk [vmem:[%s545] sm:$0xff] %vm540, 0.0
        %547 = vst.msk [vmem:[%s545 + $0x8] sm:$0xff] %vm540, 0.0
        %548 = vst.msk [vmem:[%s545 + $0x10] sm:$0x3] %vm543, 0.0
        %vm549 = vcmask 516096
        %550 = vst.msk [vmem:[#allocation3] sm:$0x1] %vm549, 0.0
        %551 = vst.msk [vmem:[#allocation3 + $0x18] sm:$0x1] %vm549, 0.0
        %552 = vst.msk [vmem:[#allocation3 + $0x30] sm:$0x1] %vm549, 0.0
        %553 = vst.msk [vmem:[#allocation3 + $0x48] sm:$0x1] %vm549, 0.0
        %554 = vst.msk [vmem:[#allocation3 + $0x60] sm:$0x1] %vm549, 0.0
        %555 = vst.msk [vmem:[#allocation3 + $0x78] sm:$0x1] %vm549, 0.0
        %556 = vst.msk [vmem:[#allocation3 + $0x90] sm:$0x1] %vm549, 0.0
        %557 = vst.msk [vmem:[#allocation3 + $0xa8] sm:$0x1] %vm549, 0.0
        %558 = vst.msk [vmem:[#allocation3 + $0xc0] sm:$0x1] %vm549, 0.0
        %559 = vst.msk [vmem:[#allocation3 + $0xd8] sm:$0x1] %vm549, 0.0
        %560 = vst.msk [vmem:[#allocation3 + $0xf0] sm:$0x1] %vm549, 0.0
        %561 = vst.msk [vmem:[#allocation3 + $0x108] sm:$0x1] %vm549, 0.0
        %562 = vst.msk [vmem:[#allocation3 + $0x120] sm:$0x1] %vm549, 0.0
        %563 = vst.msk [vmem:[#allocation3 + $0x138] sm:$0x1] %vm549, 0.0
        %564 = vst.msk [vmem:[#allocation3 + $0x150] sm:$0x1] %vm549, 0.0
        %565 = vst.msk [vmem:[#allocation3 + $0x168] sm:$0x1] %vm549, 0.0
        %566 = vst.msk [vmem:[#allocation3 + $0x180] sm:$0x1] %vm549, 0.0
        %567 = vst.msk [vmem:[#allocation3 + $0x198] sm:$0x1] %vm549, 0.0
        %568 = vst.msk [vmem:[#allocation3 + $0x11] sm:$0x1] %vm549, 0.0
        %569 = vst.msk [vmem:[#allocation3 + $0x29] sm:$0x1] %vm549, 0.0
        %570 = vst.msk [vmem:[#allocation3 + $0x41] sm:$0x1] %vm549, 0.0
        %571 = vst.msk [vmem:[#allocation3 + $0x59] sm:$0x1] %vm549, 0.0
        %572 = vst.msk [vmem:[#allocation3 + $0x71] sm:$0x1] %vm549, 0.0
        %573 = vst.msk [vmem:[#allocation3 + $0x89] sm:$0x1] %vm549, 0.0
        %574 = vst.msk [vmem:[#allocation3 + $0xa1] sm:$0x1] %vm549, 0.0
        %575 = vst.msk [vmem:[#allocation3 + $0xb9] sm:$0x1] %vm549, 0.0
        %576 = vst.msk [vmem:[#allocation3 + $0xd1] sm:$0x1] %vm549, 0.0
        %577 = vst.msk [vmem:[#allocation3 + $0xe9] sm:$0x1] %vm549, 0.0
        %578 = vst.msk [vmem:[#allocation3 + $0x101] sm:$0x1] %vm549, 0.0
        %579 = vst.msk [vmem:[#allocation3 + $0x119] sm:$0x1] %vm549, 0.0
        %580 = vst.msk [vmem:[#allocation3 + $0x131] sm:$0x1] %vm549, 0.0
        %581 = vst.msk [vmem:[#allocation3 + $0x149] sm:$0x1] %vm549, 0.0
        %582 = vst.msk [vmem:[#allocation3 + $0x161] sm:$0x1] %vm549, 0.0
        %583 = vst.msk [vmem:[#allocation3 + $0x179] sm:$0x1] %vm549, 0.0
        %584 = vst.msk [vmem:[#allocation3 + $0x191] sm:$0x1] %vm549, 0.0
        %585 = vst.msk [vmem:[#allocation3 + $0x1a9] sm:$0x1] %vm549, 0.0
        %vm586 = vcmask 261120
        %587 = vst.msk [vmem:[#allocation4] sm:$0xff] %vm586, 0.0
        %vm588 = vcmask 254976
        %589 = vst.msk [vmem:[#allocation4 + $0x8] sm:$0x3] %vm588, 0.0
        %s590 = scalar_lea.vmem [#allocation4], 144
        %591 = vst.msk [vmem:[%s590] sm:$0xff] %vm586, 0.0
        %592 = vst.msk [vmem:[%s590 + $0x8] sm:$0x3] %vm588, 0.0
        %vm593 = vcmask 253952
        %594 = vst.msk [vmem:[#allocation4] sm:$0x1] %vm593, 0.0
        %595 = vst.msk [vmem:[#allocation4 + $0x10] sm:$0x1] %vm593, 0.0
        %596 = vst.msk [vmem:[#allocation4 + $0x20] sm:$0x1] %vm593, 0.0
        %597 = vst.msk [vmem:[#allocation4 + $0x30] sm:$0x1] %vm593, 0.0
        %598 = vst.msk [vmem:[#allocation4 + $0x40] sm:$0x1] %vm593, 0.0
        %599 = vst.msk [vmem:[#allocation4 + $0x50] sm:$0x1] %vm593, 0.0
        %600 = vst.msk [vmem:[#allocation4 + $0x60] sm:$0x1] %vm593, 0.0
        %601 = vst.msk [vmem:[#allocation4 + $0x70] sm:$0x1] %vm593, 0.0
        %602 = vst.msk [vmem:[#allocation4 + $0x80] sm:$0x1] %vm593, 0.0
        %603 = vst.msk [vmem:[#allocation4 + $0x90] sm:$0x1] %vm593, 0.0
        %604 = vst.msk [vmem:[#allocation4 + $0x9] sm:$0x1] %vm593, 0.0
        %605 = vst.msk [vmem:[#allocation4 + $0x19] sm:$0x1] %vm593, 0.0
        %606 = vst.msk [vmem:[#allocation4 + $0x29] sm:$0x1] %vm593, 0.0
        %607 = vst.msk [vmem:[#allocation4 + $0x39] sm:$0x1] %vm593, 0.0
        %608 = vst.msk [vmem:[#allocation4 + $0x49] sm:$0x1] %vm593, 0.0
        %609 = vst.msk [vmem:[#allocation4 + $0x59] sm:$0x1] %vm593, 0.0
        %610 = vst.msk [vmem:[#allocation4 + $0x69] sm:$0x1] %vm593, 0.0
        %611 = vst.msk [vmem:[#allocation4 + $0x79] sm:$0x1] %vm593, 0.0
        %612 = vst.msk [vmem:[#allocation4 + $0x89] sm:$0x1] %vm593, 0.0
        %613 = vst.msk [vmem:[#allocation4 + $0x99] sm:$0x1] %vm593, 0.0
        %v614 = vld [vmem:[%s492] sm:$0xff]
        %v615 = vld [vmem:[%s492 + $0x8] sm:$0xff]
        %v616 = vld [vmem:[%s492 + $0x10] sm:$0xff]
        %v617 = vld [vmem:[%s492 + $0x18] sm:$0xff]
        %v618 = vld [vmem:[%s492 + $0x20] sm:$0xff]
        %v619 = vld [vmem:[%s492 + $0x28] sm:$0xff]
        %v620 = vld [vmem:[%s492 + $0x30] sm:$0xff]
        %v621 = vld [vmem:[%s492 + $0x38] sm:$0xff]
        %v622 = vld [vmem:[%s492 + $0x40] sm:$0xff]
        %v623 = vld [vmem:[%s492 + $0x48] sm:$0xff]
        %v624 = vld [vmem:[%s492 + $0x50] sm:$0xff]
        %v625 = vld [vmem:[%s492 + $0x58] sm:$0xff]
        %v626 = vld [vmem:[%s492 + $0x60] sm:$0xff]
        %v627 = vld [vmem:[%s492 + $0x68] sm:$0xff]
        %v628 = vld [vmem:[%s492 + $0x70] sm:$0xff]
        %v629 = vld [vmem:[%s492 + $0x78] sm:$0xff]
        %v630 = vld [vmem:[%s492 + $0x80] sm:$0xff]
        %v631 = vld [vmem:[%s492 + $0x88] sm:$0xff]
        %v632 = vld [vmem:[%s492 + $0x90] sm:$0xff]
        %v633 = vld [vmem:[%s492 + $0x98] sm:$0xff]
        %v634 = vld [vmem:[%s492 + $0xa0] sm:$0xff]
        %v635 = vld [vmem:[%s492 + $0xa8] sm:$0xff]
        %v636 = vld [vmem:[%s492 + $0xb0] sm:$0xff]
        %v637 = vld [vmem:[%s492 + $0xb8] sm:$0xff]
        %v638 = vld [vmem:[%s492 + $0xc0] sm:$0xff]
        %v639 = vld [vmem:[%s492 + $0xc8] sm:$0xff]
        %v640 = vld [vmem:[%s492 + $0xd0] sm:$0xff]
        %v641 = vld [vmem:[%s492 + $0xd8] sm:$0xff]
        %v642 = vld [vmem:[%s492 + $0xe0] sm:$0xff]
        %v643 = vld [vmem:[%s492 + $0xe8] sm:$0xff]
        %v644 = vld [vmem:[%s492 + $0xf0] sm:$0xff]
        %v645 = vld [vmem:[%s492 + $0xf8] sm:$0xff]
        %s646 = scalar_lea.vmem [#allocation2], 24
        %647 = vst.msk [vmem:[%s646 + $0x1] sm:$0xff] %vm494, %v614
        %648 = vst.msk [vmem:[%s646 + $0x9] sm:$0xff] %vm494, %v615
        %649 = vst.msk [vmem:[%s646 + $0x19] sm:$0xff] %vm494, %v616
        %650 = vst.msk [vmem:[%s646 + $0x21] sm:$0xff] %vm494, %v617
        %651 = vst.msk [vmem:[%s646 + $0x31] sm:$0xff] %vm494, %v618
        %652 = vst.msk [vmem:[%s646 + $0x39] sm:$0xff] %vm494, %v619
        %653 = vst.msk [vmem:[%s646 + $0x49] sm:$0xff] %vm494, %v620
        %654 = vst.msk [vmem:[%s646 + $0x51] sm:$0xff] %vm494, %v621
        %655 = vst.msk [vmem:[%s646 + $0x61] sm:$0xff] %vm494, %v622
        %656 = vst.msk [vmem:[%s646 + $0x69] sm:$0xff] %vm494, %v623
        %657 = vst.msk [vmem:[%s646 + $0x79] sm:$0xff] %vm494, %v624
        %658 = vst.msk [vmem:[%s646 + $0x81] sm:$0xff] %vm494, %v625
        %659 = vst.msk [vmem:[%s646 + $0x91] sm:$0xff] %vm494, %v626
        %660 = vst.msk [vmem:[%s646 + $0x99] sm:$0xff] %vm494, %v627
        %661 = vst.msk [vmem:[%s646 + $0xa9] sm:$0xff] %vm494, %v628
        %662 = vst.msk [vmem:[%s646 + $0xb1] sm:$0xff] %vm494, %v629
        %663 = vst.msk [vmem:[%s646 + $0xc1] sm:$0xff] %vm494, %v630
        %664 = vst.msk [vmem:[%s646 + $0xc9] sm:$0xff] %vm494, %v631
        %665 = vst.msk [vmem:[%s646 + $0xd9] sm:$0xff] %vm494, %v632
        %666 = vst.msk [vmem:[%s646 + $0xe1] sm:$0xff] %vm494, %v633
        %667 = vst.msk [vmem:[%s646 + $0xf1] sm:$0xff] %vm494, %v634
        %668 = vst.msk [vmem:[%s646 + $0xf9] sm:$0xff] %vm494, %v635
        %669 = vst.msk [vmem:[%s646 + $0x109] sm:$0xff] %vm494, %v636
        %670 = vst.msk [vmem:[%s646 + $0x111] sm:$0xff] %vm494, %v637
        %671 = vst.msk [vmem:[%s646 + $0x121] sm:$0xff] %vm494, %v638
        %672 = vst.msk [vmem:[%s646 + $0x129] sm:$0xff] %vm494, %v639
        %673 = vst.msk [vmem:[%s646 + $0x139] sm:$0xff] %vm494, %v640
        %674 = vst.msk [vmem:[%s646 + $0x141] sm:$0xff] %vm494, %v641
        %675 = vst.msk [vmem:[%s646 + $0x151] sm:$0xff] %vm494, %v642
        %676 = vst.msk [vmem:[%s646 + $0x159] sm:$0xff] %vm494, %v643
        %677 = vst.msk [vmem:[%s646 + $0x169] sm:$0xff] %vm494, %v644
        %678 = vst.msk [vmem:[%s646 + $0x171] sm:$0xff] %vm494, %v645
        %v679 = vld [vmem:[%s1] sm:$0xff]
        %v680 = vld [vmem:[%s1 + $0x8] sm:$0x1]
        %v681 = vld [vmem:[%s2] sm:$0x1]
        %v682 = vld [vmem:[#allocation2] sm:$0xff]
        %v683 = vld [vmem:[#allocation2 + $0x8] sm:$0xff]
        %v684 = vld [vmem:[#allocation2 + $0x18] sm:$0xff]
        %v685 = vld [vmem:[#allocation2 + $0x20] sm:$0xff]
        %v686 = vld [vmem:[#allocation2 + $0x30] sm:$0xff]
        %v687 = vld [vmem:[#allocation2 + $0x38] sm:$0xff]
        %v688 = vld [vmem:[#allocation2 + $0x48] sm:$0xff]
        %v689 = vld [vmem:[#allocation2 + $0x50] sm:$0xff]
        %v690 = vld [vmem:[#allocation2 + $0x60] sm:$0xff]
        %v691 = vld [vmem:[#allocation2 + $0x68] sm:$0xff]
        %v692 = vld [vmem:[#allocation2 + $0x78] sm:$0xff]
        %v693 = vld [vmem:[#allocation2 + $0x80] sm:$0xff]
        %v694 = vld [vmem:[#allocation2 + $0x90] sm:$0xff]
        %v695 = vld [vmem:[#allocation2 + $0x98] sm:$0xff]
        %v696 = vld [vmem:[#allocation2 + $0xa8] sm:$0xff]
        %v697 = vld [vmem:[#allocation2 + $0xb0] sm:$0xff]
        %v698 = vld [vmem:[#allocation2 + $0xc0] sm:$0xff]
        %v699 = vld [vmem:[#allocation2 + $0xc8] sm:$0xff]
        %v700 = vld [vmem:[#allocation2 + $0xd8] sm:$0xff]
        %v701 = vld [vmem:[#allocation2 + $0xe0] sm:$0xff]
        %v702 = vld [vmem:[#allocation2 + $0xf0] sm:$0xff]
        %v703 = vld [vmem:[#allocation2 + $0xf8] sm:$0xff]
        %v704 = vld [vmem:[#allocation2 + $0x108] sm:$0xff]
        %v705 = vld [vmem:[#allocation2 + $0x110] sm:$0xff]
        %v706 = vld [vmem:[#allocation2 + $0x120] sm:$0xff]
        %v707 = vld [vmem:[#allocation2 + $0x128] sm:$0xff]
        %v708 = vld [vmem:[#allocation2 + $0x138] sm:$0xff]
        %v709 = vld [vmem:[#allocation2 + $0x140] sm:$0xff]
        %v710 = vld [vmem:[#allocation2 + $0x150] sm:$0xff]
        %v711 = vld [vmem:[#allocation2 + $0x158] sm:$0xff]
        %v712 = vld [vmem:[#allocation2 + $0x168] sm:$0xff]
        %v713 = vld [vmem:[#allocation2 + $0x170] sm:$0xff]
        %v714 = vlaneseq
        %v715 = vshrl.u32 %v714, 7
        %v716 = vsub.s32 0, %v715
        %v717 = vrot.slane %v679, %v716
        %v718 = vmul.f32 %v682, %v717
        %v719 = vmul.f32 %v683, %v717
        %v720 = vmul.f32 %v684, %v717
        %v721 = vmul.f32 %v685, %v717
        %v722 = vmul.f32 %v686, %v717
        %v723 = vmul.f32 %v687, %v717
        %v724 = vmul.f32 %v688, %v717
        %v725 = vmul.f32 %v689, %v717
        %v726 = vmul.f32 %v690, %v717
        %v727 = vmul.f32 %v691, %v717
        %v728 = vmul.f32 %v692, %v717
        %v729 = vmul.f32 %v693, %v717
        %v730 = vmul.f32 %v694, %v717
        %v731 = vmul.f32 %v695, %v717
        %v732 = vmul.f32 %v696, %v717
        %v733 = vmul.f32 %v697, %v717
        %v734 = vmul.f32 %v698, %v717
        %v735 = vmul.f32 %v699, %v717
        %v736 = vmul.f32 %v700, %v717
        %v737 = vmul.f32 %v701, %v717
        %v738 = vmul.f32 %v702, %v717
        %v739 = vmul.f32 %v703, %v717
        %v740 = vmul.f32 %v704, %v717
        %v741 = vmul.f32 %v705, %v717
        %v742 = vmul.f32 %v706, %v717
        %v743 = vmul.f32 %v707, %v717
        %v744 = vmul.f32 %v708, %v717
        %v745 = vmul.f32 %v709, %v717
        %v746 = vmul.f32 %v710, %v717
        %v747 = vmul.f32 %v711, %v717
        %v748 = vmul.f32 %v712, %v717
        %v749 = vmul.f32 %v713, %v717
        %v751 = vlaneseq
        %v752 = vshrl.u32 %v751, 7
        %v753 = vsub.s32 0, %v752
        %v754 = vrot.slane %v681, %v753
        %v756 = vadd.f32 %v718, %v754
        %v757 = vadd.f32 %v719, %v754
        %v758 = vadd.f32 %v720, %v754
        %v759 = vadd.f32 %v721, %v754
        %v760 = vadd.f32 %v722, %v754
        %v761 = vadd.f32 %v723, %v754
        %v762 = vadd.f32 %v724, %v754
        %v763 = vadd.f32 %v725, %v754
        %v764 = vadd.f32 %v726, %v754
        %v765 = vadd.f32 %v727, %v754
        %v766 = vadd.f32 %v728, %v754
        %v767 = vadd.f32 %v729, %v754
        %v768 = vadd.f32 %v730, %v754
        %v769 = vadd.f32 %v731, %v754
        %v770 = vadd.f32 %v732, %v754
        %v771 = vadd.f32 %v733, %v754
        %v772 = vadd.f32 %v734, %v754
        %v773 = vadd.f32 %v735, %v754
        %v774 = vadd.f32 %v736, %v754
        %v775 = vadd.f32 %v737, %v754
        %v776 = vadd.f32 %v738, %v754
        %v777 = vadd.f32 %v739, %v754
        %v778 = vadd.f32 %v740, %v754
        %v779 = vadd.f32 %v741, %v754
        %v780 = vadd.f32 %v742, %v754
        %v781 = vadd.f32 %v743, %v754
        %v782 = vadd.f32 %v744, %v754
        %v783 = vadd.f32 %v745, %v754
        %v784 = vadd.f32 %v746, %v754
        %v785 = vadd.f32 %v747, %v754
        %v786 = vadd.f32 %v748, %v754
        %v787 = vadd.f32 %v749, %v754
        %v788 = vld [vmem:[#allocation2 + $0x1] sm:$0xff]
        %v789 = vld [vmem:[#allocation2 + $0x9] sm:$0xff]
        %v790 = vld [vmem:[#allocation2 + $0x19] sm:$0xff]
        %v791 = vld [vmem:[#allocation2 + $0x21] sm:$0xff]
        %v792 = vld [vmem:[#allocation2 + $0x31] sm:$0xff]
        %v793 = vld [vmem:[#allocation2 + $0x39] sm:$0xff]
        %v794 = vld [vmem:[#allocation2 + $0x49] sm:$0xff]
        %v795 = vld [vmem:[#allocation2 + $0x51] sm:$0xff]
        %v796 = vld [vmem:[#allocation2 + $0x61] sm:$0xff]
        %v797 = vld [vmem:[#allocation2 + $0x69] sm:$0xff]
        %v798 = vld [vmem:[#allocation2 + $0x79] sm:$0xff]
        %v799 = vld [vmem:[#allocation2 + $0x81] sm:$0xff]
        %v800 = vld [vmem:[#allocation2 + $0x91] sm:$0xff]
        %v801 = vld [vmem:[#allocation2 + $0x99] sm:$0xff]
        %v802 = vld [vmem:[#allocation2 + $0xa9] sm:$0xff]
        %v803 = vld [vmem:[#allocation2 + $0xb1] sm:$0xff]
        %v804 = vld [vmem:[#allocation2 + $0xc1] sm:$0xff]
        %v805 = vld [vmem:[#allocation2 + $0xc9] sm:$0xff]
        %v806 = vld [vmem:[#allocation2 + $0xd9] sm:$0xff]
        %v807 = vld [vmem:[#allocation2 + $0xe1] sm:$0xff]
        %v808 = vld [vmem:[#allocation2 + $0xf1] sm:$0xff]
        %v809 = vld [vmem:[#allocation2 + $0xf9] sm:$0xff]
        %v810 = vld [vmem:[#allocation2 + $0x109] sm:$0xff]
        %v811 = vld [vmem:[#allocation2 + $0x111] sm:$0xff]
        %v812 = vld [vmem:[#allocation2 + $0x121] sm:$0xff]
        %v813 = vld [vmem:[#allocation2 + $0x129] sm:$0xff]
        %v814 = vld [vmem:[#allocation2 + $0x139] sm:$0xff]
        %v815 = vld [vmem:[#allocation2 + $0x141] sm:$0xff]
        %v816 = vld [vmem:[#allocation2 + $0x151] sm:$0xff]
        %v817 = vld [vmem:[#allocation2 + $0x159] sm:$0xff]
        %v818 = vld [vmem:[#allocation2 + $0x169] sm:$0xff]
        %v819 = vld [vmem:[#allocation2 + $0x171] sm:$0xff]
        %v820 = vlaneseq
        %v821 = vshrl.u32 %v820, 7
        %v822 = vsub.s32 1, %v821
        %v823 = vrot.slane %v679, %v822
        %v824 = vmul.f32 %v788, %v823
        %v825 = vmul.f32 %v789, %v823
        %v826 = vmul.f32 %v790, %v823
        %v827 = vmul.f32 %v791, %v823
        %v828 = vmul.f32 %v792, %v823
        %v829 = vmul.f32 %v793, %v823
        %v830 = vmul.f32 %v794, %v823
        %v831 = vmul.f32 %v795, %v823
        %v832 = vmul.f32 %v796, %v823
        %v833 = vmul.f32 %v797, %v823
        %v834 = vmul.f32 %v798, %v823
        %v835 = vmul.f32 %v799, %v823
        %v836 = vmul.f32 %v800, %v823
        %v837 = vmul.f32 %v801, %v823
        %v838 = vmul.f32 %v802, %v823
        %v839 = vmul.f32 %v803, %v823
        %v840 = vmul.f32 %v804, %v823
        %v841 = vmul.f32 %v805, %v823
        %v842 = vmul.f32 %v806, %v823
        %v843 = vmul.f32 %v807, %v823
        %v844 = vmul.f32 %v808, %v823
        %v845 = vmul.f32 %v809, %v823
        %v846 = vmul.f32 %v810, %v823
        %v847 = vmul.f32 %v811, %v823
        %v848 = vmul.f32 %v812, %v823
        %v849 = vmul.f32 %v813, %v823
        %v850 = vmul.f32 %v814, %v823
        %v851 = vmul.f32 %v815, %v823
        %v852 = vmul.f32 %v816, %v823
        %v853 = vmul.f32 %v817, %v823
        %v854 = vmul.f32 %v818, %v823
        %v855 = vmul.f32 %v819, %v823
        %v856 = vadd.f32 %v824, %v614
        %v857 = vadd.f32 %v825, %v615
        %v858 = vadd.f32 %v826, %v616
        %v859 = vadd.f32 %v827, %v617
        %v860 = vadd.f32 %v828, %v618
        %v861 = vadd.f32 %v829, %v619
        %v862 = vadd.f32 %v830, %v620
        %v863 = vadd.f32 %v831, %v621
        %v864 = vadd.f32 %v832, %v622
        %v865 = vadd.f32 %v833, %v623
        %v866 = vadd.f32 %v834, %v624
        %v867 = vadd.f32 %v835, %v625
        %v868 = vadd.f32 %v836, %v626
        %v869 = vadd.f32 %v837, %v627
        %v870 = vadd.f32 %v838, %v628
        %v871 = vadd.f32 %v839, %v629
        %v872 = vadd.f32 %v840, %v630
        %v873 = vadd.f32 %v841, %v631
        %v874 = vadd.f32 %v842, %v632
        %v875 = vadd.f32 %v843, %v633
        %v876 = vadd.f32 %v844, %v634
        %v877 = vadd.f32 %v845, %v635
        %v878 = vadd.f32 %v846, %v636
        %v879 = vadd.f32 %v847, %v637
        %v880 = vadd.f32 %v848, %v638
        %v881 = vadd.f32 %v849, %v639
        %v882 = vadd.f32 %v850, %v640
        %v883 = vadd.f32 %v851, %v641
        %v884 = vadd.f32 %v852, %v642
        %v885 = vadd.f32 %v853, %v643
        %v886 = vadd.f32 %v854, %v644
        %v887 = vadd.f32 %v855, %v645
        %v888 = vld [vmem:[#allocation2 + $0x2] sm:$0xff]
        %v889 = vld [vmem:[#allocation2 + $0xa] sm:$0xff]
        %v890 = vld [vmem:[#allocation2 + $0x1a] sm:$0xff]
        %v891 = vld [vmem:[#allocation2 + $0x22] sm:$0xff]
        %v892 = vld [vmem:[#allocation2 + $0x32] sm:$0xff]
        %v893 = vld [vmem:[#allocation2 + $0x3a] sm:$0xff]
        %v894 = vld [vmem:[#allocation2 + $0x4a] sm:$0xff]
        %v895 = vld [vmem:[#allocation2 + $0x52] sm:$0xff]
        %v896 = vld [vmem:[#allocation2 + $0x62] sm:$0xff]
        %v897 = vld [vmem:[#allocation2 + $0x6a] sm:$0xff]
        %v898 = vld [vmem:[#allocation2 + $0x7a] sm:$0xff]
        %v899 = vld [vmem:[#allocation2 + $0x82] sm:$0xff]
        %v900 = vld [vmem:[#allocation2 + $0x92] sm:$0xff]
        %v901 = vld [vmem:[#allocation2 + $0x9a] sm:$0xff]
        %v902 = vld [vmem:[#allocation2 + $0xaa] sm:$0xff]
        %v903 = vld [vmem:[#allocation2 + $0xb2] sm:$0xff]
        %v904 = vld [vmem:[#allocation2 + $0xc2] sm:$0xff]
        %v905 = vld [vmem:[#allocation2 + $0xca] sm:$0xff]
        %v906 = vld [vmem:[#allocation2 + $0xda] sm:$0xff]
        %v907 = vld [vmem:[#allocation2 + $0xe2] sm:$0xff]
        %v908 = vld [vmem:[#allocation2 + $0xf2] sm:$0xff]
        %v909 = vld [vmem:[#allocation2 + $0xfa] sm:$0xff]
        %v910 = vld [vmem:[#allocation2 + $0x10a] sm:$0xff]
        %v911 = vld [vmem:[#allocation2 + $0x112] sm:$0xff]
        %v912 = vld [vmem:[#allocation2 + $0x122] sm:$0xff]
        %v913 = vld [vmem:[#allocation2 + $0x12a] sm:$0xff]
        %v914 = vld [vmem:[#allocation2 + $0x13a] sm:$0xff]
        %v915 = vld [vmem:[#allocation2 + $0x142] sm:$0xff]
        %v916 = vld [vmem:[#allocation2 + $0x152] sm:$0xff]
        %v917 = vld [vmem:[#allocation2 + $0x15a] sm:$0xff]
        %v918 = vld [vmem:[#allocation2 + $0x16a] sm:$0xff]
        %v919 = vld [vmem:[#allocation2 + $0x172] sm:$0xff]
        %v920 = vlaneseq
        %v921 = vshrl.u32 %v920, 7
        %v922 = vsub.s32 2, %v921
        %v923 = vrot.slane %v679, %v922
        %v924 = vmul.f32 %v888, %v923
        %v925 = vmul.f32 %v889, %v923
        %v926 = vmul.f32 %v890, %v923
        %v927 = vmul.f32 %v891, %v923
        %v928 = vmul.f32 %v892, %v923
        %v929 = vmul.f32 %v893, %v923
        %v930 = vmul.f32 %v894, %v923
        %v931 = vmul.f32 %v895, %v923
        %v932 = vmul.f32 %v896, %v923
        %v933 = vmul.f32 %v897, %v923
        %v934 = vmul.f32 %v898, %v923
        %v935 = vmul.f32 %v899, %v923
        %v936 = vmul.f32 %v900, %v923
        %v937 = vmul.f32 %v901, %v923
        %v938 = vmul.f32 %v902, %v923
        %v939 = vmul.f32 %v903, %v923
        %v940 = vmul.f32 %v904, %v923
        %v941 = vmul.f32 %v905, %v923
        %v942 = vmul.f32 %v906, %v923
        %v943 = vmul.f32 %v907, %v923
        %v944 = vmul.f32 %v908, %v923
        %v945 = vmul.f32 %v909, %v923
        %v946 = vmul.f32 %v910, %v923
        %v947 = vmul.f32 %v911, %v923
        %v948 = vmul.f32 %v912, %v923
        %v949 = vmul.f32 %v913, %v923
        %v950 = vmul.f32 %v914, %v923
        %v951 = vmul.f32 %v915, %v923
        %v952 = vmul.f32 %v916, %v923
        %v953 = vmul.f32 %v917, %v923
        %v954 = vmul.f32 %v918, %v923
        %v955 = vmul.f32 %v919, %v923
        %v956 = vld [vmem:[%s646] sm:$0xff]
        %v957 = vld [vmem:[%s646 + $0x8] sm:$0xff]
        %v958 = vld [vmem:[%s646 + $0x18] sm:$0xff]
        %v959 = vld [vmem:[%s646 + $0x20] sm:$0xff]
        %v960 = vld [vmem:[%s646 + $0x30] sm:$0xff]
        %v961 = vld [vmem:[%s646 + $0x38] sm:$0xff]
        %v962 = vld [vmem:[%s646 + $0x48] sm:$0xff]
        %v963 = vld [vmem:[%s646 + $0x50] sm:$0xff]
        %v964 = vld [vmem:[%s646 + $0x60] sm:$0xff]
        %v965 = vld [vmem:[%s646 + $0x68] sm:$0xff]
        %v966 = vld [vmem:[%s646 + $0x78] sm:$0xff]
        %v967 = vld [vmem:[%s646 + $0x80] sm:$0xff]
        %v968 = vld [vmem:[%s646 + $0x90] sm:$0xff]
        %v969 = vld [vmem:[%s646 + $0x98] sm:$0xff]
        %v970 = vld [vmem:[%s646 + $0xa8] sm:$0xff]
        %v971 = vld [vmem:[%s646 + $0xb0] sm:$0xff]
        %v972 = vld [vmem:[%s646 + $0xc0] sm:$0xff]
        %v973 = vld [vmem:[%s646 + $0xc8] sm:$0xff]
        %v974 = vld [vmem:[%s646 + $0xd8] sm:$0xff]
        %v975 = vld [vmem:[%s646 + $0xe0] sm:$0xff]
        %v976 = vld [vmem:[%s646 + $0xf0] sm:$0xff]
        %v977 = vld [vmem:[%s646 + $0xf8] sm:$0xff]
        %v978 = vld [vmem:[%s646 + $0x108] sm:$0xff]
        %v979 = vld [vmem:[%s646 + $0x110] sm:$0xff]
        %v980 = vld [vmem:[%s646 + $0x120] sm:$0xff]
        %v981 = vld [vmem:[%s646 + $0x128] sm:$0xff]
        %v982 = vld [vmem:[%s646 + $0x138] sm:$0xff]
        %v983 = vld [vmem:[%s646 + $0x140] sm:$0xff]
        %v984 = vld [vmem:[%s646 + $0x150] sm:$0xff]
        %v985 = vld [vmem:[%s646 + $0x158] sm:$0xff]
        %v986 = vld [vmem:[%s646 + $0x168] sm:$0xff]
        %v987 = vld [vmem:[%s646 + $0x170] sm:$0xff]
        %v988 = vlaneseq
        %v989 = vshrl.u32 %v988, 7
        %v990 = vsub.s32 3, %v989
        %v991 = vrot.slane %v679, %v990
        %v992 = vmul.f32 %v956, %v991
        %v993 = vmul.f32 %v957, %v991
        %v994 = vmul.f32 %v958, %v991
        %v995 = vmul.f32 %v959, %v991
        %v996 = vmul.f32 %v960, %v991
        %v997 = vmul.f32 %v961, %v991
        %v998 = vmul.f32 %v962, %v991
        %v999 = vmul.f32 %v963, %v991
        %v1000 = vmul.f32 %v964, %v991
        %v1001 = vmul.f32 %v965, %v991
        %v1002 = vmul.f32 %v966, %v991
        %v1003 = vmul.f32 %v967, %v991
        %v1004 = vmul.f32 %v968, %v991
        %v1005 = vmul.f32 %v969, %v991
        %v1006 = vmul.f32 %v970, %v991
        %v1007 = vmul.f32 %v971, %v991
        %v1008 = vmul.f32 %v972, %v991
        %v1009 = vmul.f32 %v973, %v991
        %v1010 = vmul.f32 %v974, %v991
        %v1011 = vmul.f32 %v975, %v991
        %v1012 = vmul.f32 %v976, %v991
        %v1013 = vmul.f32 %v977, %v991
        %v1014 = vmul.f32 %v978, %v991
        %v1015 = vmul.f32 %v979, %v991
        %v1016 = vmul.f32 %v980, %v991
        %v1017 = vmul.f32 %v981, %v991
        %v1018 = vmul.f32 %v982, %v991
        %v1019 = vmul.f32 %v983, %v991
        %v1020 = vmul.f32 %v984, %v991
        %v1021 = vmul.f32 %v985, %v991
        %v1022 = vmul.f32 %v986, %v991
        %v1023 = vmul.f32 %v987, %v991
        %v1024 = vadd.f32 %v756, %v992
        %v1025 = vadd.f32 %v757, %v993
        %v1026 = vadd.f32 %v758, %v994
        %v1027 = vadd.f32 %v759, %v995
        %v1028 = vadd.f32 %v760, %v996
        %v1029 = vadd.f32 %v761, %v997
        %v1030 = vadd.f32 %v762, %v998
        %v1031 = vadd.f32 %v763, %v999
        %v1032 = vadd.f32 %v764, %v1000
        %v1033 = vadd.f32 %v765, %v1001
        %v1034 = vadd.f32 %v766, %v1002
        %v1035 = vadd.f32 %v767, %v1003
        %v1036 = vadd.f32 %v768, %v1004
        %v1037 = vadd.f32 %v769, %v1005
        %v1038 = vadd.f32 %v770, %v1006
        %v1039 = vadd.f32 %v771, %v1007
        %v1040 = vadd.f32 %v772, %v1008
        %v1041 = vadd.f32 %v773, %v1009
        %v1042 = vadd.f32 %v774, %v1010
        %v1043 = vadd.f32 %v775, %v1011
        %v1044 = vadd.f32 %v776, %v1012
        %v1045 = vadd.f32 %v777, %v1013
        %v1046 = vadd.f32 %v778, %v1014
        %v1047 = vadd.f32 %v779, %v1015
        %v1048 = vadd.f32 %v780, %v1016
        %v1049 = vadd.f32 %v781, %v1017
        %v1050 = vadd.f32 %v782, %v1018
        %v1051 = vadd.f32 %v783, %v1019
        %v1052 = vadd.f32 %v784, %v1020
        %v1053 = vadd.f32 %v785, %v1021
        %v1054 = vadd.f32 %v786, %v1022
        %v1055 = vadd.f32 %v787, %v1023
        %v1056 = vld [vmem:[%s646 + $0x1] sm:$0xff]
        %v1057 = vld [vmem:[%s646 + $0x9] sm:$0xff]
        %v1058 = vld [vmem:[%s646 + $0x19] sm:$0xff]
        %v1059 = vld [vmem:[%s646 + $0x21] sm:$0xff]
        %v1060 = vld [vmem:[%s646 + $0x31] sm:$0xff]
        %v1061 = vld [vmem:[%s646 + $0x39] sm:$0xff]
        %v1062 = vld [vmem:[%s646 + $0x49] sm:$0xff]
        %v1063 = vld [vmem:[%s646 + $0x51] sm:$0xff]
        %v1064 = vld [vmem:[%s646 + $0x61] sm:$0xff]
        %v1065 = vld [vmem:[%s646 + $0x69] sm:$0xff]
        %v1066 = vld [vmem:[%s646 + $0x79] sm:$0xff]
        %v1067 = vld [vmem:[%s646 + $0x81] sm:$0xff]
        %v1068 = vld [vmem:[%s646 + $0x91] sm:$0xff]
        %v1069 = vld [vmem:[%s646 + $0x99] sm:$0xff]
        %v1070 = vld [vmem:[%s646 + $0xa9] sm:$0xff]
        %v1071 = vld [vmem:[%s646 + $0xb1] sm:$0xff]
        %v1072 = vld [vmem:[%s646 + $0xc1] sm:$0xff]
        %v1073 = vld [vmem:[%s646 + $0xc9] sm:$0xff]
        %v1074 = vld [vmem:[%s646 + $0xd9] sm:$0xff]
        %v1075 = vld [vmem:[%s646 + $0xe1] sm:$0xff]
        %v1076 = vld [vmem:[%s646 + $0xf1] sm:$0xff]
        %v1077 = vld [vmem:[%s646 + $0xf9] sm:$0xff]
        %v1078 = vld [vmem:[%s646 + $0x109] sm:$0xff]
        %v1079 = vld [vmem:[%s646 + $0x111] sm:$0xff]
        %v1080 = vld [vmem:[%s646 + $0x121] sm:$0xff]
        %v1081 = vld [vmem:[%s646 + $0x129] sm:$0xff]
        %v1082 = vld [vmem:[%s646 + $0x139] sm:$0xff]
        %v1083 = vld [vmem:[%s646 + $0x141] sm:$0xff]
        %v1084 = vld [vmem:[%s646 + $0x151] sm:$0xff]
        %v1085 = vld [vmem:[%s646 + $0x159] sm:$0xff]
        %v1086 = vld [vmem:[%s646 + $0x169] sm:$0xff]
        %v1087 = vld [vmem:[%s646 + $0x171] sm:$0xff]
        %v1088 = vlaneseq
        %v1089 = vshrl.u32 %v1088, 7
        %v1090 = vsub.s32 4, %v1089
        %v1091 = vrot.slane %v679, %v1090
        %v1092 = vmul.f32 %v1056, %v1091
        %v1093 = vmul.f32 %v1057, %v1091
        %v1094 = vmul.f32 %v1058, %v1091
        %v1095 = vmul.f32 %v1059, %v1091
        %v1096 = vmul.f32 %v1060, %v1091
        %v1097 = vmul.f32 %v1061, %v1091
        %v1098 = vmul.f32 %v1062, %v1091
        %v1099 = vmul.f32 %v1063, %v1091
        %v1100 = vmul.f32 %v1064, %v1091
        %v1101 = vmul.f32 %v1065, %v1091
        %v1102 = vmul.f32 %v1066, %v1091
        %v1103 = vmul.f32 %v1067, %v1091
        %v1104 = vmul.f32 %v1068, %v1091
        %v1105 = vmul.f32 %v1069, %v1091
        %v1106 = vmul.f32 %v1070, %v1091
        %v1107 = vmul.f32 %v1071, %v1091
        %v1108 = vmul.f32 %v1072, %v1091
        %v1109 = vmul.f32 %v1073, %v1091
        %v1110 = vmul.f32 %v1074, %v1091
        %v1111 = vmul.f32 %v1075, %v1091
        %v1112 = vmul.f32 %v1076, %v1091
        %v1113 = vmul.f32 %v1077, %v1091
        %v1114 = vmul.f32 %v1078, %v1091
        %v1115 = vmul.f32 %v1079, %v1091
        %v1116 = vmul.f32 %v1080, %v1091
        %v1117 = vmul.f32 %v1081, %v1091
        %v1118 = vmul.f32 %v1082, %v1091
        %v1119 = vmul.f32 %v1083, %v1091
        %v1120 = vmul.f32 %v1084, %v1091
        %v1121 = vmul.f32 %v1085, %v1091
        %v1122 = vmul.f32 %v1086, %v1091
        %v1123 = vmul.f32 %v1087, %v1091
        %v1124 = vadd.f32 %v856, %v1092
        %v1125 = vadd.f32 %v857, %v1093
        %v1126 = vadd.f32 %v858, %v1094
        %v1127 = vadd.f32 %v859, %v1095
        %v1128 = vadd.f32 %v860, %v1096
        %v1129 = vadd.f32 %v861, %v1097
        %v1130 = vadd.f32 %v862, %v1098
        %v1131 = vadd.f32 %v863, %v1099
        %v1132 = vadd.f32 %v864, %v1100
        %v1133 = vadd.f32 %v865, %v1101
        %v1134 = vadd.f32 %v866, %v1102
        %v1135 = vadd.f32 %v867, %v1103
        %v1136 = vadd.f32 %v868, %v1104
        %v1137 = vadd.f32 %v869, %v1105
        %v1138 = vadd.f32 %v870, %v1106
        %v1139 = vadd.f32 %v871, %v1107
        %v1140 = vadd.f32 %v872, %v1108
        %v1141 = vadd.f32 %v873, %v1109
        %v1142 = vadd.f32 %v874, %v1110
        %v1143 = vadd.f32 %v875, %v1111
        %v1144 = vadd.f32 %v876, %v1112
        %v1145 = vadd.f32 %v877, %v1113
        %v1146 = vadd.f32 %v878, %v1114
        %v1147 = vadd.f32 %v879, %v1115
        %v1148 = vadd.f32 %v880, %v1116
        %v1149 = vadd.f32 %v881, %v1117
        %v1150 = vadd.f32 %v882, %v1118
        %v1151 = vadd.f32 %v883, %v1119
        %v1152 = vadd.f32 %v884, %v1120
        %v1153 = vadd.f32 %v885, %v1121
        %v1154 = vadd.f32 %v886, %v1122
        %v1155 = vadd.f32 %v887, %v1123
        %v1156 = vld [vmem:[%s646 + $0x2] sm:$0xff]
        %v1157 = vld [vmem:[%s646 + $0xa] sm:$0xff]
        %v1158 = vld [vmem:[%s646 + $0x1a] sm:$0xff]
        %v1159 = vld [vmem:[%s646 + $0x22] sm:$0xff]
        %v1160 = vld [vmem:[%s646 + $0x32] sm:$0xff]
        %v1161 = vld [vmem:[%s646 + $0x3a] sm:$0xff]
        %v1162 = vld [vmem:[%s646 + $0x4a] sm:$0xff]
        %v1163 = vld [vmem:[%s646 + $0x52] sm:$0xff]
        %v1164 = vld [vmem:[%s646 + $0x62] sm:$0xff]
        %v1165 = vld [vmem:[%s646 + $0x6a] sm:$0xff]
        %v1166 = vld [vmem:[%s646 + $0x7a] sm:$0xff]
        %v1167 = vld [vmem:[%s646 + $0x82] sm:$0xff]
        %v1168 = vld [vmem:[%s646 + $0x92] sm:$0xff]
        %v1169 = vld [vmem:[%s646 + $0x9a] sm:$0xff]
        %v1170 = vld [vmem:[%s646 + $0xaa] sm:$0xff]
        %v1171 = vld [vmem:[%s646 + $0xb2] sm:$0xff]
        %v1172 = vld [vmem:[%s646 + $0xc2] sm:$0xff]
        %v1173 = vld [vmem:[%s646 + $0xca] sm:$0xff]
        %v1174 = vld [vmem:[%s646 + $0xda] sm:$0xff]
        %v1175 = vld [vmem:[%s646 + $0xe2] sm:$0xff]
        %v1176 = vld [vmem:[%s646 + $0xf2] sm:$0xff]
        %v1177 = vld [vmem:[%s646 + $0xfa] sm:$0xff]
        %v1178 = vld [vmem:[%s646 + $0x10a] sm:$0xff]
        %v1179 = vld [vmem:[%s646 + $0x112] sm:$0xff]
        %v1180 = vld [vmem:[%s646 + $0x122] sm:$0xff]
        %v1181 = vld [vmem:[%s646 + $0x12a] sm:$0xff]
        %v1182 = vld [vmem:[%s646 + $0x13a] sm:$0xff]
        %v1183 = vld [vmem:[%s646 + $0x142] sm:$0xff]
        %v1184 = vld [vmem:[%s646 + $0x152] sm:$0xff]
        %v1185 = vld [vmem:[%s646 + $0x15a] sm:$0xff]
        %v1186 = vld [vmem:[%s646 + $0x16a] sm:$0xff]
        %v1187 = vld [vmem:[%s646 + $0x172] sm:$0xff]
        %v1188 = vlaneseq
        %v1189 = vshrl.u32 %v1188, 7
        %v1190 = vsub.s32 5, %v1189
        %v1191 = vrot.slane %v679, %v1190
        %v1192 = vmul.f32 %v1156, %v1191
        %v1193 = vmul.f32 %v1157, %v1191
        %v1194 = vmul.f32 %v1158, %v1191
        %v1195 = vmul.f32 %v1159, %v1191
        %v1196 = vmul.f32 %v1160, %v1191
        %v1197 = vmul.f32 %v1161, %v1191
        %v1198 = vmul.f32 %v1162, %v1191
        %v1199 = vmul.f32 %v1163, %v1191
        %v1200 = vmul.f32 %v1164, %v1191
        %v1201 = vmul.f32 %v1165, %v1191
        %v1202 = vmul.f32 %v1166, %v1191
        %v1203 = vmul.f32 %v1167, %v1191
        %v1204 = vmul.f32 %v1168, %v1191
        %v1205 = vmul.f32 %v1169, %v1191
        %v1206 = vmul.f32 %v1170, %v1191
        %v1207 = vmul.f32 %v1171, %v1191
        %v1208 = vmul.f32 %v1172, %v1191
        %v1209 = vmul.f32 %v1173, %v1191
        %v1210 = vmul.f32 %v1174, %v1191
        %v1211 = vmul.f32 %v1175, %v1191
        %v1212 = vmul.f32 %v1176, %v1191
        %v1213 = vmul.f32 %v1177, %v1191
        %v1214 = vmul.f32 %v1178, %v1191
        %v1215 = vmul.f32 %v1179, %v1191
        %v1216 = vmul.f32 %v1180, %v1191
        %v1217 = vmul.f32 %v1181, %v1191
        %v1218 = vmul.f32 %v1182, %v1191
        %v1219 = vmul.f32 %v1183, %v1191
        %v1220 = vmul.f32 %v1184, %v1191
        %v1221 = vmul.f32 %v1185, %v1191
        %v1222 = vmul.f32 %v1186, %v1191
        %v1223 = vmul.f32 %v1187, %v1191
        %v1224 = vadd.f32 %v924, %v1192
        %v1225 = vadd.f32 %v925, %v1193
        %v1226 = vadd.f32 %v926, %v1194
        %v1227 = vadd.f32 %v927, %v1195
        %v1228 = vadd.f32 %v928, %v1196
        %v1229 = vadd.f32 %v929, %v1197
        %v1230 = vadd.f32 %v930, %v1198
        %v1231 = vadd.f32 %v931, %v1199
        %v1232 = vadd.f32 %v932, %v1200
        %v1233 = vadd.f32 %v933, %v1201
        %v1234 = vadd.f32 %v934, %v1202
        %v1235 = vadd.f32 %v935, %v1203
        %v1236 = vadd.f32 %v936, %v1204
        %v1237 = vadd.f32 %v937, %v1205
        %v1238 = vadd.f32 %v938, %v1206
        %v1239 = vadd.f32 %v939, %v1207
        %v1240 = vadd.f32 %v940, %v1208
        %v1241 = vadd.f32 %v941, %v1209
        %v1242 = vadd.f32 %v942, %v1210
        %v1243 = vadd.f32 %v943, %v1211
        %v1244 = vadd.f32 %v944, %v1212
        %v1245 = vadd.f32 %v945, %v1213
        %v1246 = vadd.f32 %v946, %v1214
        %v1247 = vadd.f32 %v947, %v1215
        %v1248 = vadd.f32 %v948, %v1216
        %v1249 = vadd.f32 %v949, %v1217
        %v1250 = vadd.f32 %v950, %v1218
        %v1251 = vadd.f32 %v951, %v1219
        %v1252 = vadd.f32 %v952, %v1220
        %v1253 = vadd.f32 %v953, %v1221
        %v1254 = vadd.f32 %v954, %v1222
        %v1255 = vadd.f32 %v955, %v1223
        %s1256 = scalar_lea.vmem [#allocation2], 48
        %v1257 = vld [vmem:[%s1256] sm:$0xff]
        %v1258 = vld [vmem:[%s1256 + $0x8] sm:$0xff]
        %v1259 = vld [vmem:[%s1256 + $0x18] sm:$0xff]
        %v1260 = vld [vmem:[%s1256 + $0x20] sm:$0xff]
        %v1261 = vld [vmem:[%s1256 + $0x30] sm:$0xff]
        %v1262 = vld [vmem:[%s1256 + $0x38] sm:$0xff]
        %v1263 = vld [vmem:[%s1256 + $0x48] sm:$0xff]
        %v1264 = vld [vmem:[%s1256 + $0x50] sm:$0xff]
        %v1265 = vld [vmem:[%s1256 + $0x60] sm:$0xff]
        %v1266 = vld [vmem:[%s1256 + $0x68] sm:$0xff]
        %v1267 = vld [vmem:[%s1256 + $0x78] sm:$0xff]
        %v1268 = vld [vmem:[%s1256 + $0x80] sm:$0xff]
        %v1269 = vld [vmem:[%s1256 + $0x90] sm:$0xff]
        %v1270 = vld [vmem:[%s1256 + $0x98] sm:$0xff]
        %v1271 = vld [vmem:[%s1256 + $0xa8] sm:$0xff]
        %v1272 = vld [vmem:[%s1256 + $0xb0] sm:$0xff]
        %v1273 = vld [vmem:[%s1256 + $0xc0] sm:$0xff]
        %v1274 = vld [vmem:[%s1256 + $0xc8] sm:$0xff]
        %v1275 = vld [vmem:[%s1256 + $0xd8] sm:$0xff]
        %v1276 = vld [vmem:[%s1256 + $0xe0] sm:$0xff]
        %v1277 = vld [vmem:[%s1256 + $0xf0] sm:$0xff]
        %v1278 = vld [vmem:[%s1256 + $0xf8] sm:$0xff]
        %v1279 = vld [vmem:[%s1256 + $0x108] sm:$0xff]
        %v1280 = vld [vmem:[%s1256 + $0x110] sm:$0xff]
        %v1281 = vld [vmem:[%s1256 + $0x120] sm:$0xff]
        %v1282 = vld [vmem:[%s1256 + $0x128] sm:$0xff]
        %v1283 = vld [vmem:[%s1256 + $0x138] sm:$0xff]
        %v1284 = vld [vmem:[%s1256 + $0x140] sm:$0xff]
        %v1285 = vld [vmem:[%s1256 + $0x150] sm:$0xff]
        %v1286 = vld [vmem:[%s1256 + $0x158] sm:$0xff]
        %v1287 = vld [vmem:[%s1256 + $0x168] sm:$0xff]
        %v1288 = vld [vmem:[%s1256 + $0x170] sm:$0xff]
        %v1289 = vlaneseq
        %v1290 = vshrl.u32 %v1289, 7
        %v1291 = vsub.s32 6, %v1290
        %v1292 = vrot.slane %v679, %v1291
        %v1293 = vmul.f32 %v1257, %v1292
        %v1294 = vmul.f32 %v1258, %v1292
        %v1295 = vmul.f32 %v1259, %v1292
        %v1296 = vmul.f32 %v1260, %v1292
        %v1297 = vmul.f32 %v1261, %v1292
        %v1298 = vmul.f32 %v1262, %v1292
        %v1299 = vmul.f32 %v1263, %v1292
        %v1300 = vmul.f32 %v1264, %v1292
        %v1301 = vmul.f32 %v1265, %v1292
        %v1302 = vmul.f32 %v1266, %v1292
        %v1303 = vmul.f32 %v1267, %v1292
        %v1304 = vmul.f32 %v1268, %v1292
        %v1305 = vmul.f32 %v1269, %v1292
        %v1306 = vmul.f32 %v1270, %v1292
        %v1307 = vmul.f32 %v1271, %v1292
        %v1308 = vmul.f32 %v1272, %v1292
        %v1309 = vmul.f32 %v1273, %v1292
        %v1310 = vmul.f32 %v1274, %v1292
        %v1311 = vmul.f32 %v1275, %v1292
        %v1312 = vmul.f32 %v1276, %v1292
        %v1313 = vmul.f32 %v1277, %v1292
        %v1314 = vmul.f32 %v1278, %v1292
        %v1315 = vmul.f32 %v1279, %v1292
        %v1316 = vmul.f32 %v1280, %v1292
        %v1317 = vmul.f32 %v1281, %v1292
        %v1318 = vmul.f32 %v1282, %v1292
        %v1319 = vmul.f32 %v1283, %v1292
        %v1320 = vmul.f32 %v1284, %v1292
        %v1321 = vmul.f32 %v1285, %v1292
        %v1322 = vmul.f32 %v1286, %v1292
        %v1323 = vmul.f32 %v1287, %v1292
        %v1324 = vmul.f32 %v1288, %v1292
        %v1325 = vadd.f32 %v1024, %v1293
        %v1326 = vadd.f32 %v1025, %v1294
        %v1327 = vadd.f32 %v1026, %v1295
        %v1328 = vadd.f32 %v1027, %v1296
        %v1329 = vadd.f32 %v1028, %v1297
        %v1330 = vadd.f32 %v1029, %v1298
        %v1331 = vadd.f32 %v1030, %v1299
        %v1332 = vadd.f32 %v1031, %v1300
        %v1333 = vadd.f32 %v1032, %v1301
        %v1334 = vadd.f32 %v1033, %v1302
        %v1335 = vadd.f32 %v1034, %v1303
        %v1336 = vadd.f32 %v1035, %v1304
        %v1337 = vadd.f32 %v1036, %v1305
        %v1338 = vadd.f32 %v1037, %v1306
        %v1339 = vadd.f32 %v1038, %v1307
        %v1340 = vadd.f32 %v1039, %v1308
        %v1341 = vadd.f32 %v1040, %v1309
        %v1342 = vadd.f32 %v1041, %v1310
        %v1343 = vadd.f32 %v1042, %v1311
        %v1344 = vadd.f32 %v1043, %v1312
        %v1345 = vadd.f32 %v1044, %v1313
        %v1346 = vadd.f32 %v1045, %v1314
        %v1347 = vadd.f32 %v1046, %v1315
        %v1348 = vadd.f32 %v1047, %v1316
        %v1349 = vadd.f32 %v1048, %v1317
        %v1350 = vadd.f32 %v1049, %v1318
        %v1351 = vadd.f32 %v1050, %v1319
        %v1352 = vadd.f32 %v1051, %v1320
        %v1353 = vadd.f32 %v1052, %v1321
        %v1354 = vadd.f32 %v1053, %v1322
        %v1355 = vadd.f32 %v1054, %v1323
        %v1356 = vadd.f32 %v1055, %v1324
        %v1357 = vld [vmem:[%s1256 + $0x1] sm:$0xff]
        %v1358 = vld [vmem:[%s1256 + $0x9] sm:$0xff]
        %v1359 = vld [vmem:[%s1256 + $0x19] sm:$0xff]
        %v1360 = vld [vmem:[%s1256 + $0x21] sm:$0xff]
        %v1361 = vld [vmem:[%s1256 + $0x31] sm:$0xff]
        %v1362 = vld [vmem:[%s1256 + $0x39] sm:$0xff]
        %v1363 = vld [vmem:[%s1256 + $0x49] sm:$0xff]
        %v1364 = vld [vmem:[%s1256 + $0x51] sm:$0xff]
        %v1365 = vld [vmem:[%s1256 + $0x61] sm:$0xff]
        %v1366 = vld [vmem:[%s1256 + $0x69] sm:$0xff]
        %v1367 = vld [vmem:[%s1256 + $0x79] sm:$0xff]
        %v1368 = vld [vmem:[%s1256 + $0x81] sm:$0xff]
        %v1369 = vld [vmem:[%s1256 + $0x91] sm:$0xff]
        %v1370 = vld [vmem:[%s1256 + $0x99] sm:$0xff]
        %v1371 = vld [vmem:[%s1256 + $0xa9] sm:$0xff]
        %v1372 = vld [vmem:[%s1256 + $0xb1] sm:$0xff]
        %v1373 = vld [vmem:[%s1256 + $0xc1] sm:$0xff]
        %v1374 = vld [vmem:[%s1256 + $0xc9] sm:$0xff]
        %v1375 = vld [vmem:[%s1256 + $0xd9] sm:$0xff]
        %v1376 = vld [vmem:[%s1256 + $0xe1] sm:$0xff]
        %v1377 = vld [vmem:[%s1256 + $0xf1] sm:$0xff]
        %v1378 = vld [vmem:[%s1256 + $0xf9] sm:$0xff]
        %v1379 = vld [vmem:[%s1256 + $0x109] sm:$0xff]
        %v1380 = vld [vmem:[%s1256 + $0x111] sm:$0xff]
        %v1381 = vld [vmem:[%s1256 + $0x121] sm:$0xff]
        %v1382 = vld [vmem:[%s1256 + $0x129] sm:$0xff]
        %v1383 = vld [vmem:[%s1256 + $0x139] sm:$0xff]
        %v1384 = vld [vmem:[%s1256 + $0x141] sm:$0xff]
        %v1385 = vld [vmem:[%s1256 + $0x151] sm:$0xff]
        %v1386 = vld [vmem:[%s1256 + $0x159] sm:$0xff]
        %v1387 = vld [vmem:[%s1256 + $0x169] sm:$0xff]
        %v1388 = vld [vmem:[%s1256 + $0x171] sm:$0xff]
        %v1389 = vlaneseq
        %v1390 = vshrl.u32 %v1389, 7
        %v1391 = vsub.s32 7, %v1390
        %v1392 = vrot.slane %v679, %v1391
        %v1393 = vmul.f32 %v1357, %v1392
        %v1394 = vmul.f32 %v1358, %v1392
        %v1395 = vmul.f32 %v1359, %v1392
        %v1396 = vmul.f32 %v1360, %v1392
        %v1397 = vmul.f32 %v1361, %v1392
        %v1398 = vmul.f32 %v1362, %v1392
        %v1399 = vmul.f32 %v1363, %v1392
        %v1400 = vmul.f32 %v1364, %v1392
        %v1401 = vmul.f32 %v1365, %v1392
        %v1402 = vmul.f32 %v1366, %v1392
        %v1403 = vmul.f32 %v1367, %v1392
        %v1404 = vmul.f32 %v1368, %v1392
        %v1405 = vmul.f32 %v1369, %v1392
        %v1406 = vmul.f32 %v1370, %v1392
        %v1407 = vmul.f32 %v1371, %v1392
        %v1408 = vmul.f32 %v1372, %v1392
        %v1409 = vmul.f32 %v1373, %v1392
        %v1410 = vmul.f32 %v1374, %v1392
        %v1411 = vmul.f32 %v1375, %v1392
        %v1412 = vmul.f32 %v1376, %v1392
        %v1413 = vmul.f32 %v1377, %v1392
        %v1414 = vmul.f32 %v1378, %v1392
        %v1415 = vmul.f32 %v1379, %v1392
        %v1416 = vmul.f32 %v1380, %v1392
        %v1417 = vmul.f32 %v1381, %v1392
        %v1418 = vmul.f32 %v1382, %v1392
        %v1419 = vmul.f32 %v1383, %v1392
        %v1420 = vmul.f32 %v1384, %v1392
        %v1421 = vmul.f32 %v1385, %v1392
        %v1422 = vmul.f32 %v1386, %v1392
        %v1423 = vmul.f32 %v1387, %v1392
        %v1424 = vmul.f32 %v1388, %v1392
        %v1425 = vadd.f32 %v1124, %v1393
        %v1426 = vadd.f32 %v1125, %v1394
        %v1427 = vadd.f32 %v1126, %v1395
        %v1428 = vadd.f32 %v1127, %v1396
        %v1429 = vadd.f32 %v1128, %v1397
        %v1430 = vadd.f32 %v1129, %v1398
        %v1431 = vadd.f32 %v1130, %v1399
        %v1432 = vadd.f32 %v1131, %v1400
        %v1433 = vadd.f32 %v1132, %v1401
        %v1434 = vadd.f32 %v1133, %v1402
        %v1435 = vadd.f32 %v1134, %v1403
        %v1436 = vadd.f32 %v1135, %v1404
        %v1437 = vadd.f32 %v1136, %v1405
        %v1438 = vadd.f32 %v1137, %v1406
        %v1439 = vadd.f32 %v1138, %v1407
        %v1440 = vadd.f32 %v1139, %v1408
        %v1441 = vadd.f32 %v1140, %v1409
        %v1442 = vadd.f32 %v1141, %v1410
        %v1443 = vadd.f32 %v1142, %v1411
        %v1444 = vadd.f32 %v1143, %v1412
        %v1445 = vadd.f32 %v1144, %v1413
        %v1446 = vadd.f32 %v1145, %v1414
        %v1447 = vadd.f32 %v1146, %v1415
        %v1448 = vadd.f32 %v1147, %v1416
        %v1449 = vadd.f32 %v1148, %v1417
        %v1450 = vadd.f32 %v1149, %v1418
        %v1451 = vadd.f32 %v1150, %v1419
        %v1452 = vadd.f32 %v1151, %v1420
        %v1453 = vadd.f32 %v1152, %v1421
        %v1454 = vadd.f32 %v1153, %v1422
        %v1455 = vadd.f32 %v1154, %v1423
        %v1456 = vadd.f32 %v1155, %v1424
        %v1457 = vld [vmem:[%s1256 + $0x2] sm:$0xff]
        %v1458 = vld [vmem:[%s1256 + $0xa] sm:$0xff]
        %v1459 = vld [vmem:[%s1256 + $0x1a] sm:$0xff]
        %v1460 = vld [vmem:[%s1256 + $0x22] sm:$0xff]
        %v1461 = vld [vmem:[%s1256 + $0x32] sm:$0xff]
        %v1462 = vld [vmem:[%s1256 + $0x3a] sm:$0xff]
        %v1463 = vld [vmem:[%s1256 + $0x4a] sm:$0xff]
        %v1464 = vld [vmem:[%s1256 + $0x52] sm:$0xff]
        %v1465 = vld [vmem:[%s1256 + $0x62] sm:$0xff]
        %v1466 = vld [vmem:[%s1256 + $0x6a] sm:$0xff]
        %v1467 = vld [vmem:[%s1256 + $0x7a] sm:$0xff]
        %v1468 = vld [vmem:[%s1256 + $0x82] sm:$0xff]
        %v1469 = vld [vmem:[%s1256 + $0x92] sm:$0xff]
        %v1470 = vld [vmem:[%s1256 + $0x9a] sm:$0xff]
        %v1471 = vld [vmem:[%s1256 + $0xaa] sm:$0xff]
        %v1472 = vld [vmem:[%s1256 + $0xb2] sm:$0xff]
        %v1473 = vld [vmem:[%s1256 + $0xc2] sm:$0xff]
        %v1474 = vld [vmem:[%s1256 + $0xca] sm:$0xff]
        %v1475 = vld [vmem:[%s1256 + $0xda] sm:$0xff]
        %v1476 = vld [vmem:[%s1256 + $0xe2] sm:$0xff]
        %v1477 = vld [vmem:[%s1256 + $0xf2] sm:$0xff]
        %v1478 = vld [vmem:[%s1256 + $0xfa] sm:$0xff]
        %v1479 = vld [vmem:[%s1256 + $0x10a] sm:$0xff]
        %v1480 = vld [vmem:[%s1256 + $0x112] sm:$0xff]
        %v1481 = vld [vmem:[%s1256 + $0x122] sm:$0xff]
        %v1482 = vld [vmem:[%s1256 + $0x12a] sm:$0xff]
        %v1483 = vld [vmem:[%s1256 + $0x13a] sm:$0xff]
        %v1484 = vld [vmem:[%s1256 + $0x142] sm:$0xff]
        %v1485 = vld [vmem:[%s1256 + $0x152] sm:$0xff]
        %v1486 = vld [vmem:[%s1256 + $0x15a] sm:$0xff]
        %v1487 = vld [vmem:[%s1256 + $0x16a] sm:$0xff]
        %v1488 = vld [vmem:[%s1256 + $0x172] sm:$0xff]
        %v1489 = vlaneseq
        %v1490 = vshrl.u32 %v1489, 7
        %v1491 = vsub.s32 0, %v1490
        %v1492 = vrot.slane %v680, %v1491
        %v1493 = vmul.f32 %v1457, %v1492
        %v1494 = vmul.f32 %v1458, %v1492
        %v1495 = vmul.f32 %v1459, %v1492
        %v1496 = vmul.f32 %v1460, %v1492
        %v1497 = vmul.f32 %v1461, %v1492
        %v1498 = vmul.f32 %v1462, %v1492
        %v1499 = vmul.f32 %v1463, %v1492
        %v1500 = vmul.f32 %v1464, %v1492
        %v1501 = vmul.f32 %v1465, %v1492
        %v1502 = vmul.f32 %v1466, %v1492
        %v1503 = vmul.f32 %v1467, %v1492
        %v1504 = vmul.f32 %v1468, %v1492
        %v1505 = vmul.f32 %v1469, %v1492
        %v1506 = vmul.f32 %v1470, %v1492
        %v1507 = vmul.f32 %v1471, %v1492
        %v1508 = vmul.f32 %v1472, %v1492
        %v1509 = vmul.f32 %v1473, %v1492
        %v1510 = vmul.f32 %v1474, %v1492
        %v1511 = vmul.f32 %v1475, %v1492
        %v1512 = vmul.f32 %v1476, %v1492
        %v1513 = vmul.f32 %v1477, %v1492
        %v1514 = vmul.f32 %v1478, %v1492
        %v1515 = vmul.f32 %v1479, %v1492
        %v1516 = vmul.f32 %v1480, %v1492
        %v1517 = vmul.f32 %v1481, %v1492
        %v1518 = vmul.f32 %v1482, %v1492
        %v1519 = vmul.f32 %v1483, %v1492
        %v1520 = vmul.f32 %v1484, %v1492
        %v1521 = vmul.f32 %v1485, %v1492
        %v1522 = vmul.f32 %v1486, %v1492
        %v1523 = vmul.f32 %v1487, %v1492
        %v1524 = vmul.f32 %v1488, %v1492
        %v1525 = vadd.f32 %v1224, %v1493
        %v1526 = vadd.f32 %v1225, %v1494
        %v1527 = vadd.f32 %v1226, %v1495
        %v1528 = vadd.f32 %v1227, %v1496
        %v1529 = vadd.f32 %v1228, %v1497
        %v1530 = vadd.f32 %v1229, %v1498
        %v1531 = vadd.f32 %v1230, %v1499
        %v1532 = vadd.f32 %v1231, %v1500
        %v1533 = vadd.f32 %v1232, %v1501
        %v1534 = vadd.f32 %v1233, %v1502
        %v1535 = vadd.f32 %v1234, %v1503
        %v1536 = vadd.f32 %v1235, %v1504
        %v1537 = vadd.f32 %v1236, %v1505
        %v1538 = vadd.f32 %v1237, %v1506
        %v1539 = vadd.f32 %v1238, %v1507
        %v1540 = vadd.f32 %v1239, %v1508
        %v1541 = vadd.f32 %v1240, %v1509
        %v1542 = vadd.f32 %v1241, %v1510
        %v1543 = vadd.f32 %v1242, %v1511
        %v1544 = vadd.f32 %v1243, %v1512
        %v1545 = vadd.f32 %v1244, %v1513
        %v1546 = vadd.f32 %v1245, %v1514
        %v1547 = vadd.f32 %v1246, %v1515
        %v1548 = vadd.f32 %v1247, %v1516
        %v1549 = vadd.f32 %v1248, %v1517
        %v1550 = vadd.f32 %v1249, %v1518
        %v1551 = vadd.f32 %v1250, %v1519
        %v1552 = vadd.f32 %v1251, %v1520
        %v1553 = vadd.f32 %v1252, %v1521
        %v1554 = vadd.f32 %v1253, %v1522
        %v1555 = vadd.f32 %v1254, %v1523
        %v1556 = vadd.f32 %v1255, %v1524
        %v1557 = vadd.f32 %v1325, %v1425
        %v1558 = vadd.f32 %v1326, %v1426
        %v1559 = vadd.f32 %v1327, %v1427
        %v1560 = vadd.f32 %v1328, %v1428
        %v1561 = vadd.f32 %v1329, %v1429
        %v1562 = vadd.f32 %v1330, %v1430
        %v1563 = vadd.f32 %v1331, %v1431
        %v1564 = vadd.f32 %v1332, %v1432
        %v1565 = vadd.f32 %v1333, %v1433
        %v1566 = vadd.f32 %v1334, %v1434
        %v1567 = vadd.f32 %v1335, %v1435
        %v1568 = vadd.f32 %v1336, %v1436
        %v1569 = vadd.f32 %v1337, %v1437
        %v1570 = vadd.f32 %v1338, %v1438
        %v1571 = vadd.f32 %v1339, %v1439
        %v1572 = vadd.f32 %v1340, %v1440
        %v1573 = vadd.f32 %v1341, %v1441
        %v1574 = vadd.f32 %v1342, %v1442
        %v1575 = vadd.f32 %v1343, %v1443
        %v1576 = vadd.f32 %v1344, %v1444
        %v1577 = vadd.f32 %v1345, %v1445
        %v1578 = vadd.f32 %v1346, %v1446
        %v1579 = vadd.f32 %v1347, %v1447
        %v1580 = vadd.f32 %v1348, %v1448
        %v1581 = vadd.f32 %v1349, %v1449
        %v1582 = vadd.f32 %v1350, %v1450
        %v1583 = vadd.f32 %v1351, %v1451
        %v1584 = vadd.f32 %v1352, %v1452
        %v1585 = vadd.f32 %v1353, %v1453
        %v1586 = vadd.f32 %v1354, %v1454
        %v1587 = vadd.f32 %v1355, %v1455
        %v1588 = vadd.f32 %v1356, %v1456
        %v1589 = vadd.f32 %v1557, %v1525
        %v1590 = vadd.f32 %v1558, %v1526
        %v1591 = vadd.f32 %v1559, %v1527
        %v1592 = vadd.f32 %v1560, %v1528
        %v1593 = vadd.f32 %v1561, %v1529
        %v1594 = vadd.f32 %v1562, %v1530
        %v1595 = vadd.f32 %v1563, %v1531
        %v1596 = vadd.f32 %v1564, %v1532
        %v1597 = vadd.f32 %v1565, %v1533
        %v1598 = vadd.f32 %v1566, %v1534
        %v1599 = vadd.f32 %v1567, %v1535
        %v1600 = vadd.f32 %v1568, %v1536
        %v1601 = vadd.f32 %v1569, %v1537
        %v1602 = vadd.f32 %v1570, %v1538
        %v1603 = vadd.f32 %v1571, %v1539
        %v1604 = vadd.f32 %v1572, %v1540
        %v1605 = vadd.f32 %v1573, %v1541
        %v1606 = vadd.f32 %v1574, %v1542
        %v1607 = vadd.f32 %v1575, %v1543
        %v1608 = vadd.f32 %v1576, %v1544
        %v1609 = vadd.f32 %v1577, %v1545
        %v1610 = vadd.f32 %v1578, %v1546
        %v1611 = vadd.f32 %v1579, %v1547
        %v1612 = vadd.f32 %v1580, %v1548
        %v1613 = vadd.f32 %v1581, %v1549
        %v1614 = vadd.f32 %v1582, %v1550
        %v1615 = vadd.f32 %v1583, %v1551
        %v1616 = vadd.f32 %v1584, %v1552
        %v1617 = vadd.f32 %v1585, %v1553
        %v1618 = vadd.f32 %v1586, %v1554
        %v1619 = vadd.f32 %v1587, %v1555
        %v1620 = vadd.f32 %v1588, %v1556
        %v1621 = vpack.c.bf16 %v1590, %v1589
        %v1622 = vpack.c.bf16 %v1592, %v1591
        %v1623 = vpack.c.bf16 %v1594, %v1593
        %v1624 = vpack.c.bf16 %v1596, %v1595
        %v1625 = vpack.c.bf16 %v1598, %v1597
        %v1626 = vpack.c.bf16 %v1600, %v1599
        %v1627 = vpack.c.bf16 %v1602, %v1601
        %v1628 = vpack.c.bf16 %v1604, %v1603
        %v1629 = vpack.c.bf16 %v1606, %v1605
        %v1630 = vpack.c.bf16 %v1608, %v1607
        %v1631 = vpack.c.bf16 %v1610, %v1609
        %v1632 = vpack.c.bf16 %v1612, %v1611
        %v1633 = vpack.c.bf16 %v1614, %v1613
        %v1634 = vpack.c.bf16 %v1616, %v1615
        %v1635 = vpack.c.bf16 %v1618, %v1617
        %v1636 = vpack.c.bf16 %v1620, %v1619
        %v1637 = vld [vmem:[%s3] sm:$0xf]
        %v1638 = vld [vmem:[%s3 + $0x4] sm:$0xf]
        %v1639 = vld [vmem:[%s4] sm:$0x1]
        %v1641 = vlaneseq
        %v1642 = vshrl.u32 %v1641, 7
        %v1643 = vsub.s32 0, %v1642
        %v1644 = vrot.slane %v1639, %v1643
        %v1648 = vunpack.c.l.b16 %v1637
        %v1649 = vunpack.c.l.b16 %v1638
        %v1650 = vpack.c.b16 %v1649, %v1648
        %v1653 = vsel %vm494, %v1621, 0
        %v1656 = vsel %vm494, %v1622, 0
        %v1659 = vsel %vm494, %v1623, 0
        %v1662 = vsel %vm494, %v1624, 0
        %v1665 = vsel %vm494, %v1625, 0
        %v1668 = vsel %vm494, %v1626, 0
        %v1671 = vsel %vm494, %v1627, 0
        %v1674 = vsel %vm494, %v1628, 0
        %v1677 = vsel %vm494, %v1629, 0
        %v1680 = vsel %vm494, %v1630, 0
        %v1683 = vsel %vm494, %v1631, 0
        %v1686 = vsel %vm494, %v1632, 0
        %v1689 = vsel %vm494, %v1633, 0
        %v1692 = vsel %vm494, %v1634, 0
        %v1695 = vsel %vm494, %v1635, 0
        %v1698 = vsel %vm494, %v1636, 0
        %1700 = vmatprep.subr.bf16.mxu0 0
        %1701 = vmatpush1.bf16.msra.mxu0 0
        %1702 = vmatprep.subr.bf16.mxu0 0
        %1703 = vmatpush1.bf16.msra.mxu0 0
        %1704 = vmatprep.subr.bf16.mxu0 0
        %1705 = vmatpush1.bf16.msra.mxu0 0
        %1706 = vmatprep.subr.bf16.mxu0 0
        %1707 = vmatpush1.bf16.msra.mxu0 0
        %1708 = vmatprep.subr.bf16.mxu0 0
        %1709 = vmatpush1.bf16.msra.mxu0 0
        %1710 = vmatprep.subr.bf16.mxu0 0
        %1711 = vmatpush1.bf16.msra.mxu0 0
        %1712 = vmatprep.subr.bf16.mxu0 0
        %1713 = vmatpush1.bf16.msra.mxu0 0
        %1714 = vmatprep.subr.bf16.mxu0 0
        %1715 = vmatpush1.bf16.msra.mxu0 %v1650
        %1716 = vmatprep.subr.bf16.mxu0 0
        %1717 = vmatpush2.bf16.msra.mxu0 0
        %1718 = vmatprep.subr.bf16.mxu0 0
        %1719 = vmatpush2.bf16.msra.mxu0 0
        %1720 = vmatprep.subr.bf16.mxu0 0
        %1721 = vmatpush2.bf16.msra.mxu0 0
        %1722 = vmatprep.subr.bf16.mxu0 0
        %1723 = vmatpush2.bf16.msra.mxu0 0
        %1724 = vmatprep.subr.bf16.mxu0 0
        %1725 = vmatpush2.bf16.msra.mxu0 0
        %1726 = vmatprep.subr.bf16.mxu0 0
        %1727 = vmatpush2.bf16.msra.mxu0 0
        %1728 = vmatprep.subr.bf16.mxu0 0
        %1729 = vmatpush2.bf16.msra.mxu0 0
        %1730 = vmatprep.subr.bf16.mxu0 0
        %1731 = vmatpush2.bf16.msra.mxu0 0
        %1732 = vmatprep.mubr.bf16.mxu0 0
        %1733 = vmatmul.mubr.bf16.gmra.mxu0 %v1653
        %v1734 = vpop.f32.mrf.mxu0
        %v1735 = vadd.f32 %v1644, %v1734
        %v1736 = vpop.f32.mrf.mxu0
        %v1737 = vpop.f32.mrf.mxu0
        %v1738 = vadd.f32 %v1644, %v1737
        %v1739 = vpop.f32.mrf.mxu0
        %1740 = vmatprep.mubr.bf16.mxu0 0
        %1741 = vmatmul.mubr.bf16.gmra.mxu0 %v1656
        %v1742 = vpop.f32.mrf.mxu0
        %v1743 = vadd.f32 %v1644, %v1742
        %v1744 = vpop.f32.mrf.mxu0
        %v1745 = vpop.f32.mrf.mxu0
        %v1746 = vadd.f32 %v1644, %v1745
        %v1747 = vpop.f32.mrf.mxu0
        %1748 = vmatprep.mubr.bf16.mxu0 0
        %1749 = vmatmul.mubr.bf16.gmra.mxu0 %v1659
        %v1750 = vpop.f32.mrf.mxu0
        %v1751 = vadd.f32 %v1644, %v1750
        %v1752 = vpop.f32.mrf.mxu0
        %v1753 = vpop.f32.mrf.mxu0
        %v1754 = vadd.f32 %v1644, %v1753
        %v1755 = vpop.f32.mrf.mxu0
        %1756 = vmatprep.mubr.bf16.mxu0 0
        %1757 = vmatmul.mubr.bf16.gmra.mxu0 %v1662
        %v1758 = vpop.f32.mrf.mxu0
        %v1759 = vadd.f32 %v1644, %v1758
        %v1760 = vpop.f32.mrf.mxu0
        %v1761 = vpop.f32.mrf.mxu0
        %v1762 = vadd.f32 %v1644, %v1761
        %v1763 = vpop.f32.mrf.mxu0
        %1764 = vmatprep.mubr.bf16.mxu0 0
        %1765 = vmatmul.mubr.bf16.gmra.mxu0 %v1665
        %v1766 = vpop.f32.mrf.mxu0
        %v1767 = vadd.f32 %v1644, %v1766
        %v1768 = vpop.f32.mrf.mxu0
        %v1769 = vpop.f32.mrf.mxu0
        %v1770 = vadd.f32 %v1644, %v1769
        %v1771 = vpop.f32.mrf.mxu0
        %1772 = vmatprep.mubr.bf16.mxu0 0
        %1773 = vmatmul.mubr.bf16.gmra.mxu0 %v1668
        %v1774 = vpop.f32.mrf.mxu0
        %v1775 = vadd.f32 %v1644, %v1774
        %v1776 = vpop.f32.mrf.mxu0
        %v1777 = vpop.f32.mrf.mxu0
        %v1778 = vadd.f32 %v1644, %v1777
        %v1779 = vpop.f32.mrf.mxu0
        %1780 = vmatprep.mubr.bf16.mxu0 0
        %1781 = vmatmul.mubr.bf16.gmra.mxu0 %v1671
        %v1782 = vpop.f32.mrf.mxu0
        %v1783 = vadd.f32 %v1644, %v1782
        %v1784 = vpop.f32.mrf.mxu0
        %v1785 = vpop.f32.mrf.mxu0
        %v1786 = vadd.f32 %v1644, %v1785
        %v1787 = vpop.f32.mrf.mxu0
        %1788 = vmatprep.mubr.bf16.mxu0 0
        %1789 = vmatmul.mubr.bf16.gmra.mxu0 %v1674
        %v1790 = vpop.f32.mrf.mxu0
        %v1791 = vadd.f32 %v1644, %v1790
        %v1792 = vpop.f32.mrf.mxu0
        %v1793 = vpop.f32.mrf.mxu0
        %v1794 = vadd.f32 %v1644, %v1793
        %v1795 = vpop.f32.mrf.mxu0
        %1796 = vmatprep.mubr.bf16.mxu0 0
        %1797 = vmatmul.mubr.bf16.gmra.mxu0 %v1677
        %v1798 = vpop.f32.mrf.mxu0
        %v1799 = vadd.f32 %v1644, %v1798
        %v1800 = vpop.f32.mrf.mxu0
        %v1801 = vpop.f32.mrf.mxu0
        %v1802 = vadd.f32 %v1644, %v1801
        %v1803 = vpop.f32.mrf.mxu0
        %1804 = vmatprep.mubr.bf16.mxu0 0
        %1805 = vmatmul.mubr.bf16.gmra.mxu0 %v1680
        %v1806 = vpop.f32.mrf.mxu0
        %v1807 = vadd.f32 %v1644, %v1806
        %v1808 = vpop.f32.mrf.mxu0
        %v1809 = vpop.f32.mrf.mxu0
        %v1810 = vadd.f32 %v1644, %v1809
        %v1811 = vpop.f32.mrf.mxu0
        %1812 = vmatprep.mubr.bf16.mxu0 0
        %1813 = vmatmul.mubr.bf16.gmra.mxu0 %v1683
        %v1814 = vpop.f32.mrf.mxu0
        %v1815 = vadd.f32 %v1644, %v1814
        %v1816 = vpop.f32.mrf.mxu0
        %v1817 = vpop.f32.mrf.mxu0
        %v1818 = vadd.f32 %v1644, %v1817
        %v1819 = vpop.f32.mrf.mxu0
        %1820 = vmatprep.mubr.bf16.mxu0 0
        %1821 = vmatmul.mubr.bf16.gmra.mxu0 %v1686
        %v1822 = vpop.f32.mrf.mxu0
        %v1823 = vadd.f32 %v1644, %v1822
        %v1824 = vpop.f32.mrf.mxu0
        %v1825 = vpop.f32.mrf.mxu0
        %v1826 = vadd.f32 %v1644, %v1825
        %v1827 = vpop.f32.mrf.mxu0
        %1828 = vmatprep.mubr.bf16.mxu0 0
        %1829 = vmatmul.mubr.bf16.gmra.mxu0 %v1689
        %v1830 = vpop.f32.mrf.mxu0
        %v1831 = vadd.f32 %v1644, %v1830
        %v1832 = vpop.f32.mrf.mxu0
        %v1833 = vpop.f32.mrf.mxu0
        %v1834 = vadd.f32 %v1644, %v1833
        %v1835 = vpop.f32.mrf.mxu0
        %1836 = vmatprep.mubr.bf16.mxu0 0
        %1837 = vmatmul.mubr.bf16.gmra.mxu0 %v1692
        %v1838 = vpop.f32.mrf.mxu0
        %v1839 = vadd.f32 %v1644, %v1838
        %v1840 = vpop.f32.mrf.mxu0
        %v1841 = vpop.f32.mrf.mxu0
        %v1842 = vadd.f32 %v1644, %v1841
        %v1843 = vpop.f32.mrf.mxu0
        %1844 = vmatprep.mubr.bf16.mxu0 0
        %1845 = vmatmul.mubr.bf16.gmra.mxu0 %v1695
        %v1846 = vpop.f32.mrf.mxu0
        %v1847 = vadd.f32 %v1644, %v1846
        %v1848 = vpop.f32.mrf.mxu0
        %v1849 = vpop.f32.mrf.mxu0
        %v1850 = vadd.f32 %v1644, %v1849
        %v1851 = vpop.f32.mrf.mxu0
        %1852 = vmatprep.mubr.bf16.mxu0 0
        %1853 = vmatmul.mubr.bf16.gmra.mxu0 %v1698
        %v1854 = vpop.f32.mrf.mxu0
        %v1855 = vadd.f32 %v1644, %v1854
        %v1856 = vpop.f32.mrf.mxu0
        %v1857 = vpop.f32.mrf.mxu0
        %v1858 = vadd.f32 %v1644, %v1857
        %v1859 = vpop.f32.mrf.mxu0
        %1860 = vdwg.mxu0
        %v1861 = vmax.f32 %v1735, 0.0
        %v1862 = vmax.f32 %v1738, 0.0
        %v1863 = vmax.f32 %v1743, 0.0
        %v1864 = vmax.f32 %v1746, 0.0
        %v1865 = vmax.f32 %v1751, 0.0
        %v1866 = vmax.f32 %v1754, 0.0
        %v1867 = vmax.f32 %v1759, 0.0
        %v1868 = vmax.f32 %v1762, 0.0
        %v1869 = vmax.f32 %v1767, 0.0
        %v1870 = vmax.f32 %v1770, 0.0
        %v1871 = vmax.f32 %v1775, 0.0
        %v1872 = vmax.f32 %v1778, 0.0
        %v1873 = vmax.f32 %v1783, 0.0
        %v1874 = vmax.f32 %v1786, 0.0
        %v1875 = vmax.f32 %v1791, 0.0
        %v1876 = vmax.f32 %v1794, 0.0
        %v1877 = vmax.f32 %v1799, 0.0
        %v1878 = vmax.f32 %v1802, 0.0
        %v1879 = vmax.f32 %v1807, 0.0
        %v1880 = vmax.f32 %v1810, 0.0
        %v1881 = vmax.f32 %v1815, 0.0
        %v1882 = vmax.f32 %v1818, 0.0
        %v1883 = vmax.f32 %v1823, 0.0
        %v1884 = vmax.f32 %v1826, 0.0
        %v1885 = vmax.f32 %v1831, 0.0
        %v1886 = vmax.f32 %v1834, 0.0
        %v1887 = vmax.f32 %v1839, 0.0
        %v1888 = vmax.f32 %v1842, 0.0
        %v1889 = vmax.f32 %v1847, 0.0
        %v1890 = vmax.f32 %v1850, 0.0
        %v1891 = vmax.f32 %v1855, 0.0
        %v1892 = vmax.f32 %v1858, 0.0
        %s1893 = scalar_lea.vmem [#allocation3], 24
        %1894 = vst.msk [vmem:[%s1893 + $0x1] sm:$0xff] %vm540, %v1861
        %1895 = vst.msk [vmem:[%s1893 + $0x9] sm:$0xff] %vm540, %v1862
        %1896 = vst.msk [vmem:[%s1893 + $0x19] sm:$0xff] %vm540, %v1863
        %1897 = vst.msk [vmem:[%s1893 + $0x21] sm:$0xff] %vm540, %v1864
        %1898 = vst.msk [vmem:[%s1893 + $0x31] sm:$0xff] %vm540, %v1865
        %1899 = vst.msk [vmem:[%s1893 + $0x39] sm:$0xff] %vm540, %v1866
        %1900 = vst.msk [vmem:[%s1893 + $0x49] sm:$0xff] %vm540, %v1867
        %1901 = vst.msk [vmem:[%s1893 + $0x51] sm:$0xff] %vm540, %v1868
        %1902 = vst.msk [vmem:[%s1893 + $0x61] sm:$0xff] %vm540, %v1869
        %1903 = vst.msk [vmem:[%s1893 + $0x69] sm:$0xff] %vm540, %v1870
        %1904 = vst.msk [vmem:[%s1893 + $0x79] sm:$0xff] %vm540, %v1871
        %1905 = vst.msk [vmem:[%s1893 + $0x81] sm:$0xff] %vm540, %v1872
        %1906 = vst.msk [vmem:[%s1893 + $0x91] sm:$0xff] %vm540, %v1873
        %1907 = vst.msk [vmem:[%s1893 + $0x99] sm:$0xff] %vm540, %v1874
        %1908 = vst.msk [vmem:[%s1893 + $0xa9] sm:$0xff] %vm540, %v1875
        %1909 = vst.msk [vmem:[%s1893 + $0xb1] sm:$0xff] %vm540, %v1876
        %1910 = vst.msk [vmem:[%s1893 + $0xc1] sm:$0xff] %vm540, %v1877
        %1911 = vst.msk [vmem:[%s1893 + $0xc9] sm:$0xff] %vm540, %v1878
        %1912 = vst.msk [vmem:[%s1893 + $0xd9] sm:$0xff] %vm540, %v1879
        %1913 = vst.msk [vmem:[%s1893 + $0xe1] sm:$0xff] %vm540, %v1880
        %1914 = vst.msk [vmem:[%s1893 + $0xf1] sm:$0xff] %vm540, %v1881
        %1915 = vst.msk [vmem:[%s1893 + $0xf9] sm:$0xff] %vm540, %v1882
        %1916 = vst.msk [vmem:[%s1893 + $0x109] sm:$0xff] %vm540, %v1883
        %1917 = vst.msk [vmem:[%s1893 + $0x111] sm:$0xff] %vm540, %v1884
        %1918 = vst.msk [vmem:[%s1893 + $0x121] sm:$0xff] %vm540, %v1885
        %1919 = vst.msk [vmem:[%s1893 + $0x129] sm:$0xff] %vm540, %v1886
        %1920 = vst.msk [vmem:[%s1893 + $0x139] sm:$0xff] %vm540, %v1887
        %1921 = vst.msk [vmem:[%s1893 + $0x141] sm:$0xff] %vm540, %v1888
        %1922 = vst.msk [vmem:[%s1893 + $0x151] sm:$0xff] %vm540, %v1889
        %1923 = vst.msk [vmem:[%s1893 + $0x159] sm:$0xff] %vm540, %v1890
        %1924 = vst.msk [vmem:[%s1893 + $0x169] sm:$0xff] %vm540, %v1891
        %1925 = vst.msk [vmem:[%s1893 + $0x171] sm:$0xff] %vm540, %v1892
        %v1926 = vld [vmem:[%s5] sm:$0xff]
        %v1927 = vld [vmem:[%s5 + $0x8] sm:$0x1]
        %v1928 = vld [vmem:[%s6] sm:$0x1]
        %v1929 = vld [vmem:[#allocation3] ss:$2 sm:$0xff]
        %s1930 = scalar_lea.vmem [#allocation3], 48
        %v1931 = vld [vmem:[%s1930] ss:$2 sm:$0xff]
        %s1932 = scalar_lea.vmem [#allocation3], 96
        %v1933 = vld [vmem:[%s1932] ss:$2 sm:$0xff]
        %s1934 = scalar_lea.vmem [#allocation3], 144
        %v1935 = vld [vmem:[%s1934] ss:$2 sm:$0xff]
        %s1936 = scalar_lea.vmem [#allocation3], 192
        %v1937 = vld [vmem:[%s1936] ss:$2 sm:$0xff]
        %s1938 = scalar_lea.vmem [#allocation3], 240
        %v1939 = vld [vmem:[%s1938] ss:$2 sm:$0xff]
        %s1940 = scalar_lea.vmem [#allocation3], 288
        %v1941 = vld [vmem:[%s1940] ss:$2 sm:$0xff]
        %s1942 = scalar_lea.vmem [#allocation3], 336
        %v1943 = vld [vmem:[%s1942] ss:$2 sm:$0xff]
        %v1944 = vlaneseq
        %v1945 = vshrl.u32 %v1944, 7
        %v1946 = vsub.s32 0, %v1945
        %v1947 = vrot.slane %v1926, %v1946
        %v1948 = vmul.f32 %v1929, %v1947
        %v1949 = vmul.f32 %v1931, %v1947
        %v1950 = vmul.f32 %v1933, %v1947
        %v1951 = vmul.f32 %v1935, %v1947
        %v1952 = vmul.f32 %v1937, %v1947
        %v1953 = vmul.f32 %v1939, %v1947
        %v1954 = vmul.f32 %v1941, %v1947
        %v1955 = vmul.f32 %v1943, %v1947
        %v1957 = vlaneseq
        %v1958 = vshrl.u32 %v1957, 7
        %v1959 = vsub.s32 0, %v1958
        %v1960 = vrot.slane %v1928, %v1959
        %v1962 = vadd.f32 %v1948, %v1960
        %v1963 = vadd.f32 %v1949, %v1960
        %v1964 = vadd.f32 %v1950, %v1960
        %v1965 = vadd.f32 %v1951, %v1960
        %v1966 = vadd.f32 %v1952, %v1960
        %v1967 = vadd.f32 %v1953, %v1960
        %v1968 = vadd.f32 %v1954, %v1960
        %v1969 = vadd.f32 %v1955, %v1960
        %s1970 = scalar_lea.vmem [#allocation3], 1
        %v1971 = vld [vmem:[%s1970] ss:$2 sm:$0xff]
        %s1972 = scalar_lea.vmem [#allocation3], 49
        %v1973 = vld [vmem:[%s1972] ss:$2 sm:$0xff]
        %s1974 = scalar_lea.vmem [#allocation3], 97
        %v1975 = vld [vmem:[%s1974] ss:$2 sm:$0xff]
        %s1976 = scalar_lea.vmem [#allocation3], 145
        %v1977 = vld [vmem:[%s1976] ss:$2 sm:$0xff]
        %s1978 = scalar_lea.vmem [#allocation3], 193
        %v1979 = vld [vmem:[%s1978] ss:$2 sm:$0xff]
        %s1980 = scalar_lea.vmem [#allocation3], 241
        %v1981 = vld [vmem:[%s1980] ss:$2 sm:$0xff]
        %s1982 = scalar_lea.vmem [#allocation3], 289
        %v1983 = vld [vmem:[%s1982] ss:$2 sm:$0xff]
        %s1984 = scalar_lea.vmem [#allocation3], 337
        %v1985 = vld [vmem:[%s1984] ss:$2 sm:$0xff]
        %v1986 = vlaneseq
        %v1987 = vshrl.u32 %v1986, 7
        %v1988 = vsub.s32 1, %v1987
        %v1989 = vrot.slane %v1926, %v1988
        %v1990 = vmul.f32 %v1971, %v1989
        %v1991 = vmul.f32 %v1973, %v1989
        %v1992 = vmul.f32 %v1975, %v1989
        %v1993 = vmul.f32 %v1977, %v1989
        %v1994 = vmul.f32 %v1979, %v1989
        %v1995 = vmul.f32 %v1981, %v1989
        %v1996 = vmul.f32 %v1983, %v1989
        %v1997 = vmul.f32 %v1985, %v1989
        %s1998 = scalar_lea.vmem [#allocation3], 2
        %v1999 = vld [vmem:[%s1998] ss:$2 sm:$0xff]
        %s2000 = scalar_lea.vmem [#allocation3], 50
        %v2001 = vld [vmem:[%s2000] ss:$2 sm:$0xff]
        %s2002 = scalar_lea.vmem [#allocation3], 98
        %v2003 = vld [vmem:[%s2002] ss:$2 sm:$0xff]
        %s2004 = scalar_lea.vmem [#allocation3], 146
        %v2005 = vld [vmem:[%s2004] ss:$2 sm:$0xff]
        %s2006 = scalar_lea.vmem [#allocation3], 194
        %v2007 = vld [vmem:[%s2006] ss:$2 sm:$0xff]
        %s2008 = scalar_lea.vmem [#allocation3], 242
        %v2009 = vld [vmem:[%s2008] ss:$2 sm:$0xff]
        %s2010 = scalar_lea.vmem [#allocation3], 290
        %v2011 = vld [vmem:[%s2010] ss:$2 sm:$0xff]
        %s2012 = scalar_lea.vmem [#allocation3], 338
        %v2013 = vld [vmem:[%s2012] ss:$2 sm:$0xff]
        %v2014 = vlaneseq
        %v2015 = vshrl.u32 %v2014, 7
        %v2016 = vsub.s32 2, %v2015
        %v2017 = vrot.slane %v1926, %v2016
        %v2018 = vmul.f32 %v1999, %v2017
        %v2019 = vmul.f32 %v2001, %v2017
        %v2020 = vmul.f32 %v2003, %v2017
        %v2021 = vmul.f32 %v2005, %v2017
        %v2022 = vmul.f32 %v2007, %v2017
        %v2023 = vmul.f32 %v2009, %v2017
        %v2024 = vmul.f32 %v2011, %v2017
        %v2025 = vmul.f32 %v2013, %v2017
        %v2026 = vld [vmem:[%s1893] ss:$2 sm:$0xff]
        %s2027 = scalar_lea.vmem %s1893, 48 [#allocation3]
        %v2028 = vld [vmem:[%s2027] ss:$2 sm:$0xff]
        %s2029 = scalar_lea.vmem %s1893, 96 [#allocation3]
        %v2030 = vld [vmem:[%s2029] ss:$2 sm:$0xff]
        %s2031 = scalar_lea.vmem %s1893, 144 [#allocation3]
        %v2032 = vld [vmem:[%s2031] ss:$2 sm:$0xff]
        %s2033 = scalar_lea.vmem %s1893, 192 [#allocation3]
        %v2034 = vld [vmem:[%s2033] ss:$2 sm:$0xff]
        %s2035 = scalar_lea.vmem %s1893, 240 [#allocation3]
        %v2036 = vld [vmem:[%s2035] ss:$2 sm:$0xff]
        %s2037 = scalar_lea.vmem %s1893, 288 [#allocation3]
        %v2038 = vld [vmem:[%s2037] ss:$2 sm:$0xff]
        %s2039 = scalar_lea.vmem %s1893, 336 [#allocation3]
        %v2040 = vld [vmem:[%s2039] ss:$2 sm:$0xff]
        %v2041 = vlaneseq
        %v2042 = vshrl.u32 %v2041, 7
        %v2043 = vsub.s32 3, %v2042
        %v2044 = vrot.slane %v1926, %v2043
        %v2045 = vmul.f32 %v2026, %v2044
        %v2046 = vmul.f32 %v2028, %v2044
        %v2047 = vmul.f32 %v2030, %v2044
        %v2048 = vmul.f32 %v2032, %v2044
        %v2049 = vmul.f32 %v2034, %v2044
        %v2050 = vmul.f32 %v2036, %v2044
        %v2051 = vmul.f32 %v2038, %v2044
        %v2052 = vmul.f32 %v2040, %v2044
        %v2053 = vadd.f32 %v1962, %v2045
        %v2054 = vadd.f32 %v1963, %v2046
        %v2055 = vadd.f32 %v1964, %v2047
        %v2056 = vadd.f32 %v1965, %v2048
        %v2057 = vadd.f32 %v1966, %v2049
        %v2058 = vadd.f32 %v1967, %v2050
        %v2059 = vadd.f32 %v1968, %v2051
        %v2060 = vadd.f32 %v1969, %v2052
        %s2061 = scalar_lea.vmem %s1893, 1 [#allocation3]
        %v2062 = vld [vmem:[%s2061] ss:$2 sm:$0xff]
        %s2063 = scalar_lea.vmem %s1893, 49 [#allocation3]
        %v2064 = vld [vmem:[%s2063] ss:$2 sm:$0xff]
        %s2065 = scalar_lea.vmem %s1893, 97 [#allocation3]
        %v2066 = vld [vmem:[%s2065] ss:$2 sm:$0xff]
        %s2067 = scalar_lea.vmem %s1893, 145 [#allocation3]
        %v2068 = vld [vmem:[%s2067] ss:$2 sm:$0xff]
        %s2069 = scalar_lea.vmem %s1893, 193 [#allocation3]
        %v2070 = vld [vmem:[%s2069] ss:$2 sm:$0xff]
        %s2071 = scalar_lea.vmem %s1893, 241 [#allocation3]
        %v2072 = vld [vmem:[%s2071] ss:$2 sm:$0xff]
        %s2073 = scalar_lea.vmem %s1893, 289 [#allocation3]
        %v2074 = vld [vmem:[%s2073] ss:$2 sm:$0xff]
        %s2075 = scalar_lea.vmem %s1893, 337 [#allocation3]
        %v2076 = vld [vmem:[%s2075] ss:$2 sm:$0xff]
        %v2077 = vlaneseq
        %v2078 = vshrl.u32 %v2077, 7
        %v2079 = vsub.s32 4, %v2078
        %v2080 = vrot.slane %v1926, %v2079
        %v2081 = vmul.f32 %v2062, %v2080
        %v2082 = vmul.f32 %v2064, %v2080
        %v2083 = vmul.f32 %v2066, %v2080
        %v2084 = vmul.f32 %v2068, %v2080
        %v2085 = vmul.f32 %v2070, %v2080
        %v2086 = vmul.f32 %v2072, %v2080
        %v2087 = vmul.f32 %v2074, %v2080
        %v2088 = vmul.f32 %v2076, %v2080
        %v2089 = vadd.f32 %v1990, %v2081
        %v2090 = vadd.f32 %v1991, %v2082
        %v2091 = vadd.f32 %v1992, %v2083
        %v2092 = vadd.f32 %v1993, %v2084
        %v2093 = vadd.f32 %v1994, %v2085
        %v2094 = vadd.f32 %v1995, %v2086
        %v2095 = vadd.f32 %v1996, %v2087
        %v2096 = vadd.f32 %v1997, %v2088
        %s2097 = scalar_lea.vmem %s1893, 2 [#allocation3]
        %v2098 = vld [vmem:[%s2097] ss:$2 sm:$0xff]
        %s2099 = scalar_lea.vmem %s1893, 50 [#allocation3]
        %v2100 = vld [vmem:[%s2099] ss:$2 sm:$0xff]
        %s2101 = scalar_lea.vmem %s1893, 98 [#allocation3]
        %v2102 = vld [vmem:[%s2101] ss:$2 sm:$0xff]
        %s2103 = scalar_lea.vmem %s1893, 146 [#allocation3]
        %v2104 = vld [vmem:[%s2103] ss:$2 sm:$0xff]
        %s2105 = scalar_lea.vmem %s1893, 194 [#allocation3]
        %v2106 = vld [vmem:[%s2105] ss:$2 sm:$0xff]
        %s2107 = scalar_lea.vmem %s1893, 242 [#allocation3]
        %v2108 = vld [vmem:[%s2107] ss:$2 sm:$0xff]
        %s2109 = scalar_lea.vmem %s1893, 290 [#allocation3]
        %v2110 = vld [vmem:[%s2109] ss:$2 sm:$0xff]
        %s2111 = scalar_lea.vmem %s1893, 338 [#allocation3]
        %v2112 = vld [vmem:[%s2111] ss:$2 sm:$0xff]
        %v2113 = vlaneseq
        %v2114 = vshrl.u32 %v2113, 7
        %v2115 = vsub.s32 5, %v2114
        %v2116 = vrot.slane %v1926, %v2115
        %v2117 = vmul.f32 %v2098, %v2116
        %v2118 = vmul.f32 %v2100, %v2116
        %v2119 = vmul.f32 %v2102, %v2116
        %v2120 = vmul.f32 %v2104, %v2116
        %v2121 = vmul.f32 %v2106, %v2116
        %v2122 = vmul.f32 %v2108, %v2116
        %v2123 = vmul.f32 %v2110, %v2116
        %v2124 = vmul.f32 %v2112, %v2116
        %v2125 = vadd.f32 %v2018, %v2117
        %v2126 = vadd.f32 %v2019, %v2118
        %v2127 = vadd.f32 %v2020, %v2119
        %v2128 = vadd.f32 %v2021, %v2120
        %v2129 = vadd.f32 %v2022, %v2121
        %v2130 = vadd.f32 %v2023, %v2122
        %v2131 = vadd.f32 %v2024, %v2123
        %v2132 = vadd.f32 %v2025, %v2124
        %s2133 = scalar_lea.vmem [#allocation3], 48
        %v2134 = vld [vmem:[%s2133] ss:$2 sm:$0xff]
        %s2135 = scalar_lea.vmem %s2133, 48 [#allocation3]
        %v2136 = vld [vmem:[%s2135] ss:$2 sm:$0xff]
        %s2137 = scalar_lea.vmem %s2133, 96 [#allocation3]
        %v2138 = vld [vmem:[%s2137] ss:$2 sm:$0xff]
        %s2139 = scalar_lea.vmem %s2133, 144 [#allocation3]
        %v2140 = vld [vmem:[%s2139] ss:$2 sm:$0xff]
        %s2141 = scalar_lea.vmem %s2133, 192 [#allocation3]
        %v2142 = vld [vmem:[%s2141] ss:$2 sm:$0xff]
        %s2143 = scalar_lea.vmem %s2133, 240 [#allocation3]
        %v2144 = vld [vmem:[%s2143] ss:$2 sm:$0xff]
        %s2145 = scalar_lea.vmem %s2133, 288 [#allocation3]
        %v2146 = vld [vmem:[%s2145] ss:$2 sm:$0xff]
        %s2147 = scalar_lea.vmem %s2133, 336 [#allocation3]
        %v2148 = vld [vmem:[%s2147] ss:$2 sm:$0xff]
        %v2149 = vlaneseq
        %v2150 = vshrl.u32 %v2149, 7
        %v2151 = vsub.s32 6, %v2150
        %v2152 = vrot.slane %v1926, %v2151
        %v2153 = vmul.f32 %v2134, %v2152
        %v2154 = vmul.f32 %v2136, %v2152
        %v2155 = vmul.f32 %v2138, %v2152
        %v2156 = vmul.f32 %v2140, %v2152
        %v2157 = vmul.f32 %v2142, %v2152
        %v2158 = vmul.f32 %v2144, %v2152
        %v2159 = vmul.f32 %v2146, %v2152
        %v2160 = vmul.f32 %v2148, %v2152
        %v2161 = vadd.f32 %v2053, %v2153
        %v2162 = vadd.f32 %v2054, %v2154
        %v2163 = vadd.f32 %v2055, %v2155
        %v2164 = vadd.f32 %v2056, %v2156
        %v2165 = vadd.f32 %v2057, %v2157
        %v2166 = vadd.f32 %v2058, %v2158
        %v2167 = vadd.f32 %v2059, %v2159
        %v2168 = vadd.f32 %v2060, %v2160
        %s2169 = scalar_lea.vmem %s2133, 1 [#allocation3]
        %v2170 = vld [vmem:[%s2169] ss:$2 sm:$0xff]
        %s2171 = scalar_lea.vmem %s2133, 49 [#allocation3]
        %v2172 = vld [vmem:[%s2171] ss:$2 sm:$0xff]
        %s2173 = scalar_lea.vmem %s2133, 97 [#allocation3]
        %v2174 = vld [vmem:[%s2173] ss:$2 sm:$0xff]
        %s2175 = scalar_lea.vmem %s2133, 145 [#allocation3]
        %v2176 = vld [vmem:[%s2175] ss:$2 sm:$0xff]
        %s2177 = scalar_lea.vmem %s2133, 193 [#allocation3]
        %v2178 = vld [vmem:[%s2177] ss:$2 sm:$0xff]
        %s2179 = scalar_lea.vmem %s2133, 241 [#allocation3]
        %v2180 = vld [vmem:[%s2179] ss:$2 sm:$0xff]
        %s2181 = scalar_lea.vmem %s2133, 289 [#allocation3]
        %v2182 = vld [vmem:[%s2181] ss:$2 sm:$0xff]
        %s2183 = scalar_lea.vmem %s2133, 337 [#allocation3]
        %v2184 = vld [vmem:[%s2183] ss:$2 sm:$0xff]
        %v2185 = vlaneseq
        %v2186 = vshrl.u32 %v2185, 7
        %v2187 = vsub.s32 7, %v2186
        %v2188 = vrot.slane %v1926, %v2187
        %v2189 = vmul.f32 %v2170, %v2188
        %v2190 = vmul.f32 %v2172, %v2188
        %v2191 = vmul.f32 %v2174, %v2188
        %v2192 = vmul.f32 %v2176, %v2188
        %v2193 = vmul.f32 %v2178, %v2188
        %v2194 = vmul.f32 %v2180, %v2188
        %v2195 = vmul.f32 %v2182, %v2188
        %v2196 = vmul.f32 %v2184, %v2188
        %v2197 = vadd.f32 %v2089, %v2189
        %v2198 = vadd.f32 %v2090, %v2190
        %v2199 = vadd.f32 %v2091, %v2191
        %v2200 = vadd.f32 %v2092, %v2192
        %v2201 = vadd.f32 %v2093, %v2193
        %v2202 = vadd.f32 %v2094, %v2194
        %v2203 = vadd.f32 %v2095, %v2195
        %v2204 = vadd.f32 %v2096, %v2196
        %s2205 = scalar_lea.vmem %s2133, 2 [#allocation3]
        %v2206 = vld [vmem:[%s2205] ss:$2 sm:$0xff]
        %s2207 = scalar_lea.vmem %s2133, 50 [#allocation3]
        %v2208 = vld [vmem:[%s2207] ss:$2 sm:$0xff]
        %s2209 = scalar_lea.vmem %s2133, 98 [#allocation3]
        %v2210 = vld [vmem:[%s2209] ss:$2 sm:$0xff]
        %s2211 = scalar_lea.vmem %s2133, 146 [#allocation3]
        %v2212 = vld [vmem:[%s2211] ss:$2 sm:$0xff]
        %s2213 = scalar_lea.vmem %s2133, 194 [#allocation3]
        %v2214 = vld [vmem:[%s2213] ss:$2 sm:$0xff]
        %s2215 = scalar_lea.vmem %s2133, 242 [#allocation3]
        %v2216 = vld [vmem:[%s2215] ss:$2 sm:$0xff]
        %s2217 = scalar_lea.vmem %s2133, 290 [#allocation3]
        %v2218 = vld [vmem:[%s2217] ss:$2 sm:$0xff]
        %s2219 = scalar_lea.vmem %s2133, 338 [#allocation3]
        %v2220 = vld [vmem:[%s2219] ss:$2 sm:$0xff]
        %v2221 = vlaneseq
        %v2222 = vshrl.u32 %v2221, 7
        %v2223 = vsub.s32 0, %v2222
        %v2224 = vrot.slane %v1927, %v2223
        %v2225 = vmul.f32 %v2206, %v2224
        %v2226 = vmul.f32 %v2208, %v2224
        %v2227 = vmul.f32 %v2210, %v2224
        %v2228 = vmul.f32 %v2212, %v2224
        %v2229 = vmul.f32 %v2214, %v2224
        %v2230 = vmul.f32 %v2216, %v2224
        %v2231 = vmul.f32 %v2218, %v2224
        %v2232 = vmul.f32 %v2220, %v2224
        %v2233 = vadd.f32 %v2125, %v2225
        %v2234 = vadd.f32 %v2126, %v2226
        %v2235 = vadd.f32 %v2127, %v2227
        %v2236 = vadd.f32 %v2128, %v2228
        %v2237 = vadd.f32 %v2129, %v2229
        %v2238 = vadd.f32 %v2130, %v2230
        %v2239 = vadd.f32 %v2131, %v2231
        %v2240 = vadd.f32 %v2132, %v2232
        %v2241 = vadd.f32 %v2161, %v2197
        %v2242 = vadd.f32 %v2162, %v2198
        %v2243 = vadd.f32 %v2163, %v2199
        %v2244 = vadd.f32 %v2164, %v2200
        %v2245 = vadd.f32 %v2165, %v2201
        %v2246 = vadd.f32 %v2166, %v2202
        %v2247 = vadd.f32 %v2167, %v2203
        %v2248 = vadd.f32 %v2168, %v2204
        %v2249 = vadd.f32 %v2241, %v2233
        %v2250 = vadd.f32 %v2242, %v2234
        %v2251 = vadd.f32 %v2243, %v2235
        %v2252 = vadd.f32 %v2244, %v2236
        %v2253 = vadd.f32 %v2245, %v2237
        %v2254 = vadd.f32 %v2246, %v2238
        %v2255 = vadd.f32 %v2247, %v2239
        %v2256 = vadd.f32 %v2248, %v2240
        %v2257 = vmax.f32 %v2249, 0.0
        %v2258 = vmax.f32 %v2250, 0.0
        %v2259 = vmax.f32 %v2251, 0.0
        %v2260 = vmax.f32 %v2252, 0.0
        %v2261 = vmax.f32 %v2253, 0.0
        %v2262 = vmax.f32 %v2254, 0.0
        %v2263 = vmax.f32 %v2255, 0.0
        %v2264 = vmax.f32 %v2256, 0.0
        %v2265 = vsel %vm540, %v2257, 0.0
        %v2266 = vsel %vm540, %v2258, 0.0
        %v2267 = vadd.f32 %v2265, %v2266
        %v2268 = vsel %vm540, %v2259, 0.0
        %v2269 = vadd.f32 %v2267, %v2268
        %v2270 = vsel %vm540, %v2260, 0.0
        %v2271 = vadd.f32 %v2269, %v2270
        %v2272 = vsel %vm540, %v2261, 0.0
        %v2273 = vadd.f32 %v2271, %v2272
        %v2274 = vsel %vm540, %v2262, 0.0
        %v2275 = vadd.f32 %v2273, %v2274
        %v2276 = vsel %vm540, %v2263, 0.0
        %v2277 = vadd.f32 %v2275, %v2276
        %v2278 = vsel %vm540, %v2264, 0.0
        %v2279 = vadd.f32 %v2277, %v2278
        %v2280 = vrot.slane %v2279, 4
        %v2281 = vadd.f32 %v2279, %v2280
        %v2282 = vrot.slane %v2281, 2
        %v2283 = vadd.f32 %v2281, %v2282
        %v2284 = vrot.slane %v2283, 1
        %v2285 = vadd.f32 %v2283, %v2284
        %v2286 = vmul.f32 %v2285, 0.015625
        %v2287 = vld [vmem:[%s7] sm:$0xff]
        %v2288 = vld [vmem:[%s7 + $0x8] sm:$0xff]
        %v2289 = vmul.f32 %v2287, %v2286
        %v2290 = vmul.f32 %v2288, %v2286
        %v2291 = vsel %vm540, %v2289, 0.0
        %2292 = vadd.xlane.f32.xlu0 %v2291
        %v2293 = vpop.xlane.xlu0 %2292
        %v2294 = vsel %vm540, %v2290, 0.0
        %2295 = vadd.xlane.f32.xlu0 %v2294
        %v2296 = vpop.xlane.xlu0 %2295
        %v2297 = vld [vmem:[%s8] sm:$0xff]
        %v2298 = vld [vmem:[%s8 + $0x8] sm:$0xff]
        %v2299 = vadd.f32 %v2293, %v2297
        %v2300 = vadd.f32 %v2296, %v2298
        %v2301 = vmax.f32 %v2299, 0.0
        %v2302 = vmax.f32 %v2300, 0.0
        %v2303 = vld [vmem:[%s9] sm:$0xff]
        %v2304 = vld [vmem:[%s9 + $0x8] sm:$0xff]
        %2306 = vset.pattern.permute.xlu0 0
        %2307 = vperm.xlu0 %2306, %v2301
        %v2308 = vpop.permute.xlu0 %2307
        %2311 = vset.pattern.permute.xlu0 0
        %2312 = vperm.xlu0 %2311, %v2302
        %v2313 = vpop.permute.xlu0 %2312
        %v2315 = vmul.f32 %v2303, %v2308
        %v2316 = vmul.f32 %v2304, %v2313
        %v2317 = vsel %vm540, %v2315, 0.0
        %v2318 = vsel %vm540, %v2316, 0.0
        %v2319 = vadd.f32 %v2317, %v2318
        %v2320 = vrot.slane %v2319, 4
        %v2321 = vadd.f32 %v2319, %v2320
        %v2322 = vrot.slane %v2321, 2
        %v2323 = vadd.f32 %v2321, %v2322
        %v2324 = vrot.slane %v2323, 1
        %v2325 = vadd.f32 %v2323, %v2324
        %v2326 = vld [vmem:[%s10] sm:$0x1]
        %v2327 = vadd.f32 %v2325, %v2326
        %v2328 = vsub.f32 0.0, %v2327
        %v2329 = vmul.f32 %v2328, 1.442695
        %v2330 = vpow.pop %v2329
        %v2331 = vadd.f32 %v2330, 1.0
        %v2332 = vrcp.pop %v2331
        %v2333 = vmul.f32 1.0, %v2332
        %v2334 = vlaneseq
        %v2335 = vshrl.u32 %v2334, 7
        %v2336 = vsub.s32 0, %v2335
        %v2337 = vrot.slane %v2333, %v2336
        %v2338 = vmul.f32 %v2257, %v2337
        %v2339 = vmul.f32 %v2258, %v2337
        %v2340 = vmul.f32 %v2259, %v2337
        %v2341 = vmul.f32 %v2260, %v2337
        %v2342 = vmul.f32 %v2261, %v2337
        %v2343 = vmul.f32 %v2262, %v2337
        %v2344 = vmul.f32 %v2263, %v2337
        %v2345 = vmul.f32 %v2264, %v2337
        %v2346 = vpack.c.bf16 %v2339, %v2338
        %v2347 = vpack.c.bf16 %v2341, %v2340
        %v2348 = vpack.c.bf16 %v2343, %v2342
        %v2349 = vpack.c.bf16 %v2345, %v2344
        %v2350 = vld [vmem:[%s11] sm:$0xf]
        %v2351 = vld [vmem:[%s11 + $0x4] sm:$0xf]
        %v2352 = vld [vmem:[%s11 + $0x8] sm:$0xf]
        %v2353 = vld [vmem:[%s11 + $0xc] sm:$0xf]
        %v2354 = vld [vmem:[%s11 + $0x10] sm:$0xf]
        %v2355 = vld [vmem:[%s11 + $0x14] sm:$0xf]
        %v2356 = vld [vmem:[%s11 + $0x18] sm:$0xf]
        %v2357 = vld [vmem:[%s11 + $0x1c] sm:$0xf]
        %v2358 = vld [vmem:[%s12] sm:$0x1]
        %v2360 = vlaneseq
        %v2361 = vshrl.u32 %v2360, 7
        %v2362 = vsub.s32 0, %v2361
        %v2363 = vrot.slane %v2358, %v2362
        %v2373 = vunpack.c.l.b16 %v2350
        %v2374 = vunpack.c.l.b16 %v2351
        %v2375 = vunpack.c.l.b16 %v2352
        %v2376 = vunpack.c.l.b16 %v2353
        %v2377 = vunpack.c.l.b16 %v2354
        %v2378 = vunpack.c.l.b16 %v2355
        %v2379 = vunpack.c.l.b16 %v2356
        %v2380 = vunpack.c.l.b16 %v2357
        %v2381 = vpack.c.b16 %v2374, %v2373
        %v2382 = vpack.c.b16 %v2376, %v2375
        %v2383 = vpack.c.b16 %v2378, %v2377
        %v2384 = vpack.c.b16 %v2380, %v2379
        %v2390 = vsel %vm540, %v2346, 0
        %v2393 = vsel %vm540, %v2347, 0
        %v2396 = vsel %vm540, %v2348, 0
        %v2399 = vsel %vm540, %v2349, 0
        %2401 = vmatprep.subr.bf16.mxu0 0
        %2402 = vmatpush1.bf16.msra.mxu0 0
        %2403 = vmatprep.subr.bf16.mxu0 0
        %2404 = vmatpush1.bf16.msra.mxu0 0
        %2405 = vmatprep.subr.bf16.mxu0 0
        %2406 = vmatpush1.bf16.msra.mxu0 0
        %2407 = vmatprep.subr.bf16.mxu0 0
        %2408 = vmatpush1.bf16.msra.mxu0 0
        %2409 = vmatprep.subr.bf16.mxu0 0
        %2410 = vmatpush1.bf16.msra.mxu0 %v2384
        %2411 = vmatprep.subr.bf16.mxu0 0
        %2412 = vmatpush1.bf16.msra.mxu0 %v2383
        %2413 = vmatprep.subr.bf16.mxu0 0
        %2414 = vmatpush1.bf16.msra.mxu0 %v2382
        %2415 = vmatprep.subr.bf16.mxu0 0
        %2416 = vmatpush1.bf16.msra.mxu0 %v2381
        %2417 = vmatprep.subr.bf16.mxu0 0
        %2418 = vmatpush2.bf16.msra.mxu0 0
        %2419 = vmatprep.subr.bf16.mxu0 0
        %2420 = vmatpush2.bf16.msra.mxu0 0
        %2421 = vmatprep.subr.bf16.mxu0 0
        %2422 = vmatpush2.bf16.msra.mxu0 0
        %2423 = vmatprep.subr.bf16.mxu0 0
        %2424 = vmatpush2.bf16.msra.mxu0 0
        %2425 = vmatprep.subr.bf16.mxu0 0
        %2426 = vmatpush2.bf16.msra.mxu0 0
        %2427 = vmatprep.subr.bf16.mxu0 0
        %2428 = vmatpush2.bf16.msra.mxu0 0
        %2429 = vmatprep.subr.bf16.mxu0 0
        %2430 = vmatpush2.bf16.msra.mxu0 0
        %2431 = vmatprep.subr.bf16.mxu0 0
        %2432 = vmatpush2.bf16.msra.mxu0 0
        %2433 = vmatprep.mubr.bf16.mxu0 0
        %2434 = vmatmul.mubr.bf16.gmra.mxu0 %v2390
        %v2435 = vpop.f32.mrf.mxu0
        %v2436 = vadd.f32 %v2363, %v2435
        %v2437 = vpop.f32.mrf.mxu0
        %v2438 = vpop.f32.mrf.mxu0
        %v2439 = vadd.f32 %v2363, %v2438
        %v2440 = vpop.f32.mrf.mxu0
        %2441 = vmatprep.mubr.bf16.mxu0 0
        %2442 = vmatmul.mubr.bf16.gmra.mxu0 %v2393
        %v2443 = vpop.f32.mrf.mxu0
        %v2444 = vadd.f32 %v2363, %v2443
        %v2445 = vpop.f32.mrf.mxu0
        %v2446 = vpop.f32.mrf.mxu0
        %v2447 = vadd.f32 %v2363, %v2446
        %v2448 = vpop.f32.mrf.mxu0
        %2449 = vmatprep.mubr.bf16.mxu0 0
        %2450 = vmatmul.mubr.bf16.gmra.mxu0 %v2396
        %v2451 = vpop.f32.mrf.mxu0
        %v2452 = vadd.f32 %v2363, %v2451
        %v2453 = vpop.f32.mrf.mxu0
        %v2454 = vpop.f32.mrf.mxu0
        %v2455 = vadd.f32 %v2363, %v2454
        %v2456 = vpop.f32.mrf.mxu0
        %2457 = vmatprep.mubr.bf16.mxu0 0
        %2458 = vmatmul.mubr.bf16.gmra.mxu0 %v2399
        %v2459 = vpop.f32.mrf.mxu0
        %v2460 = vadd.f32 %v2363, %v2459
        %v2461 = vpop.f32.mrf.mxu0
        %v2462 = vpop.f32.mrf.mxu0
        %v2463 = vadd.f32 %v2363, %v2462
        %v2464 = vpop.f32.mrf.mxu0
        %2465 = vdwg.mxu0
        %s2466 = scalar_lea.vmem [#allocation4], 16
        %2467 = vst.msk [vmem:[%s2466 + $0x1] sm:$0xff] %vm586, %v2436
        %2468 = vst.msk [vmem:[%s2466 + $0x11] sm:$0xff] %vm586, %v2439
        %2469 = vst.msk [vmem:[%s2466 + $0x21] sm:$0xff] %vm586, %v2444
        %2470 = vst.msk [vmem:[%s2466 + $0x31] sm:$0xff] %vm586, %v2447
        %2471 = vst.msk [vmem:[%s2466 + $0x41] sm:$0xff] %vm586, %v2452
        %2472 = vst.msk [vmem:[%s2466 + $0x51] sm:$0xff] %vm586, %v2455
        %2473 = vst.msk [vmem:[%s2466 + $0x61] sm:$0xff] %vm586, %v2460
        %2474 = vst.msk [vmem:[%s2466 + $0x71] sm:$0xff] %vm586, %v2463
        %v2475 = vld [vmem:[%s13] sm:$0xff]
        %v2476 = vld [vmem:[%s13 + $0x8] sm:$0x1]
        %v2477 = vld [vmem:[%s14] sm:$0x1]
        %v2478 = vld [vmem:[#allocation4] sm:$0xff]
        %v2479 = vld [vmem:[#allocation4 + $0x10] sm:$0xff]
        %v2480 = vld [vmem:[#allocation4 + $0x20] sm:$0xff]
        %v2481 = vld [vmem:[#allocation4 + $0x30] sm:$0xff]
        %v2482 = vld [vmem:[#allocation4 + $0x40] sm:$0xff]
        %v2483 = vld [vmem:[#allocation4 + $0x50] sm:$0xff]
        %v2484 = vld [vmem:[#allocation4 + $0x60] sm:$0xff]
        %v2485 = vld [vmem:[#allocation4 + $0x70] sm:$0xff]
        %v2486 = vlaneseq
        %v2487 = vshrl.u32 %v2486, 7
        %v2488 = vsub.s32 0, %v2487
        %v2489 = vrot.slane %v2475, %v2488
        %v2490 = vmul.f32 %v2478, %v2489
        %v2491 = vmul.f32 %v2479, %v2489
        %v2492 = vmul.f32 %v2480, %v2489
        %v2493 = vmul.f32 %v2481, %v2489
        %v2494 = vmul.f32 %v2482, %v2489
        %v2495 = vmul.f32 %v2483, %v2489
        %v2496 = vmul.f32 %v2484, %v2489
        %v2497 = vmul.f32 %v2485, %v2489
        %v2499 = vlaneseq
        %v2500 = vshrl.u32 %v2499, 7
        %v2501 = vsub.s32 0, %v2500
        %v2502 = vrot.slane %v2477, %v2501
        %v2504 = vadd.f32 %v2490, %v2502
        %v2505 = vadd.f32 %v2491, %v2502
        %v2506 = vadd.f32 %v2492, %v2502
        %v2507 = vadd.f32 %v2493, %v2502
        %v2508 = vadd.f32 %v2494, %v2502
        %v2509 = vadd.f32 %v2495, %v2502
        %v2510 = vadd.f32 %v2496, %v2502
        %v2511 = vadd.f32 %v2497, %v2502
        %v2512 = vld [vmem:[#allocation4 + $0x1] sm:$0xff]
        %v2513 = vld [vmem:[#allocation4 + $0x11] sm:$0xff]
        %v2514 = vld [vmem:[#allocation4 + $0x21] sm:$0xff]
        %v2515 = vld [vmem:[#allocation4 + $0x31] sm:$0xff]
        %v2516 = vld [vmem:[#allocation4 + $0x41] sm:$0xff]
        %v2517 = vld [vmem:[#allocation4 + $0x51] sm:$0xff]
        %v2518 = vld [vmem:[#allocation4 + $0x61] sm:$0xff]
        %v2519 = vld [vmem:[#allocation4 + $0x71] sm:$0xff]
        %v2520 = vlaneseq
        %v2521 = vshrl.u32 %v2520, 7
        %v2522 = vsub.s32 1, %v2521
        %v2523 = vrot.slane %v2475, %v2522
        %v2524 = vmul.f32 %v2512, %v2523
        %v2525 = vmul.f32 %v2513, %v2523
        %v2526 = vmul.f32 %v2514, %v2523
        %v2527 = vmul.f32 %v2515, %v2523
        %v2528 = vmul.f32 %v2516, %v2523
        %v2529 = vmul.f32 %v2517, %v2523
        %v2530 = vmul.f32 %v2518, %v2523
        %v2531 = vmul.f32 %v2519, %v2523
        %v2532 = vadd.f32 %v2524, %v2436
        %v2533 = vadd.f32 %v2525, %v2439
        %v2534 = vadd.f32 %v2526, %v2444
        %v2535 = vadd.f32 %v2527, %v2447
        %v2536 = vadd.f32 %v2528, %v2452
        %v2537 = vadd.f32 %v2529, %v2455
        %v2538 = vadd.f32 %v2530, %v2460
        %v2539 = vadd.f32 %v2531, %v2463
        %v2540 = vld [vmem:[#allocation4 + $0x2] sm:$0xff]
        %v2541 = vld [vmem:[#allocation4 + $0x12] sm:$0xff]
        %v2542 = vld [vmem:[#allocation4 + $0x22] sm:$0xff]
        %v2543 = vld [vmem:[#allocation4 + $0x32] sm:$0xff]
        %v2544 = vld [vmem:[#allocation4 + $0x42] sm:$0xff]
        %v2545 = vld [vmem:[#allocation4 + $0x52] sm:$0xff]
        %v2546 = vld [vmem:[#allocation4 + $0x62] sm:$0xff]
        %v2547 = vld [vmem:[#allocation4 + $0x72] sm:$0xff]
        %v2548 = vlaneseq
        %v2549 = vshrl.u32 %v2548, 7
        %v2550 = vsub.s32 2, %v2549
        %v2551 = vrot.slane %v2475, %v2550
        %v2552 = vmul.f32 %v2540, %v2551
        %v2553 = vmul.f32 %v2541, %v2551
        %v2554 = vmul.f32 %v2542, %v2551
        %v2555 = vmul.f32 %v2543, %v2551
        %v2556 = vmul.f32 %v2544, %v2551
        %v2557 = vmul.f32 %v2545, %v2551
        %v2558 = vmul.f32 %v2546, %v2551
        %v2559 = vmul.f32 %v2547, %v2551
        %v2560 = vld [vmem:[%s2466] sm:$0xff]
        %v2561 = vld [vmem:[%s2466 + $0x10] sm:$0xff]
        %v2562 = vld [vmem:[%s2466 + $0x20] sm:$0xff]
        %v2563 = vld [vmem:[%s2466 + $0x30] sm:$0xff]
        %v2564 = vld [vmem:[%s2466 + $0x40] sm:$0xff]
        %v2565 = vld [vmem:[%s2466 + $0x50] sm:$0xff]
        %v2566 = vld [vmem:[%s2466 + $0x60] sm:$0xff]
        %v2567 = vld [vmem:[%s2466 + $0x70] sm:$0xff]
        %v2568 = vlaneseq
        %v2569 = vshrl.u32 %v2568, 7
        %v2570 = vsub.s32 3, %v2569
        %v2571 = vrot.slane %v2475, %v2570
        %v2572 = vmul.f32 %v2560, %v2571
        %v2573 = vmul.f32 %v2561, %v2571
        %v2574 = vmul.f32 %v2562, %v2571
        %v2575 = vmul.f32 %v2563, %v2571
        %v2576 = vmul.f32 %v2564, %v2571
        %v2577 = vmul.f32 %v2565, %v2571
        %v2578 = vmul.f32 %v2566, %v2571
        %v2579 = vmul.f32 %v2567, %v2571
        %v2580 = vadd.f32 %v2504, %v2572
        %v2581 = vadd.f32 %v2505, %v2573
        %v2582 = vadd.f32 %v2506, %v2574
        %v2583 = vadd.f32 %v2507, %v2575
        %v2584 = vadd.f32 %v2508, %v2576
        %v2585 = vadd.f32 %v2509, %v2577
        %v2586 = vadd.f32 %v2510, %v2578
        %v2587 = vadd.f32 %v2511, %v2579
        %v2588 = vld [vmem:[%s2466 + $0x1] sm:$0xff]
        %v2589 = vld [vmem:[%s2466 + $0x11] sm:$0xff]
        %v2590 = vld [vmem:[%s2466 + $0x21] sm:$0xff]
        %v2591 = vld [vmem:[%s2466 + $0x31] sm:$0xff]
        %v2592 = vld [vmem:[%s2466 + $0x41] sm:$0xff]
        %v2593 = vld [vmem:[%s2466 + $0x51] sm:$0xff]
        %v2594 = vld [vmem:[%s2466 + $0x61] sm:$0xff]
        %v2595 = vld [vmem:[%s2466 + $0x71] sm:$0xff]
        %v2596 = vlaneseq
        %v2597 = vshrl.u32 %v2596, 7
        %v2598 = vsub.s32 4, %v2597
        %v2599 = vrot.slane %v2475, %v2598
        %v2600 = vmul.f32 %v2588, %v2599
        %v2601 = vmul.f32 %v2589, %v2599
        %v2602 = vmul.f32 %v2590, %v2599
        %v2603 = vmul.f32 %v2591, %v2599
        %v2604 = vmul.f32 %v2592, %v2599
        %v2605 = vmul.f32 %v2593, %v2599
        %v2606 = vmul.f32 %v2594, %v2599
        %v2607 = vmul.f32 %v2595, %v2599
        %v2608 = vadd.f32 %v2532, %v2600
        %v2609 = vadd.f32 %v2533, %v2601
        %v2610 = vadd.f32 %v2534, %v2602
        %v2611 = vadd.f32 %v2535, %v2603
        %v2612 = vadd.f32 %v2536, %v2604
        %v2613 = vadd.f32 %v2537, %v2605
        %v2614 = vadd.f32 %v2538, %v2606
        %v2615 = vadd.f32 %v2539, %v2607
        %v2616 = vld [vmem:[%s2466 + $0x2] sm:$0xff]
        %v2617 = vld [vmem:[%s2466 + $0x12] sm:$0xff]
        %v2618 = vld [vmem:[%s2466 + $0x22] sm:$0xff]
        %v2619 = vld [vmem:[%s2466 + $0x32] sm:$0xff]
        %v2620 = vld [vmem:[%s2466 + $0x42] sm:$0xff]
        %v2621 = vld [vmem:[%s2466 + $0x52] sm:$0xff]
        %v2622 = vld [vmem:[%s2466 + $0x62] sm:$0xff]
        %v2623 = vld [vmem:[%s2466 + $0x72] sm:$0xff]
        %v2624 = vlaneseq
        %v2625 = vshrl.u32 %v2624, 7
        %v2626 = vsub.s32 5, %v2625
        %v2627 = vrot.slane %v2475, %v2626
        %v2628 = vmul.f32 %v2616, %v2627
        %v2629 = vmul.f32 %v2617, %v2627
        %v2630 = vmul.f32 %v2618, %v2627
        %v2631 = vmul.f32 %v2619, %v2627
        %v2632 = vmul.f32 %v2620, %v2627
        %v2633 = vmul.f32 %v2621, %v2627
        %v2634 = vmul.f32 %v2622, %v2627
        %v2635 = vmul.f32 %v2623, %v2627
        %v2636 = vadd.f32 %v2552, %v2628
        %v2637 = vadd.f32 %v2553, %v2629
        %v2638 = vadd.f32 %v2554, %v2630
        %v2639 = vadd.f32 %v2555, %v2631
        %v2640 = vadd.f32 %v2556, %v2632
        %v2641 = vadd.f32 %v2557, %v2633
        %v2642 = vadd.f32 %v2558, %v2634
        %v2643 = vadd.f32 %v2559, %v2635
        %s2644 = scalar_lea.vmem [#allocation4], 32
        %v2645 = vld [vmem:[%s2644] sm:$0xff]
        %v2646 = vld [vmem:[%s2644 + $0x10] sm:$0xff]
        %v2647 = vld [vmem:[%s2644 + $0x20] sm:$0xff]
        %v2648 = vld [vmem:[%s2644 + $0x30] sm:$0xff]
        %v2649 = vld [vmem:[%s2644 + $0x40] sm:$0xff]
        %v2650 = vld [vmem:[%s2644 + $0x50] sm:$0xff]
        %v2651 = vld [vmem:[%s2644 + $0x60] sm:$0xff]
        %v2652 = vld [vmem:[%s2644 + $0x70] sm:$0xff]
        %v2653 = vlaneseq
        %v2654 = vshrl.u32 %v2653, 7
        %v2655 = vsub.s32 6, %v2654
        %v2656 = vrot.slane %v2475, %v2655
        %v2657 = vmul.f32 %v2645, %v2656
        %v2658 = vmul.f32 %v2646, %v2656
        %v2659 = vmul.f32 %v2647, %v2656
        %v2660 = vmul.f32 %v2648, %v2656
        %v2661 = vmul.f32 %v2649, %v2656
        %v2662 = vmul.f32 %v2650, %v2656
        %v2663 = vmul.f32 %v2651, %v2656
        %v2664 = vmul.f32 %v2652, %v2656
        %v2665 = vadd.f32 %v2580, %v2657
        %v2666 = vadd.f32 %v2581, %v2658
        %v2667 = vadd.f32 %v2582, %v2659
        %v2668 = vadd.f32 %v2583, %v2660
        %v2669 = vadd.f32 %v2584, %v2661
        %v2670 = vadd.f32 %v2585, %v2662
        %v2671 = vadd.f32 %v2586, %v2663
        %v2672 = vadd.f32 %v2587, %v2664
        %v2673 = vld [vmem:[%s2644 + $0x1] sm:$0xff]
        %v2674 = vld [vmem:[%s2644 + $0x11] sm:$0xff]
        %v2675 = vld [vmem:[%s2644 + $0x21] sm:$0xff]
        %v2676 = vld [vmem:[%s2644 + $0x31] sm:$0xff]
        %v2677 = vld [vmem:[%s2644 + $0x41] sm:$0xff]
        %v2678 = vld [vmem:[%s2644 + $0x51] sm:$0xff]
        %v2679 = vld [vmem:[%s2644 + $0x61] sm:$0xff]
        %v2680 = vld [vmem:[%s2644 + $0x71] sm:$0xff]
        %v2681 = vlaneseq
        %v2682 = vshrl.u32 %v2681, 7
        %v2683 = vsub.s32 7, %v2682
        %v2684 = vrot.slane %v2475, %v2683
        %v2685 = vmul.f32 %v2673, %v2684
        %v2686 = vmul.f32 %v2674, %v2684
        %v2687 = vmul.f32 %v2675, %v2684
        %v2688 = vmul.f32 %v2676, %v2684
        %v2689 = vmul.f32 %v2677, %v2684
        %v2690 = vmul.f32 %v2678, %v2684
        %v2691 = vmul.f32 %v2679, %v2684
        %v2692 = vmul.f32 %v2680, %v2684
        %v2693 = vadd.f32 %v2608, %v2685
        %v2694 = vadd.f32 %v2609, %v2686
        %v2695 = vadd.f32 %v2610, %v2687
        %v2696 = vadd.f32 %v2611, %v2688
        %v2697 = vadd.f32 %v2612, %v2689
        %v2698 = vadd.f32 %v2613, %v2690
        %v2699 = vadd.f32 %v2614, %v2691
        %v2700 = vadd.f32 %v2615, %v2692
        %v2701 = vld [vmem:[%s2644 + $0x2] sm:$0xff]
        %v2702 = vld [vmem:[%s2644 + $0x12] sm:$0xff]
        %v2703 = vld [vmem:[%s2644 + $0x22] sm:$0xff]
        %v2704 = vld [vmem:[%s2644 + $0x32] sm:$0xff]
        %v2705 = vld [vmem:[%s2644 + $0x42] sm:$0xff]
        %v2706 = vld [vmem:[%s2644 + $0x52] sm:$0xff]
        %v2707 = vld [vmem:[%s2644 + $0x62] sm:$0xff]
        %v2708 = vld [vmem:[%s2644 + $0x72] sm:$0xff]
        %v2709 = vlaneseq
        %v2710 = vshrl.u32 %v2709, 7
        %v2711 = vsub.s32 0, %v2710
        %v2712 = vrot.slane %v2476, %v2711
        %v2713 = vmul.f32 %v2701, %v2712
        %v2714 = vmul.f32 %v2702, %v2712
        %v2715 = vmul.f32 %v2703, %v2712
        %v2716 = vmul.f32 %v2704, %v2712
        %v2717 = vmul.f32 %v2705, %v2712
        %v2718 = vmul.f32 %v2706, %v2712
        %v2719 = vmul.f32 %v2707, %v2712
        %v2720 = vmul.f32 %v2708, %v2712
        %v2721 = vadd.f32 %v2636, %v2713
        %v2722 = vadd.f32 %v2637, %v2714
        %v2723 = vadd.f32 %v2638, %v2715
        %v2724 = vadd.f32 %v2639, %v2716
        %v2725 = vadd.f32 %v2640, %v2717
        %v2726 = vadd.f32 %v2641, %v2718
        %v2727 = vadd.f32 %v2642, %v2719
        %v2728 = vadd.f32 %v2643, %v2720
        %v2729 = vadd.f32 %v2665, %v2693
        %v2730 = vadd.f32 %v2666, %v2694
        %v2731 = vadd.f32 %v2667, %v2695
        %v2732 = vadd.f32 %v2668, %v2696
        %v2733 = vadd.f32 %v2669, %v2697
        %v2734 = vadd.f32 %v2670, %v2698
        %v2735 = vadd.f32 %v2671, %v2699
        %v2736 = vadd.f32 %v2672, %v2700
        %v2737 = vadd.f32 %v2729, %v2721
        %v2738 = vadd.f32 %v2730, %v2722
        %v2739 = vadd.f32 %v2731, %v2723
        %v2740 = vadd.f32 %v2732, %v2724
        %v2741 = vadd.f32 %v2733, %v2725
        %v2742 = vadd.f32 %v2734, %v2726
        %v2743 = vadd.f32 %v2735, %v2727
        %v2744 = vadd.f32 %v2736, %v2728
        %2745 = vst.msk [vmem:[%s487] sm:$0xff] %vm586, %v2737
        %2746 = vst.msk [vmem:[%s487 + $0x8] sm:$0xff] %vm586, %v2738
        %2747 = vst.msk [vmem:[%s487 + $0x10] sm:$0xff] %vm586, %v2739
        %2748 = vst.msk [vmem:[%s487 + $0x18] sm:$0xff] %vm586, %v2740
        %2749 = vst.msk [vmem:[%s487 + $0x20] sm:$0xff] %vm586, %v2741
        %2750 = vst.msk [vmem:[%s487 + $0x28] sm:$0xff] %vm586, %v2742
        %2751 = vst.msk [vmem:[%s487 + $0x30] sm:$0xff] %vm586, %v2743
        %2752 = vst.msk [vmem:[%s487 + $0x38] sm:$0xff] %vm586, %v2744
        %s2753 = sand.u32 %s357, 1
        %s2754 = scalar_lea.sflag [#allocation6], %s2753
        %s2755 = sand.u32 %s357, 1
        %s2756 = smul.addr %s2755, 64
        %s2757 = scalar_lea.vmem [#allocation5], %s2756
        // Predicated region
        $region81: #{patch_merging_forward.1} parent=79 // pred_check
          %p2758 = pneg %p367
        $region82: #{patch_merging_forward.1} parent=79 // pred_check_branch
          %2760 = sbr.rel (%p2758) target = $region84
        $region83: #{patch_merging_forward.1} parent=79 // pred_region
          %s2762 = ssub.s32 1024, 1024
          %2763 = vsyncadd %s2754, %s2762
          %s2764 = smul.addr %s29, 8
          %s2765 = smul.addr %s2764, 128
          %s2766 = scalar_lea.hbm %s15, %s2765
          %s2767 = sshll.u32 %s2757, 4
          %s2768 = int_to_ptr.vmem [resolvable:$true] %s2767
          %2773 = dma.vmem_to_hbm [thread:$0]  %s2768, 1024, %s2766, %s2754, 128, 128, 8
        $region84: #{patch_merging_forward.1} parent=79 // pred_fallthru
          _
      $region80: #{patch_merging_forward.1} parent=5 // pred_fallthru
        _
      %p2774 = scmp.le.s32.totalorder 2, %s24
      // Predicated region
      $region85: #{patch_merging_forward.1} parent=5 // pred_check
        %p2775 = pneg %p2774
      $region86: #{patch_merging_forward.1} parent=5 // pred_check_branch
        %2777 = sbr.rel (%p2775) target = $region88
      $region87: #{patch_merging_forward.1} parent=5 // pred_region
        %s2778 = ssub.s32 %s24, 2
        // Predicated region
        $region89: #{patch_merging_forward.1} parent=87 // pred_check
          %p2779 = pneg %p373
        $region90: #{patch_merging_forward.1} parent=87 // pred_check_branch
          %2781 = sbr.rel (%p2779) target = $region92
        $region91: #{patch_merging_forward.1} parent=87 // pred_region
          %s2782 = sand.u32 %s358, 1
          %s2783 = scalar_lea.sflag [#allocation6], %s2782
          %s2784 = sand.u32 %s358, 1
          %s2785 = smul.addr %s2784, 64
          %s2786 = scalar_lea.vmem [#allocation5], %s2785
          %2787 = dma.done %s2783, 1024
        $region92: #{patch_merging_forward.1} parent=87 // pred_fallthru
          _
      $region88: #{patch_merging_forward.1} parent=5 // pred_fallthru
        _
    $region6: #{patch_merging_forward.1} parent=1 // loop_footer
      %s28 = sadd.s32 1, %s24
    $region7: #{patch_merging_forward.1} parent=1 // loop_footer_branch
      %23 = sbr.rel target = $region3
    $region8: #{patch_merging_forward.1} parent=1 // loop_exit
      _
    %2788 = vsyncpa [#allocation6], 1
    %s2789 = scalar_lea.sflag [#allocation6], 1
    %2790 = vsyncpa %s2789, 1

</llo_original>
